<compile_context>
chip_gen: v7x
topology: tpu7x:2x2x1
jax: 0.10.0
libtpu: 0.0.40
codegen_flags: <defaults>
</compile_context>

<pallas_src>
import jax
import jax.numpy as jnp
import numpy as np
from jax.experimental import pallas as pl
from jax.experimental import pallas as _pl_unused  # noqa: F401
from jax.experimental.pallas import tpu as pltpu  # noqa: F401  (not needed for this size)

_LANE = 128  # TPU lane width; each LSTM gate gets its own 128-lane-aligned column block


def _round_up(n, m):
    return ((n + m - 1) // m) * m


# --------------------------- host-side, one-time packing ---------------------------

def _pack_gate_weights_np(w, gate_stride, k_pad):
    """PyTorch (4H, K) gate weights -> (k_pad, 4*gate_stride) for the `h @ W` form.

    Gate g (PyTorch order i, f, g, o) lands in columns [g*gate_stride, g*gate_stride + H);
    all padding rows/columns are zero so padded lanes of the LSTM state stay exactly 0.
    """
    w = np.asarray(w, np.float32)
    four_h, k = w.shape
    h = four_h // 4
    out = np.zeros((k_pad, 4 * gate_stride), np.float32)
    for g in range(4):
        out[:k, g * gate_stride:g * gate_stride + h] = w[g * h:(g + 1) * h, :].T
    return out


def _pack_gate_bias_np(b, gate_stride):
    b = np.asarray(b, np.float32)
    h = b.shape[0] // 4
    out = np.zeros((1, 4 * gate_stride), np.float32)
    for g in range(4):
        out[0, g * gate_stride:g * gate_stride + h] = b[g * h:(g + 1) * h]
    return out


def pack_params(params):
    """Run ONCE outside the jitted forward; the packed tensors are the real params."""
    d_in = params["enc_w_ih"].shape[1]
    h_enc = params["enc_w_hh"].shape[1]
    h_dec = params["dec_w_hh"].shape[1]
    gs_e = _round_up(h_enc, _LANE)
    gs_d = _round_up(h_dec, _LANE)

    b_e = np.asarray(params["enc_b_ih"], np.float32) + np.asarray(params["enc_b_hh"], np.float32)
    b_d = np.asarray(params["dec_b_ih"], np.float32) + np.asarray(params["dec_b_hh"], np.float32)

    return {
        # encoder input projection rows: (D, 4*gs_e) -- used via VPU broadcast-MACs
        "wih_e": jnp.asarray(_pack_gate_weights_np(params["enc_w_ih"], gs_e, d_in)),
        "b_e": jnp.asarray(_pack_gate_bias_np(b_e, gs_e)),                           # (1, 4*gs_e)
        # encoder recurrent weights: bf16 for the MXU, lane-padded (gs_e, 4*gs_e)
        "whh_e": jnp.asarray(_pack_gate_weights_np(params["enc_w_hh"], gs_e, gs_e)
                             ).astype(jnp.bfloat16),
        # decoder input projection (constant over time): (gs_e, 4*gs_d), one f32 matmul
        "wih_d": jnp.asarray(_pack_gate_weights_np(params["dec_w_ih"], gs_d, gs_e)),
        "b_d": jnp.asarray(_pack_gate_bias_np(b_d, gs_d)),                           # (1, 4*gs_d)
        # decoder recurrent weight rows: (h_dec, 4*gs_d) -- used via VPU broadcast-MACs
        "whh_d": jnp.asarray(_pack_gate_weights_np(params["dec_w_hh"], gs_d, h_dec)),
    }


# ----------------------------------- kernel -----------------------------------

def _lstm_cell(gates, c, gs):
    """Gate blocks are 128-lane aligned (width gs) -> these slices are free vreg selects."""
    i_g = jax.nn.sigmoid(gates[:, 0 * gs:1 * gs])
    f_g = jax.nn.sigmoid(gates[:, 1 * gs:2 * gs])
    g_g = jnp.tanh(gates[:, 2 * gs:3 * gs])
    o_g = jax.nn.sigmoid(gates[:, 3 * gs:4 * gs])
    c_new = f_g * c + i_g * g_g
    h_new = o_g * jnp.tanh(c_new)
    return h_new, c_new


def _autoencoder_kernel(x_ref, wih_e_ref, b_e_ref, whh_e_ref,
                        wih_d_ref, b_d_ref, whh_d_ref, out_ref):
    """Fused encoder LSTM -> repeat(h_last) -> decoder LSTM.  Runs once (no grid)."""
    B, T, D = x_ref.shape
    gs_e = whh_e_ref.shape[0]          # lane-padded encoder hidden width (128)
    h_dec = whh_d_ref.shape[0]         # true decoder hidden size (3)
    gs_d = whh_d_ref.shape[1] // 4     # lane-padded decoder hidden width (128)

    # Tiny operands loaded once (a few KB); the big encoder W_hh stays behind its ref and
    # is read next to each matmul so Mosaic streams it from VMEM (no 8-step live range).
    wih_e = wih_e_ref[...]             # (D, 4*gs_e)
    b_e = b_e_ref[...]                 # (1, 4*gs_e)

    # ------------------------------- encoder -------------------------------
    h = jnp.zeros((B, gs_e), jnp.float32)
    c = jnp.zeros((B, gs_e), jnp.float32)
    for t in range(T):                 # static unroll (T known at trace time)
        x_t = x_ref[:, t, :]           # (B, D)
        # input projection: D=3 -> three VPU broadcast-MACs, off the MXU entirely
        gx = b_e
        for d in range(D):
            gx = gx + x_t[:, d:d + 1] * wih_e[d:d + 1, :]
        # recurrent matmul on the MXU in bf16 (f32 accumulate); only thing on the
        # serial critical path
        gates = gx + jnp.dot(h.astype(jnp.bfloat16), whh_e_ref[...],
                             preferred_element_type=jnp.float32)
        h, c = _lstm_cell(gates, c, gs_e)

    # ------------------------------- decoder -------------------------------
    # Decoder input is h_last repeated T times -> its input projection is constant over
    # time: one f32 MXU matmul (kept f32: it feeds the bottleneck state).
    dec_proj = (jnp.dot(h, wih_d_ref[...], preferred_element_type=jnp.float32)
                + b_d_ref[...])        # (B, 4*gs_d)
    whh_d = whh_d_ref[...]             # (h_dec, 4*gs_d), tiny

    hd = jnp.zeros((B, gs_d), jnp.float32)
    cd = jnp.zeros((B, gs_d), jnp.float32)
    for t in range(T):
        # recurrent "matmul": h_dec=3 -> three VPU broadcast-MACs instead of a 99%-zero
        # MXU pass on every serial step
        gates = dec_proj
        for k in range(h_dec):
            gates = gates + hd[:, k:k + 1] * whh_d[k:k + 1, :]
        hd, cd = _lstm_cell(gates, cd, gs_d)
        out_ref[:, t, :] = hd          # static t, lane-dense (B, gs_d) store


# ----------------------------------- wrapper -----------------------------------

def lstm_autoencoder_forward(x, packed):
    """Equivalent of LSTMAutoEncoder.forward; `packed` comes from pack_params()."""
    B, T, _ = x.shape
    h_dec = packed["whh_d"].shape[0]
    gs_d = packed["whh_d"].shape[1] // 4

    out_pad = pl.pallas_call(
        _autoencoder_kernel,
        out_shape=jax.ShapeDtypeStruct((B, T, gs_d), jnp.float32),
    )(x.astype(jnp.float32), packed["wih_e"], packed["b_e"], packed["whh_e"],
      packed["wih_d"], packed["b_d"], packed["whh_d"])

    # Only a tiny lane slice remains in the wrapper (output written batch-major in-kernel).
    return out_pad[:, :, :h_dec]


# ----------------------- pure-JAX reference for validation -----------------------

def _lstm_ref(x, w_ih, w_hh, b_ih, b_hh):
    B, T, D = x.shape
    H = w_hh.shape[1]

    def step(carry, x_t):
        h, c = carry
        gates = x_t @ w_ih.T + b_ih + h @ w_hh.T + b_hh
        i, f, g, o = jnp.split(gates, 4, axis=-1)
        i = jax.nn.sigmoid(i)
        f = jax.nn.sigmoid(f)
        g = jnp.tanh(g)
        o = jax.nn.sigmoid(o)
        c = f * c + i * g
        h = o * jnp.tanh(c)
        return (h, c), h

    init = (jnp.zeros((B, H), jnp.float32), jnp.zeros((B, H), jnp.float32))
    (h, _), hs = jax.lax.scan(step, init, jnp.transpose(x, (1, 0, 2)))
    return jnp.transpose(hs, (1, 0, 2)), h


def _autoencoder_ref(x, params):
    B, T, _ = x.shape
    _, h_last = _lstm_ref(x, params["enc_w_ih"], params["enc_w_hh"],
                          params["enc_b_ih"], params["enc_b_hh"])
    h_rep = jnp.broadcast_to(h_last[:, None, :], (B, T, h_last.shape[-1]))
    out, _ = _lstm_ref(h_rep, params["dec_w_ih"], params["dec_w_hh"],
                       params["dec_b_ih"], params["dec_b_hh"])
    return out


# ----------------------------------- main -----------------------------------

def _init_params(key, input_dim=3, hidden_dim=64):
    # PyTorch-style uniform(-1/sqrt(H), 1/sqrt(H)) init, deterministic from key.
    keys = jax.random.split(key, 8)
    k_enc = 1.0 / np.sqrt(hidden_dim)
    k_dec = 1.0 / np.sqrt(input_dim)

    def u(k, shape, scale):
        return jax.random.uniform(k, shape, jnp.float32, -scale, scale)

    return {
        # encoder: LSTM(input_dim -> hidden_dim)
        "enc_w_ih": u(keys[0], (4 * hidden_dim, input_dim), k_enc),
        "enc_w_hh": u(keys[1], (4 * hidden_dim, hidden_dim), k_enc),
        "enc_b_ih": u(keys[2], (4 * hidden_dim,), k_enc),
        "enc_b_hh": u(keys[3], (4 * hidden_dim,), k_enc),
        # decoder: LSTM(hidden_dim -> input_dim)
        "dec_w_ih": u(keys[4], (4 * input_dim, hidden_dim), k_dec),
        "dec_w_hh": u(keys[5], (4 * input_dim, input_dim), k_dec),
        "dec_b_ih": u(keys[6], (4 * input_dim,), k_dec),
        "dec_b_hh": u(keys[7], (4 * input_dim,), k_dec),
    }


if __name__ == "__main__":
    B, T, INPUT_DIM, HIDDEN_DIM = 4, 8, 3, 64

    root = jax.random.PRNGKey(0)
    k_x, k_p = jax.random.split(root)
    x = jax.random.normal(k_x, (B, T, INPUT_DIM), dtype=jnp.float32)
    params = _init_params(k_p, INPUT_DIM, HIDDEN_DIM)

    packed = pack_params(params)  # one-time, host-side, OUTSIDE the jitted forward

    fwd = jax.jit(lstm_autoencoder_forward)
    out = jax.block_until_ready(fwd(x, packed))

    ref = _autoencoder_ref(x, params)
    # bf16 encoder recurrent weights -> relaxed tolerance (per review); a structural bug
    # would produce O(0.1..1) errors, still well outside this band.
    np.testing.assert_allclose(np.asarray(out), np.asarray(ref), rtol=2e-2, atol=2e-2)
    assert out.shape == (B, T, INPUT_DIM)

    print("KERNEL_OK")
</pallas_src>

<mosaic_0001>
module attributes {stable_mosaic.version = 11 : i64} {
  func.func @_autoencoder_kernel(%arg0: memref<4x8x3xf32, #tpu.memory_space<vmem>>, %arg1: memref<3x512xf32, #tpu.memory_space<vmem>>, %arg2: memref<1x512xf32, #tpu.memory_space<vmem>>, %arg3: memref<128x512xbf16, #tpu.memory_space<vmem>>, %arg4: memref<128x512xf32, #tpu.memory_space<vmem>>, %arg5: memref<1x512xf32, #tpu.memory_space<vmem>>, %arg6: memref<3x512xf32, #tpu.memory_space<vmem>>, %arg7: memref<4x8x128xf32, #tpu.memory_space<vmem>>) attributes {dimension_semantics = [], scalar_prefetch = 0 : i64, scratch_operands = 0 : i64, tpu.core_type = #tpu.core_type<tc>} {
    %c0 = arith.constant 0 : index
    %c0_0 = arith.constant 0 : index
    %0 = vector.load %arg1[%c0, %c0_0] : memref<3x512xf32, #tpu.memory_space<vmem>>, vector<3x512xf32>
    %c0_1 = arith.constant 0 : index
    %c0_2 = arith.constant 0 : index
    %1 = vector.load %arg2[%c0_1, %c0_2] : memref<1x512xf32, #tpu.memory_space<vmem>>, vector<1x512xf32>
    %cst = arith.constant 0.000000e+00 : f32
    %2 = vector.broadcast %cst : f32 to vector<4x128xf32>
    %cst_3 = arith.constant 0.000000e+00 : f32
    %3 = vector.broadcast %cst_3 : f32 to vector<4x128xf32>
    %c0_4 = arith.constant 0 : index
    %c0_5 = arith.constant 0 : index
    %c0_6 = arith.constant 0 : index
    %4 = vector.load %arg0[%c0_4, %c0_5, %c0_6] : memref<4x8x3xf32, #tpu.memory_space<vmem>>, vector<4x1x3xf32>
    %5 = vector.shape_cast %4 : vector<4x1x3xf32> to vector<4x3xf32>
    %6 = vector.extract_strided_slice %5 {offsets = [0, 0], sizes = [4, 1], strides = [1, 1]} : vector<4x3xf32> to vector<4x1xf32>
    %7 = vector.extract_strided_slice %0 {offsets = [0, 0], sizes = [1, 512], strides = [1, 1]} : vector<3x512xf32> to vector<1x512xf32>
    %8 = vector.broadcast %6 : vector<4x1xf32> to vector<4x512xf32>
    %9 = vector.broadcast %7 : vector<1x512xf32> to vector<4x512xf32>
    %10 = arith.mulf %8, %9 : vector<4x512xf32>
    %11 = vector.broadcast %1 : vector<1x512xf32> to vector<4x512xf32>
    %12 = arith.addf %11, %10 : vector<4x512xf32>
    %13 = vector.extract_strided_slice %5 {offsets = [0, 1], sizes = [4, 1], strides = [1, 1]} : vector<4x3xf32> to vector<4x1xf32>
    %14 = vector.extract_strided_slice %0 {offsets = [1, 0], sizes = [1, 512], strides = [1, 1]} : vector<3x512xf32> to vector<1x512xf32>
    %15 = vector.broadcast %13 : vector<4x1xf32> to vector<4x512xf32>
    %16 = vector.broadcast %14 : vector<1x512xf32> to vector<4x512xf32>
    %17 = arith.mulf %15, %16 : vector<4x512xf32>
    %18 = arith.addf %12, %17 : vector<4x512xf32>
    %19 = vector.extract_strided_slice %5 {offsets = [0, 2], sizes = [4, 1], strides = [1, 1]} : vector<4x3xf32> to vector<4x1xf32>
    %20 = vector.extract_strided_slice %0 {offsets = [2, 0], sizes = [1, 512], strides = [1, 1]} : vector<3x512xf32> to vector<1x512xf32>
    %21 = vector.broadcast %19 : vector<4x1xf32> to vector<4x512xf32>
    %22 = vector.broadcast %20 : vector<1x512xf32> to vector<4x512xf32>
    %23 = arith.mulf %21, %22 : vector<4x512xf32>
    %24 = arith.addf %18, %23 : vector<4x512xf32>
    %25 = arith.truncf %2 : vector<4x128xf32> to vector<4x128xbf16>
    %c0_7 = arith.constant 0 : index
    %c0_8 = arith.constant 0 : index
    %26 = vector.load %arg3[%c0_7, %c0_8] : memref<128x512xbf16, #tpu.memory_space<vmem>>, vector<128x512xbf16>
    %cst_9 = arith.constant dense<0.000000e+00> : vector<4x512xf32>
    %27 = tpu.matmul %25, %26, %cst_9 {dimension_numbers = #tpu.dot_dimension_numbers<[1], [0], [0], [1], [0, 0, 1, 1], [], []>} : vector<4x128xbf16>, vector<128x512xbf16>, vector<4x512xf32> -> vector<4x512xf32>
    %28 = arith.addf %24, %27 : vector<4x512xf32>
    %29 = vector.extract_strided_slice %28 {offsets = [0, 0], sizes = [4, 128], strides = [1, 1]} : vector<4x512xf32> to vector<4x128xf32>
    %30 = arith.negf %29 : vector<4x128xf32>
    %31 = math.exp %30 : vector<4x128xf32>
    %cst_10 = arith.constant 1.000000e+00 : f32
    %32 = vector.broadcast %cst_10 : f32 to vector<4x128xf32>
    %33 = arith.addf %32, %31 : vector<4x128xf32>
    %34 = arith.divf %32, %33 : vector<4x128xf32>
    %35 = vector.extract_strided_slice %28 {offsets = [0, 128], sizes = [4, 128], strides = [1, 1]} : vector<4x512xf32> to vector<4x128xf32>
    %36 = arith.negf %35 : vector<4x128xf32>
    %37 = math.exp %36 : vector<4x128xf32>
    %cst_11 = arith.constant 1.000000e+00 : f32
    %38 = vector.broadcast %cst_11 : f32 to vector<4x128xf32>
    %39 = arith.addf %38, %37 : vector<4x128xf32>
    %40 = arith.divf %38, %39 : vector<4x128xf32>
    %41 = vector.extract_strided_slice %28 {offsets = [0, 256], sizes = [4, 128], strides = [1, 1]} : vector<4x512xf32> to vector<4x128xf32>
    %42 = math.tanh %41 : vector<4x128xf32>
    %43 = vector.extract_strided_slice %28 {offsets = [0, 384], sizes = [4, 128], strides = [1, 1]} : vector<4x512xf32> to vector<4x128xf32>
    %44 = arith.negf %43 : vector<4x128xf32>
    %45 = math.exp %44 : vector<4x128xf32>
    %cst_12 = arith.constant 1.000000e+00 : f32
    %46 = vector.broadcast %cst_12 : f32 to vector<4x128xf32>
    %47 = arith.addf %46, %45 : vector<4x128xf32>
    %48 = arith.divf %46, %47 : vector<4x128xf32>
    %49 = arith.mulf %40, %3 : vector<4x128xf32>
    %50 = arith.mulf %34, %42 : vector<4x128xf32>
    %51 = arith.addf %49, %50 : vector<4x128xf32>
    %52 = math.tanh %51 : vector<4x128xf32>
    %53 = arith.mulf %48, %52 : vector<4x128xf32>
    %c0_13 = arith.constant 0 : index
    %c1 = arith.constant 1 : index
    %c0_14 = arith.constant 0 : index
    %54 = vector.load %arg0[%c0_13, %c1, %c0_14] : memref<4x8x3xf32, #tpu.memory_space<vmem>>, vector<4x1x3xf32>
    %55 = vector.shape_cast %54 : vector<4x1x3xf32> to vector<4x3xf32>
    %56 = vector.extract_strided_slice %55 {offsets = [0, 0], sizes = [4, 1], strides = [1, 1]} : vector<4x3xf32> to vector<4x1xf32>
    %57 = vector.extract_strided_slice %0 {offsets = [0, 0], sizes = [1, 512], strides = [1, 1]} : vector<3x512xf32> to vector<1x512xf32>
    %58 = vector.broadcast %56 : vector<4x1xf32> to vector<4x512xf32>
    %59 = vector.broadcast %57 : vector<1x512xf32> to vector<4x512xf32>
    %60 = arith.mulf %58, %59 : vector<4x512xf32>
    %61 = vector.broadcast %1 : vector<1x512xf32> to vector<4x512xf32>
    %62 = arith.addf %61, %60 : vector<4x512xf32>
    %63 = vector.extract_strided_slice %55 {offsets = [0, 1], sizes = [4, 1], strides = [1, 1]} : vector<4x3xf32> to vector<4x1xf32>
    %64 = vector.extract_strided_slice %0 {offsets = [1, 0], sizes = [1, 512], strides = [1, 1]} : vector<3x512xf32> to vector<1x512xf32>
    %65 = vector.broadcast %63 : vector<4x1xf32> to vector<4x512xf32>
    %66 = vector.broadcast %64 : vector<1x512xf32> to vector<4x512xf32>
    %67 = arith.mulf %65, %66 : vector<4x512xf32>
    %68 = arith.addf %62, %67 : vector<4x512xf32>
    %69 = vector.extract_strided_slice %55 {offsets = [0, 2], sizes = [4, 1], strides = [1, 1]} : vector<4x3xf32> to vector<4x1xf32>
    %70 = vector.extract_strided_slice %0 {offsets = [2, 0], sizes = [1, 512], strides = [1, 1]} : vector<3x512xf32> to vector<1x512xf32>
    %71 = vector.broadcast %69 : vector<4x1xf32> to vector<4x512xf32>
    %72 = vector.broadcast %70 : vector<1x512xf32> to vector<4x512xf32>
    %73 = arith.mulf %71, %72 : vector<4x512xf32>
    %74 = arith.addf %68, %73 : vector<4x512xf32>
    %75 = arith.truncf %53 : vector<4x128xf32> to vector<4x128xbf16>
    %c0_15 = arith.constant 0 : index
    %c0_16 = arith.constant 0 : index
    %76 = vector.load %arg3[%c0_15, %c0_16] : memref<128x512xbf16, #tpu.memory_space<vmem>>, vector<128x512xbf16>
    %cst_17 = arith.constant dense<0.000000e+00> : vector<4x512xf32>
    %77 = tpu.matmul %75, %76, %cst_17 {dimension_numbers = #tpu.dot_dimension_numbers<[1], [0], [0], [1], [0, 0, 1, 1], [], []>} : vector<4x128xbf16>, vector<128x512xbf16>, vector<4x512xf32> -> vector<4x512xf32>
    %78 = arith.addf %74, %77 : vector<4x512xf32>
    %79 = vector.extract_strided_slice %78 {offsets = [0, 0], sizes = [4, 128], strides = [1, 1]} : vector<4x512xf32> to vector<4x128xf32>
    %80 = arith.negf %79 : vector<4x128xf32>
    %81 = math.exp %80 : vector<4x128xf32>
    %cst_18 = arith.constant 1.000000e+00 : f32
    %82 = vector.broadcast %cst_18 : f32 to vector<4x128xf32>
    %83 = arith.addf %82, %81 : vector<4x128xf32>
    %84 = arith.divf %82, %83 : vector<4x128xf32>
    %85 = vector.extract_strided_slice %78 {offsets = [0, 128], sizes = [4, 128], strides = [1, 1]} : vector<4x512xf32> to vector<4x128xf32>
    %86 = arith.negf %85 : vector<4x128xf32>
    %87 = math.exp %86 : vector<4x128xf32>
    %cst_19 = arith.constant 1.000000e+00 : f32
    %88 = vector.broadcast %cst_19 : f32 to vector<4x128xf32>
    %89 = arith.addf %88, %87 : vector<4x128xf32>
    %90 = arith.divf %88, %89 : vector<4x128xf32>
    %91 = vector.extract_strided_slice %78 {offsets = [0, 256], sizes = [4, 128], strides = [1, 1]} : vector<4x512xf32> to vector<4x128xf32>
    %92 = math.tanh %91 : vector<4x128xf32>
    %93 = vector.extract_strided_slice %78 {offsets = [0, 384], sizes = [4, 128], strides = [1, 1]} : vector<4x512xf32> to vector<4x128xf32>
    %94 = arith.negf %93 : vector<4x128xf32>
    %95 = math.exp %94 : vector<4x128xf32>
    %cst_20 = arith.constant 1.000000e+00 : f32
    %96 = vector.broadcast %cst_20 : f32 to vector<4x128xf32>
    %97 = arith.addf %96, %95 : vector<4x128xf32>
    %98 = arith.divf %96, %97 : vector<4x128xf32>
    %99 = arith.mulf %90, %51 : vector<4x128xf32>
    %100 = arith.mulf %84, %92 : vector<4x128xf32>
    %101 = arith.addf %99, %100 : vector<4x128xf32>
    %102 = math.tanh %101 : vector<4x128xf32>
    %103 = arith.mulf %98, %102 : vector<4x128xf32>
    %c0_21 = arith.constant 0 : index
    %c2 = arith.constant 2 : index
    %c0_22 = arith.constant 0 : index
    %104 = vector.load %arg0[%c0_21, %c2, %c0_22] : memref<4x8x3xf32, #tpu.memory_space<vmem>>, vector<4x1x3xf32>
    %105 = vector.shape_cast %104 : vector<4x1x3xf32> to vector<4x3xf32>
    %106 = vector.extract_strided_slice %105 {offsets = [0, 0], sizes = [4, 1], strides = [1, 1]} : vector<4x3xf32> to vector<4x1xf32>
    %107 = vector.extract_strided_slice %0 {offsets = [0, 0], sizes = [1, 512], strides = [1, 1]} : vector<3x512xf32> to vector<1x512xf32>
    %108 = vector.broadcast %106 : vector<4x1xf32> to vector<4x512xf32>
    %109 = vector.broadcast %107 : vector<1x512xf32> to vector<4x512xf32>
    %110 = arith.mulf %108, %109 : vector<4x512xf32>
    %111 = vector.broadcast %1 : vector<1x512xf32> to vector<4x512xf32>
    %112 = arith.addf %111, %110 : vector<4x512xf32>
    %113 = vector.extract_strided_slice %105 {offsets = [0, 1], sizes = [4, 1], strides = [1, 1]} : vector<4x3xf32> to vector<4x1xf32>
    %114 = vector.extract_strided_slice %0 {offsets = [1, 0], sizes = [1, 512], strides = [1, 1]} : vector<3x512xf32> to vector<1x512xf32>
    %115 = vector.broadcast %113 : vector<4x1xf32> to vector<4x512xf32>
    %116 = vector.broadcast %114 : vector<1x512xf32> to vector<4x512xf32>
    %117 = arith.mulf %115, %116 : vector<4x512xf32>
    %118 = arith.addf %112, %117 : vector<4x512xf32>
    %119 = vector.extract_strided_slice %105 {offsets = [0, 2], sizes = [4, 1], strides = [1, 1]} : vector<4x3xf32> to vector<4x1xf32>
    %120 = vector.extract_strided_slice %0 {offsets = [2, 0], sizes = [1, 512], strides = [1, 1]} : vector<3x512xf32> to vector<1x512xf32>
    %121 = vector.broadcast %119 : vector<4x1xf32> to vector<4x512xf32>
    %122 = vector.broadcast %120 : vector<1x512xf32> to vector<4x512xf32>
    %123 = arith.mulf %121, %122 : vector<4x512xf32>
    %124 = arith.addf %118, %123 : vector<4x512xf32>
    %125 = arith.truncf %103 : vector<4x128xf32> to vector<4x128xbf16>
    %c0_23 = arith.constant 0 : index
    %c0_24 = arith.constant 0 : index
    %126 = vector.load %arg3[%c0_23, %c0_24] : memref<128x512xbf16, #tpu.memory_space<vmem>>, vector<128x512xbf16>
    %cst_25 = arith.constant dense<0.000000e+00> : vector<4x512xf32>
    %127 = tpu.matmul %125, %126, %cst_25 {dimension_numbers = #tpu.dot_dimension_numbers<[1], [0], [0], [1], [0, 0, 1, 1], [], []>} : vector<4x128xbf16>, vector<128x512xbf16>, vector<4x512xf32> -> vector<4x512xf32>
    %128 = arith.addf %124, %127 : vector<4x512xf32>
    %129 = vector.extract_strided_slice %128 {offsets = [0, 0], sizes = [4, 128], strides = [1, 1]} : vector<4x512xf32> to vector<4x128xf32>
    %130 = arith.negf %129 : vector<4x128xf32>
    %131 = math.exp %130 : vector<4x128xf32>
    %cst_26 = arith.constant 1.000000e+00 : f32
    %132 = vector.broadcast %cst_26 : f32 to vector<4x128xf32>
    %133 = arith.addf %132, %131 : vector<4x128xf32>
    %134 = arith.divf %132, %133 : vector<4x128xf32>
    %135 = vector.extract_strided_slice %128 {offsets = [0, 128], sizes = [4, 128], strides = [1, 1]} : vector<4x512xf32> to vector<4x128xf32>
    %136 = arith.negf %135 : vector<4x128xf32>
    %137 = math.exp %136 : vector<4x128xf32>
    %cst_27 = arith.constant 1.000000e+00 : f32
    %138 = vector.broadcast %cst_27 : f32 to vector<4x128xf32>
    %139 = arith.addf %138, %137 : vector<4x128xf32>
    %140 = arith.divf %138, %139 : vector<4x128xf32>
    %141 = vector.extract_strided_slice %128 {offsets = [0, 256], sizes = [4, 128], strides = [1, 1]} : vector<4x512xf32> to vector<4x128xf32>
    %142 = math.tanh %141 : vector<4x128xf32>
    %143 = vector.extract_strided_slice %128 {offsets = [0, 384], sizes = [4, 128], strides = [1, 1]} : vector<4x512xf32> to vector<4x128xf32>
    %144 = arith.negf %143 : vector<4x128xf32>
    %145 = math.exp %144 : vector<4x128xf32>
    %cst_28 = arith.constant 1.000000e+00 : f32
    %146 = vector.broadcast %cst_28 : f32 to vector<4x128xf32>
    %147 = arith.addf %146, %145 : vector<4x128xf32>
    %148 = arith.divf %146, %147 : vector<4x128xf32>
    %149 = arith.mulf %140, %101 : vector<4x128xf32>
    %150 = arith.mulf %134, %142 : vector<4x128xf32>
    %151 = arith.addf %149, %150 : vector<4x128xf32>
    %152 = math.tanh %151 : vector<4x128xf32>
    %153 = arith.mulf %148, %152 : vector<4x128xf32>
    %c0_29 = arith.constant 0 : index
    %c3 = arith.constant 3 : index
    %c0_30 = arith.constant 0 : index
    %154 = vector.load %arg0[%c0_29, %c3, %c0_30] : memref<4x8x3xf32, #tpu.memory_space<vmem>>, vector<4x1x3xf32>
    %155 = vector.shape_cast %154 : vector<4x1x3xf32> to vector<4x3xf32>
    %156 = vector.extract_strided_slice %155 {offsets = [0, 0], sizes = [4, 1], strides = [1, 1]} : vector<4x3xf32> to vector<4x1xf32>
    %157 = vector.extract_strided_slice %0 {offsets = [0, 0], sizes = [1, 512], strides = [1, 1]} : vector<3x512xf32> to vector<1x512xf32>
    %158 = vector.broadcast %156 : vector<4x1xf32> to vector<4x512xf32>
    %159 = vector.broadcast %157 : vector<1x512xf32> to vector<4x512xf32>
    %160 = arith.mulf %158, %159 : vector<4x512xf32>
    %161 = vector.broadcast %1 : vector<1x512xf32> to vector<4x512xf32>
    %162 = arith.addf %161, %160 : vector<4x512xf32>
    %163 = vector.extract_strided_slice %155 {offsets = [0, 1], sizes = [4, 1], strides = [1, 1]} : vector<4x3xf32> to vector<4x1xf32>
    %164 = vector.extract_strided_slice %0 {offsets = [1, 0], sizes = [1, 512], strides = [1, 1]} : vector<3x512xf32> to vector<1x512xf32>
    %165 = vector.broadcast %163 : vector<4x1xf32> to vector<4x512xf32>
    %166 = vector.broadcast %164 : vector<1x512xf32> to vector<4x512xf32>
    %167 = arith.mulf %165, %166 : vector<4x512xf32>
    %168 = arith.addf %162, %167 : vector<4x512xf32>
    %169 = vector.extract_strided_slice %155 {offsets = [0, 2], sizes = [4, 1], strides = [1, 1]} : vector<4x3xf32> to vector<4x1xf32>
    %170 = vector.extract_strided_slice %0 {offsets = [2, 0], sizes = [1, 512], strides = [1, 1]} : vector<3x512xf32> to vector<1x512xf32>
    %171 = vector.broadcast %169 : vector<4x1xf32> to vector<4x512xf32>
    %172 = vector.broadcast %170 : vector<1x512xf32> to vector<4x512xf32>
    %173 = arith.mulf %171, %172 : vector<4x512xf32>
    %174 = arith.addf %168, %173 : vector<4x512xf32>
    %175 = arith.truncf %153 : vector<4x128xf32> to vector<4x128xbf16>
    %c0_31 = arith.constant 0 : index
    %c0_32 = arith.constant 0 : index
    %176 = vector.load %arg3[%c0_31, %c0_32] : memref<128x512xbf16, #tpu.memory_space<vmem>>, vector<128x512xbf16>
    %cst_33 = arith.constant dense<0.000000e+00> : vector<4x512xf32>
    %177 = tpu.matmul %175, %176, %cst_33 {dimension_numbers = #tpu.dot_dimension_numbers<[1], [0], [0], [1], [0, 0, 1, 1], [], []>} : vector<4x128xbf16>, vector<128x512xbf16>, vector<4x512xf32> -> vector<4x512xf32>
    %178 = arith.addf %174, %177 : vector<4x512xf32>
    %179 = vector.extract_strided_slice %178 {offsets = [0, 0], sizes = [4, 128], strides = [1, 1]} : vector<4x512xf32> to vector<4x128xf32>
    %180 = arith.negf %179 : vector<4x128xf32>
    %181 = math.exp %180 : vector<4x128xf32>
    %cst_34 = arith.constant 1.000000e+00 : f32
    %182 = vector.broadcast %cst_34 : f32 to vector<4x128xf32>
    %183 = arith.addf %182, %181 : vector<4x128xf32>
    %184 = arith.divf %182, %183 : vector<4x128xf32>
    %185 = vector.extract_strided_slice %178 {offsets = [0, 128], sizes = [4, 128], strides = [1, 1]} : vector<4x512xf32> to vector<4x128xf32>
    %186 = arith.negf %185 : vector<4x128xf32>
    %187 = math.exp %186 : vector<4x128xf32>
    %cst_35 = arith.constant 1.000000e+00 : f32
    %188 = vector.broadcast %cst_35 : f32 to vector<4x128xf32>
    %189 = arith.addf %188, %187 : vector<4x128xf32>
    %190 = arith.divf %188, %189 : vector<4x128xf32>
    %191 = vector.extract_strided_slice %178 {offsets = [0, 256], sizes = [4, 128], strides = [1, 1]} : vector<4x512xf32> to vector<4x128xf32>
    %192 = math.tanh %191 : vector<4x128xf32>
    %193 = vector.extract_strided_slice %178 {offsets = [0, 384], sizes = [4, 128], strides = [1, 1]} : vector<4x512xf32> to vector<4x128xf32>
    %194 = arith.negf %193 : vector<4x128xf32>
    %195 = math.exp %194 : vector<4x128xf32>
    %cst_36 = arith.constant 1.000000e+00 : f32
    %196 = vector.broadcast %cst_36 : f32 to vector<4x128xf32>
    %197 = arith.addf %196, %195 : vector<4x128xf32>
    %198 = arith.divf %196, %197 : vector<4x128xf32>
    %199 = arith.mulf %190, %151 : vector<4x128xf32>
    %200 = arith.mulf %184, %192 : vector<4x128xf32>
    %201 = arith.addf %199, %200 : vector<4x128xf32>
    %202 = math.tanh %201 : vector<4x128xf32>
    %203 = arith.mulf %198, %202 : vector<4x128xf32>
    %c0_37 = arith.constant 0 : index
    %c4 = arith.constant 4 : index
    %c0_38 = arith.constant 0 : index
    %204 = vector.load %arg0[%c0_37, %c4, %c0_38] : memref<4x8x3xf32, #tpu.memory_space<vmem>>, vector<4x1x3xf32>
    %205 = vector.shape_cast %204 : vector<4x1x3xf32> to vector<4x3xf32>
    %206 = vector.extract_strided_slice %205 {offsets = [0, 0], sizes = [4, 1], strides = [1, 1]} : vector<4x3xf32> to vector<4x1xf32>
    %207 = vector.extract_strided_slice %0 {offsets = [0, 0], sizes = [1, 512], strides = [1, 1]} : vector<3x512xf32> to vector<1x512xf32>
    %208 = vector.broadcast %206 : vector<4x1xf32> to vector<4x512xf32>
    %209 = vector.broadcast %207 : vector<1x512xf32> to vector<4x512xf32>
    %210 = arith.mulf %208, %209 : vector<4x512xf32>
    %211 = vector.broadcast %1 : vector<1x512xf32> to vector<4x512xf32>
    %212 = arith.addf %211, %210 : vector<4x512xf32>
    %213 = vector.extract_strided_slice %205 {offsets = [0, 1], sizes = [4, 1], strides = [1, 1]} : vector<4x3xf32> to vector<4x1xf32>
    %214 = vector.extract_strided_slice %0 {offsets = [1, 0], sizes = [1, 512], strides = [1, 1]} : vector<3x512xf32> to vector<1x512xf32>
    %215 = vector.broadcast %213 : vector<4x1xf32> to vector<4x512xf32>
    %216 = vector.broadcast %214 : vector<1x512xf32> to vector<4x512xf32>
    %217 = arith.mulf %215, %216 : vector<4x512xf32>
    %218 = arith.addf %212, %217 : vector<4x512xf32>
    %219 = vector.extract_strided_slice %205 {offsets = [0, 2], sizes = [4, 1], strides = [1, 1]} : vector<4x3xf32> to vector<4x1xf32>
    %220 = vector.extract_strided_slice %0 {offsets = [2, 0], sizes = [1, 512], strides = [1, 1]} : vector<3x512xf32> to vector<1x512xf32>
    %221 = vector.broadcast %219 : vector<4x1xf32> to vector<4x512xf32>
    %222 = vector.broadcast %220 : vector<1x512xf32> to vector<4x512xf32>
    %223 = arith.mulf %221, %222 : vector<4x512xf32>
    %224 = arith.addf %218, %223 : vector<4x512xf32>
    %225 = arith.truncf %203 : vector<4x128xf32> to vector<4x128xbf16>
    %c0_39 = arith.constant 0 : index
    %c0_40 = arith.constant 0 : index
    %226 = vector.load %arg3[%c0_39, %c0_40] : memref<128x512xbf16, #tpu.memory_space<vmem>>, vector<128x512xbf16>
    %cst_41 = arith.constant dense<0.000000e+00> : vector<4x512xf32>
    %227 = tpu.matmul %225, %226, %cst_41 {dimension_numbers = #tpu.dot_dimension_numbers<[1], [0], [0], [1], [0, 0, 1, 1], [], []>} : vector<4x128xbf16>, vector<128x512xbf16>, vector<4x512xf32> -> vector<4x512xf32>
    %228 = arith.addf %224, %227 : vector<4x512xf32>
    %229 = vector.extract_strided_slice %228 {offsets = [0, 0], sizes = [4, 128], strides = [1, 1]} : vector<4x512xf32> to vector<4x128xf32>
    %230 = arith.negf %229 : vector<4x128xf32>
    %231 = math.exp %230 : vector<4x128xf32>
    %cst_42 = arith.constant 1.000000e+00 : f32
    %232 = vector.broadcast %cst_42 : f32 to vector<4x128xf32>
    %233 = arith.addf %232, %231 : vector<4x128xf32>
    %234 = arith.divf %232, %233 : vector<4x128xf32>
    %235 = vector.extract_strided_slice %228 {offsets = [0, 128], sizes = [4, 128], strides = [1, 1]} : vector<4x512xf32> to vector<4x128xf32>
    %236 = arith.negf %235 : vector<4x128xf32>
    %237 = math.exp %236 : vector<4x128xf32>
    %cst_43 = arith.constant 1.000000e+00 : f32
    %238 = vector.broadcast %cst_43 : f32 to vector<4x128xf32>
    %239 = arith.addf %238, %237 : vector<4x128xf32>
    %240 = arith.divf %238, %239 : vector<4x128xf32>
    %241 = vector.extract_strided_slice %228 {offsets = [0, 256], sizes = [4, 128], strides = [1, 1]} : vector<4x512xf32> to vector<4x128xf32>
    %242 = math.tanh %241 : vector<4x128xf32>
    %243 = vector.extract_strided_slice %228 {offsets = [0, 384], sizes = [4, 128], strides = [1, 1]} : vector<4x512xf32> to vector<4x128xf32>
    %244 = arith.negf %243 : vector<4x128xf32>
    %245 = math.exp %244 : vector<4x128xf32>
    %cst_44 = arith.constant 1.000000e+00 : f32
    %246 = vector.broadcast %cst_44 : f32 to vector<4x128xf32>
    %247 = arith.addf %246, %245 : vector<4x128xf32>
    %248 = arith.divf %246, %247 : vector<4x128xf32>
    %249 = arith.mulf %240, %201 : vector<4x128xf32>
    %250 = arith.mulf %234, %242 : vector<4x128xf32>
    %251 = arith.addf %249, %250 : vector<4x128xf32>
    %252 = math.tanh %251 : vector<4x128xf32>
    %253 = arith.mulf %248, %252 : vector<4x128xf32>
    %c0_45 = arith.constant 0 : index
    %c5 = arith.constant 5 : index
    %c0_46 = arith.constant 0 : index
    %254 = vector.load %arg0[%c0_45, %c5, %c0_46] : memref<4x8x3xf32, #tpu.memory_space<vmem>>, vector<4x1x3xf32>
    %255 = vector.shape_cast %254 : vector<4x1x3xf32> to vector<4x3xf32>
    %256 = vector.extract_strided_slice %255 {offsets = [0, 0], sizes = [4, 1], strides = [1, 1]} : vector<4x3xf32> to vector<4x1xf32>
    %257 = vector.extract_strided_slice %0 {offsets = [0, 0], sizes = [1, 512], strides = [1, 1]} : vector<3x512xf32> to vector<1x512xf32>
    %258 = vector.broadcast %256 : vector<4x1xf32> to vector<4x512xf32>
    %259 = vector.broadcast %257 : vector<1x512xf32> to vector<4x512xf32>
    %260 = arith.mulf %258, %259 : vector<4x512xf32>
    %261 = vector.broadcast %1 : vector<1x512xf32> to vector<4x512xf32>
    %262 = arith.addf %261, %260 : vector<4x512xf32>
    %263 = vector.extract_strided_slice %255 {offsets = [0, 1], sizes = [4, 1], strides = [1, 1]} : vector<4x3xf32> to vector<4x1xf32>
    %264 = vector.extract_strided_slice %0 {offsets = [1, 0], sizes = [1, 512], strides = [1, 1]} : vector<3x512xf32> to vector<1x512xf32>
    %265 = vector.broadcast %263 : vector<4x1xf32> to vector<4x512xf32>
    %266 = vector.broadcast %264 : vector<1x512xf32> to vector<4x512xf32>
    %267 = arith.mulf %265, %266 : vector<4x512xf32>
    %268 = arith.addf %262, %267 : vector<4x512xf32>
    %269 = vector.extract_strided_slice %255 {offsets = [0, 2], sizes = [4, 1], strides = [1, 1]} : vector<4x3xf32> to vector<4x1xf32>
    %270 = vector.extract_strided_slice %0 {offsets = [2, 0], sizes = [1, 512], strides = [1, 1]} : vector<3x512xf32> to vector<1x512xf32>
    %271 = vector.broadcast %269 : vector<4x1xf32> to vector<4x512xf32>
    %272 = vector.broadcast %270 : vector<1x512xf32> to vector<4x512xf32>
    %273 = arith.mulf %271, %272 : vector<4x512xf32>
    %274 = arith.addf %268, %273 : vector<4x512xf32>
    %275 = arith.truncf %253 : vector<4x128xf32> to vector<4x128xbf16>
    %c0_47 = arith.constant 0 : index
    %c0_48 = arith.constant 0 : index
    %276 = vector.load %arg3[%c0_47, %c0_48] : memref<128x512xbf16, #tpu.memory_space<vmem>>, vector<128x512xbf16>
    %cst_49 = arith.constant dense<0.000000e+00> : vector<4x512xf32>
    %277 = tpu.matmul %275, %276, %cst_49 {dimension_numbers = #tpu.dot_dimension_numbers<[1], [0], [0], [1], [0, 0, 1, 1], [], []>} : vector<4x128xbf16>, vector<128x512xbf16>, vector<4x512xf32> -> vector<4x512xf32>
    %278 = arith.addf %274, %277 : vector<4x512xf32>
    %279 = vector.extract_strided_slice %278 {offsets = [0, 0], sizes = [4, 128], strides = [1, 1]} : vector<4x512xf32> to vector<4x128xf32>
    %280 = arith.negf %279 : vector<4x128xf32>
    %281 = math.exp %280 : vector<4x128xf32>
    %cst_50 = arith.constant 1.000000e+00 : f32
    %282 = vector.broadcast %cst_50 : f32 to vector<4x128xf32>
    %283 = arith.addf %282, %281 : vector<4x128xf32>
    %284 = arith.divf %282, %283 : vector<4x128xf32>
    %285 = vector.extract_strided_slice %278 {offsets = [0, 128], sizes = [4, 128], strides = [1, 1]} : vector<4x512xf32> to vector<4x128xf32>
    %286 = arith.negf %285 : vector<4x128xf32>
    %287 = math.exp %286 : vector<4x128xf32>
    %cst_51 = arith.constant 1.000000e+00 : f32
    %288 = vector.broadcast %cst_51 : f32 to vector<4x128xf32>
    %289 = arith.addf %288, %287 : vector<4x128xf32>
    %290 = arith.divf %288, %289 : vector<4x128xf32>
    %291 = vector.extract_strided_slice %278 {offsets = [0, 256], sizes = [4, 128], strides = [1, 1]} : vector<4x512xf32> to vector<4x128xf32>
    %292 = math.tanh %291 : vector<4x128xf32>
    %293 = vector.extract_strided_slice %278 {offsets = [0, 384], sizes = [4, 128], strides = [1, 1]} : vector<4x512xf32> to vector<4x128xf32>
    %294 = arith.negf %293 : vector<4x128xf32>
    %295 = math.exp %294 : vector<4x128xf32>
    %cst_52 = arith.constant 1.000000e+00 : f32
    %296 = vector.broadcast %cst_52 : f32 to vector<4x128xf32>
    %297 = arith.addf %296, %295 : vector<4x128xf32>
    %298 = arith.divf %296, %297 : vector<4x128xf32>
    %299 = arith.mulf %290, %251 : vector<4x128xf32>
    %300 = arith.mulf %284, %292 : vector<4x128xf32>
    %301 = arith.addf %299, %300 : vector<4x128xf32>
    %302 = math.tanh %301 : vector<4x128xf32>
    %303 = arith.mulf %298, %302 : vector<4x128xf32>
    %c0_53 = arith.constant 0 : index
    %c6 = arith.constant 6 : index
    %c0_54 = arith.constant 0 : index
    %304 = vector.load %arg0[%c0_53, %c6, %c0_54] : memref<4x8x3xf32, #tpu.memory_space<vmem>>, vector<4x1x3xf32>
    %305 = vector.shape_cast %304 : vector<4x1x3xf32> to vector<4x3xf32>
    %306 = vector.extract_strided_slice %305 {offsets = [0, 0], sizes = [4, 1], strides = [1, 1]} : vector<4x3xf32> to vector<4x1xf32>
    %307 = vector.extract_strided_slice %0 {offsets = [0, 0], sizes = [1, 512], strides = [1, 1]} : vector<3x512xf32> to vector<1x512xf32>
    %308 = vector.broadcast %306 : vector<4x1xf32> to vector<4x512xf32>
    %309 = vector.broadcast %307 : vector<1x512xf32> to vector<4x512xf32>
    %310 = arith.mulf %308, %309 : vector<4x512xf32>
    %311 = vector.broadcast %1 : vector<1x512xf32> to vector<4x512xf32>
    %312 = arith.addf %311, %310 : vector<4x512xf32>
    %313 = vector.extract_strided_slice %305 {offsets = [0, 1], sizes = [4, 1], strides = [1, 1]} : vector<4x3xf32> to vector<4x1xf32>
    %314 = vector.extract_strided_slice %0 {offsets = [1, 0], sizes = [1, 512], strides = [1, 1]} : vector<3x512xf32> to vector<1x512xf32>
    %315 = vector.broadcast %313 : vector<4x1xf32> to vector<4x512xf32>
    %316 = vector.broadcast %314 : vector<1x512xf32> to vector<4x512xf32>
    %317 = arith.mulf %315, %316 : vector<4x512xf32>
    %318 = arith.addf %312, %317 : vector<4x512xf32>
    %319 = vector.extract_strided_slice %305 {offsets = [0, 2], sizes = [4, 1], strides = [1, 1]} : vector<4x3xf32> to vector<4x1xf32>
    %320 = vector.extract_strided_slice %0 {offsets = [2, 0], sizes = [1, 512], strides = [1, 1]} : vector<3x512xf32> to vector<1x512xf32>
    %321 = vector.broadcast %319 : vector<4x1xf32> to vector<4x512xf32>
    %322 = vector.broadcast %320 : vector<1x512xf32> to vector<4x512xf32>
    %323 = arith.mulf %321, %322 : vector<4x512xf32>
    %324 = arith.addf %318, %323 : vector<4x512xf32>
    %325 = arith.truncf %303 : vector<4x128xf32> to vector<4x128xbf16>
    %c0_55 = arith.constant 0 : index
    %c0_56 = arith.constant 0 : index
    %326 = vector.load %arg3[%c0_55, %c0_56] : memref<128x512xbf16, #tpu.memory_space<vmem>>, vector<128x512xbf16>
    %cst_57 = arith.constant dense<0.000000e+00> : vector<4x512xf32>
    %327 = tpu.matmul %325, %326, %cst_57 {dimension_numbers = #tpu.dot_dimension_numbers<[1], [0], [0], [1], [0, 0, 1, 1], [], []>} : vector<4x128xbf16>, vector<128x512xbf16>, vector<4x512xf32> -> vector<4x512xf32>
    %328 = arith.addf %324, %327 : vector<4x512xf32>
    %329 = vector.extract_strided_slice %328 {offsets = [0, 0], sizes = [4, 128], strides = [1, 1]} : vector<4x512xf32> to vector<4x128xf32>
    %330 = arith.negf %329 : vector<4x128xf32>
    %331 = math.exp %330 : vector<4x128xf32>
    %cst_58 = arith.constant 1.000000e+00 : f32
    %332 = vector.broadcast %cst_58 : f32 to vector<4x128xf32>
    %333 = arith.addf %332, %331 : vector<4x128xf32>
    %334 = arith.divf %332, %333 : vector<4x128xf32>
    %335 = vector.extract_strided_slice %328 {offsets = [0, 128], sizes = [4, 128], strides = [1, 1]} : vector<4x512xf32> to vector<4x128xf32>
    %336 = arith.negf %335 : vector<4x128xf32>
    %337 = math.exp %336 : vector<4x128xf32>
    %cst_59 = arith.constant 1.000000e+00 : f32
    %338 = vector.broadcast %cst_59 : f32 to vector<4x128xf32>
    %339 = arith.addf %338, %337 : vector<4x128xf32>
    %340 = arith.divf %338, %339 : vector<4x128xf32>
    %341 = vector.extract_strided_slice %328 {offsets = [0, 256], sizes = [4, 128], strides = [1, 1]} : vector<4x512xf32> to vector<4x128xf32>
    %342 = math.tanh %341 : vector<4x128xf32>
    %343 = vector.extract_strided_slice %328 {offsets = [0, 384], sizes = [4, 128], strides = [1, 1]} : vector<4x512xf32> to vector<4x128xf32>
    %344 = arith.negf %343 : vector<4x128xf32>
    %345 = math.exp %344 : vector<4x128xf32>
    %cst_60 = arith.constant 1.000000e+00 : f32
    %346 = vector.broadcast %cst_60 : f32 to vector<4x128xf32>
    %347 = arith.addf %346, %345 : vector<4x128xf32>
    %348 = arith.divf %346, %347 : vector<4x128xf32>
    %349 = arith.mulf %340, %301 : vector<4x128xf32>
    %350 = arith.mulf %334, %342 : vector<4x128xf32>
    %351 = arith.addf %349, %350 : vector<4x128xf32>
    %352 = math.tanh %351 : vector<4x128xf32>
    %353 = arith.mulf %348, %352 : vector<4x128xf32>
    %c0_61 = arith.constant 0 : index
    %c7 = arith.constant 7 : index
    %c0_62 = arith.constant 0 : index
    %354 = vector.load %arg0[%c0_61, %c7, %c0_62] : memref<4x8x3xf32, #tpu.memory_space<vmem>>, vector<4x1x3xf32>
    %355 = vector.shape_cast %354 : vector<4x1x3xf32> to vector<4x3xf32>
    %356 = vector.extract_strided_slice %355 {offsets = [0, 0], sizes = [4, 1], strides = [1, 1]} : vector<4x3xf32> to vector<4x1xf32>
    %357 = vector.extract_strided_slice %0 {offsets = [0, 0], sizes = [1, 512], strides = [1, 1]} : vector<3x512xf32> to vector<1x512xf32>
    %358 = vector.broadcast %356 : vector<4x1xf32> to vector<4x512xf32>
    %359 = vector.broadcast %357 : vector<1x512xf32> to vector<4x512xf32>
    %360 = arith.mulf %358, %359 : vector<4x512xf32>
    %361 = vector.broadcast %1 : vector<1x512xf32> to vector<4x512xf32>
    %362 = arith.addf %361, %360 : vector<4x512xf32>
    %363 = vector.extract_strided_slice %355 {offsets = [0, 1], sizes = [4, 1], strides = [1, 1]} : vector<4x3xf32> to vector<4x1xf32>
    %364 = vector.extract_strided_slice %0 {offsets = [1, 0], sizes = [1, 512], strides = [1, 1]} : vector<3x512xf32> to vector<1x512xf32>
    %365 = vector.broadcast %363 : vector<4x1xf32> to vector<4x512xf32>
    %366 = vector.broadcast %364 : vector<1x512xf32> to vector<4x512xf32>
    %367 = arith.mulf %365, %366 : vector<4x512xf32>
    %368 = arith.addf %362, %367 : vector<4x512xf32>
    %369 = vector.extract_strided_slice %355 {offsets = [0, 2], sizes = [4, 1], strides = [1, 1]} : vector<4x3xf32> to vector<4x1xf32>
    %370 = vector.extract_strided_slice %0 {offsets = [2, 0], sizes = [1, 512], strides = [1, 1]} : vector<3x512xf32> to vector<1x512xf32>
    %371 = vector.broadcast %369 : vector<4x1xf32> to vector<4x512xf32>
    %372 = vector.broadcast %370 : vector<1x512xf32> to vector<4x512xf32>
    %373 = arith.mulf %371, %372 : vector<4x512xf32>
    %374 = arith.addf %368, %373 : vector<4x512xf32>
    %375 = arith.truncf %353 : vector<4x128xf32> to vector<4x128xbf16>
    %c0_63 = arith.constant 0 : index
    %c0_64 = arith.constant 0 : index
    %376 = vector.load %arg3[%c0_63, %c0_64] : memref<128x512xbf16, #tpu.memory_space<vmem>>, vector<128x512xbf16>
    %cst_65 = arith.constant dense<0.000000e+00> : vector<4x512xf32>
    %377 = tpu.matmul %375, %376, %cst_65 {dimension_numbers = #tpu.dot_dimension_numbers<[1], [0], [0], [1], [0, 0, 1, 1], [], []>} : vector<4x128xbf16>, vector<128x512xbf16>, vector<4x512xf32> -> vector<4x512xf32>
    %378 = arith.addf %374, %377 : vector<4x512xf32>
    %379 = vector.extract_strided_slice %378 {offsets = [0, 0], sizes = [4, 128], strides = [1, 1]} : vector<4x512xf32> to vector<4x128xf32>
    %380 = arith.negf %379 : vector<4x128xf32>
    %381 = math.exp %380 : vector<4x128xf32>
    %cst_66 = arith.constant 1.000000e+00 : f32
    %382 = vector.broadcast %cst_66 : f32 to vector<4x128xf32>
    %383 = arith.addf %382, %381 : vector<4x128xf32>
    %384 = arith.divf %382, %383 : vector<4x128xf32>
    %385 = vector.extract_strided_slice %378 {offsets = [0, 128], sizes = [4, 128], strides = [1, 1]} : vector<4x512xf32> to vector<4x128xf32>
    %386 = arith.negf %385 : vector<4x128xf32>
    %387 = math.exp %386 : vector<4x128xf32>
    %cst_67 = arith.constant 1.000000e+00 : f32
    %388 = vector.broadcast %cst_67 : f32 to vector<4x128xf32>
    %389 = arith.addf %388, %387 : vector<4x128xf32>
    %390 = arith.divf %388, %389 : vector<4x128xf32>
    %391 = vector.extract_strided_slice %378 {offsets = [0, 256], sizes = [4, 128], strides = [1, 1]} : vector<4x512xf32> to vector<4x128xf32>
    %392 = math.tanh %391 : vector<4x128xf32>
    %393 = vector.extract_strided_slice %378 {offsets = [0, 384], sizes = [4, 128], strides = [1, 1]} : vector<4x512xf32> to vector<4x128xf32>
    %394 = arith.negf %393 : vector<4x128xf32>
    %395 = math.exp %394 : vector<4x128xf32>
    %cst_68 = arith.constant 1.000000e+00 : f32
    %396 = vector.broadcast %cst_68 : f32 to vector<4x128xf32>
    %397 = arith.addf %396, %395 : vector<4x128xf32>
    %398 = arith.divf %396, %397 : vector<4x128xf32>
    %399 = arith.mulf %390, %351 : vector<4x128xf32>
    %400 = arith.mulf %384, %392 : vector<4x128xf32>
    %401 = arith.addf %399, %400 : vector<4x128xf32>
    %402 = math.tanh %401 : vector<4x128xf32>
    %403 = arith.mulf %398, %402 : vector<4x128xf32>
    %c0_69 = arith.constant 0 : index
    %c0_70 = arith.constant 0 : index
    %404 = vector.load %arg4[%c0_69, %c0_70] : memref<128x512xf32, #tpu.memory_space<vmem>>, vector<128x512xf32>
    %cst_71 = arith.constant dense<0.000000e+00> : vector<4x512xf32>
    %405 = tpu.matmul %403, %404, %cst_71 {dimension_numbers = #tpu.dot_dimension_numbers<[1], [0], [0], [1], [0, 0, 1, 1], [], []>} : vector<4x128xf32>, vector<128x512xf32>, vector<4x512xf32> -> vector<4x512xf32>
    %c0_72 = arith.constant 0 : index
    %c0_73 = arith.constant 0 : index
    %406 = vector.load %arg5[%c0_72, %c0_73] : memref<1x512xf32, #tpu.memory_space<vmem>>, vector<1x512xf32>
    %407 = vector.broadcast %406 : vector<1x512xf32> to vector<4x512xf32>
    %408 = arith.addf %405, %407 : vector<4x512xf32>
    %c0_74 = arith.constant 0 : index
    %c0_75 = arith.constant 0 : index
    %409 = vector.load %arg6[%c0_74, %c0_75] : memref<3x512xf32, #tpu.memory_space<vmem>>, vector<3x512xf32>
    %cst_76 = arith.constant 0.000000e+00 : f32
    %410 = vector.broadcast %cst_76 : f32 to vector<4x128xf32>
    %cst_77 = arith.constant 0.000000e+00 : f32
    %411 = vector.broadcast %cst_77 : f32 to vector<4x128xf32>
    %412 = vector.extract_strided_slice %410 {offsets = [0, 0], sizes = [4, 1], strides = [1, 1]} : vector<4x128xf32> to vector<4x1xf32>
    %413 = vector.extract_strided_slice %409 {offsets = [0, 0], sizes = [1, 512], strides = [1, 1]} : vector<3x512xf32> to vector<1x512xf32>
    %414 = vector.broadcast %412 : vector<4x1xf32> to vector<4x512xf32>
    %415 = vector.broadcast %413 : vector<1x512xf32> to vector<4x512xf32>
    %416 = arith.mulf %414, %415 : vector<4x512xf32>
    %417 = arith.addf %408, %416 : vector<4x512xf32>
    %418 = vector.extract_strided_slice %410 {offsets = [0, 1], sizes = [4, 1], strides = [1, 1]} : vector<4x128xf32> to vector<4x1xf32>
    %419 = vector.extract_strided_slice %409 {offsets = [1, 0], sizes = [1, 512], strides = [1, 1]} : vector<3x512xf32> to vector<1x512xf32>
    %420 = vector.broadcast %418 : vector<4x1xf32> to vector<4x512xf32>
    %421 = vector.broadcast %419 : vector<1x512xf32> to vector<4x512xf32>
    %422 = arith.mulf %420, %421 : vector<4x512xf32>
    %423 = arith.addf %417, %422 : vector<4x512xf32>
    %424 = vector.extract_strided_slice %410 {offsets = [0, 2], sizes = [4, 1], strides = [1, 1]} : vector<4x128xf32> to vector<4x1xf32>
    %425 = vector.extract_strided_slice %409 {offsets = [2, 0], sizes = [1, 512], strides = [1, 1]} : vector<3x512xf32> to vector<1x512xf32>
    %426 = vector.broadcast %424 : vector<4x1xf32> to vector<4x512xf32>
    %427 = vector.broadcast %425 : vector<1x512xf32> to vector<4x512xf32>
    %428 = arith.mulf %426, %427 : vector<4x512xf32>
    %429 = arith.addf %423, %428 : vector<4x512xf32>
    %430 = vector.extract_strided_slice %429 {offsets = [0, 0], sizes = [4, 128], strides = [1, 1]} : vector<4x512xf32> to vector<4x128xf32>
    %431 = arith.negf %430 : vector<4x128xf32>
    %432 = math.exp %431 : vector<4x128xf32>
    %cst_78 = arith.constant 1.000000e+00 : f32
    %433 = vector.broadcast %cst_78 : f32 to vector<4x128xf32>
    %434 = arith.addf %433, %432 : vector<4x128xf32>
    %435 = arith.divf %433, %434 : vector<4x128xf32>
    %436 = vector.extract_strided_slice %429 {offsets = [0, 128], sizes = [4, 128], strides = [1, 1]} : vector<4x512xf32> to vector<4x128xf32>
    %437 = arith.negf %436 : vector<4x128xf32>
    %438 = math.exp %437 : vector<4x128xf32>
    %cst_79 = arith.constant 1.000000e+00 : f32
    %439 = vector.broadcast %cst_79 : f32 to vector<4x128xf32>
    %440 = arith.addf %439, %438 : vector<4x128xf32>
    %441 = arith.divf %439, %440 : vector<4x128xf32>
    %442 = vector.extract_strided_slice %429 {offsets = [0, 256], sizes = [4, 128], strides = [1, 1]} : vector<4x512xf32> to vector<4x128xf32>
    %443 = math.tanh %442 : vector<4x128xf32>
    %444 = vector.extract_strided_slice %429 {offsets = [0, 384], sizes = [4, 128], strides = [1, 1]} : vector<4x512xf32> to vector<4x128xf32>
    %445 = arith.negf %444 : vector<4x128xf32>
    %446 = math.exp %445 : vector<4x128xf32>
    %cst_80 = arith.constant 1.000000e+00 : f32
    %447 = vector.broadcast %cst_80 : f32 to vector<4x128xf32>
    %448 = arith.addf %447, %446 : vector<4x128xf32>
    %449 = arith.divf %447, %448 : vector<4x128xf32>
    %450 = arith.mulf %441, %411 : vector<4x128xf32>
    %451 = arith.mulf %435, %443 : vector<4x128xf32>
    %452 = arith.addf %450, %451 : vector<4x128xf32>
    %453 = math.tanh %452 : vector<4x128xf32>
    %454 = arith.mulf %449, %453 : vector<4x128xf32>
    %c0_81 = arith.constant 0 : index
    %c0_82 = arith.constant 0 : index
    %c0_83 = arith.constant 0 : index
    %455 = vector.load %arg7[%c0_81, %c0_82, %c0_83] : memref<4x8x128xf32, #tpu.memory_space<vmem>>, vector<4x1x128xf32>
    %456 = vector.shape_cast %455 : vector<4x1x128xf32> to vector<4x128xf32>
    %457 = vector.shape_cast %454 : vector<4x128xf32> to vector<4x1x128xf32>
    tpu.vector_store %arg7[%c0_81, %c0_82, %c0_83], %457 {strides = array<i32>} : memref<4x8x128xf32, #tpu.memory_space<vmem>>, vector<4x1x128xf32>,
    %458 = vector.extract_strided_slice %454 {offsets = [0, 0], sizes = [4, 1], strides = [1, 1]} : vector<4x128xf32> to vector<4x1xf32>
    %459 = vector.extract_strided_slice %409 {offsets = [0, 0], sizes = [1, 512], strides = [1, 1]} : vector<3x512xf32> to vector<1x512xf32>
    %460 = vector.broadcast %458 : vector<4x1xf32> to vector<4x512xf32>
    %461 = vector.broadcast %459 : vector<1x512xf32> to vector<4x512xf32>
    %462 = arith.mulf %460, %461 : vector<4x512xf32>
    %463 = arith.addf %408, %462 : vector<4x512xf32>
    %464 = vector.extract_strided_slice %454 {offsets = [0, 1], sizes = [4, 1], strides = [1, 1]} : vector<4x128xf32> to vector<4x1xf32>
    %465 = vector.extract_strided_slice %409 {offsets = [1, 0], sizes = [1, 512], strides = [1, 1]} : vector<3x512xf32> to vector<1x512xf32>
    %466 = vector.broadcast %464 : vector<4x1xf32> to vector<4x512xf32>
    %467 = vector.broadcast %465 : vector<1x512xf32> to vector<4x512xf32>
    %468 = arith.mulf %466, %467 : vector<4x512xf32>
    %469 = arith.addf %463, %468 : vector<4x512xf32>
    %470 = vector.extract_strided_slice %454 {offsets = [0, 2], sizes = [4, 1], strides = [1, 1]} : vector<4x128xf32> to vector<4x1xf32>
    %471 = vector.extract_strided_slice %409 {offsets = [2, 0], sizes = [1, 512], strides = [1, 1]} : vector<3x512xf32> to vector<1x512xf32>
    %472 = vector.broadcast %470 : vector<4x1xf32> to vector<4x512xf32>
    %473 = vector.broadcast %471 : vector<1x512xf32> to vector<4x512xf32>
    %474 = arith.mulf %472, %473 : vector<4x512xf32>
    %475 = arith.addf %469, %474 : vector<4x512xf32>
    %476 = vector.extract_strided_slice %475 {offsets = [0, 0], sizes = [4, 128], strides = [1, 1]} : vector<4x512xf32> to vector<4x128xf32>
    %477 = arith.negf %476 : vector<4x128xf32>
    %478 = math.exp %477 : vector<4x128xf32>
    %cst_84 = arith.constant 1.000000e+00 : f32
    %479 = vector.broadcast %cst_84 : f32 to vector<4x128xf32>
    %480 = arith.addf %479, %478 : vector<4x128xf32>
    %481 = arith.divf %479, %480 : vector<4x128xf32>
    %482 = vector.extract_strided_slice %475 {offsets = [0, 128], sizes = [4, 128], strides = [1, 1]} : vector<4x512xf32> to vector<4x128xf32>
    %483 = arith.negf %482 : vector<4x128xf32>
    %484 = math.exp %483 : vector<4x128xf32>
    %cst_85 = arith.constant 1.000000e+00 : f32
    %485 = vector.broadcast %cst_85 : f32 to vector<4x128xf32>
    %486 = arith.addf %485, %484 : vector<4x128xf32>
    %487 = arith.divf %485, %486 : vector<4x128xf32>
    %488 = vector.extract_strided_slice %475 {offsets = [0, 256], sizes = [4, 128], strides = [1, 1]} : vector<4x512xf32> to vector<4x128xf32>
    %489 = math.tanh %488 : vector<4x128xf32>
    %490 = vector.extract_strided_slice %475 {offsets = [0, 384], sizes = [4, 128], strides = [1, 1]} : vector<4x512xf32> to vector<4x128xf32>
    %491 = arith.negf %490 : vector<4x128xf32>
    %492 = math.exp %491 : vector<4x128xf32>
    %cst_86 = arith.constant 1.000000e+00 : f32
    %493 = vector.broadcast %cst_86 : f32 to vector<4x128xf32>
    %494 = arith.addf %493, %492 : vector<4x128xf32>
    %495 = arith.divf %493, %494 : vector<4x128xf32>
    %496 = arith.mulf %487, %452 : vector<4x128xf32>
    %497 = arith.mulf %481, %489 : vector<4x128xf32>
    %498 = arith.addf %496, %497 : vector<4x128xf32>
    %499 = math.tanh %498 : vector<4x128xf32>
    %500 = arith.mulf %495, %499 : vector<4x128xf32>
    %c0_87 = arith.constant 0 : index
    %c1_88 = arith.constant 1 : index
    %c0_89 = arith.constant 0 : index
    %501 = vector.load %arg7[%c0_87, %c1_88, %c0_89] : memref<4x8x128xf32, #tpu.memory_space<vmem>>, vector<4x1x128xf32>
    %502 = vector.shape_cast %501 : vector<4x1x128xf32> to vector<4x128xf32>
    %503 = vector.shape_cast %500 : vector<4x128xf32> to vector<4x1x128xf32>
    tpu.vector_store %arg7[%c0_87, %c1_88, %c0_89], %503 {strides = array<i32>} : memref<4x8x128xf32, #tpu.memory_space<vmem>>, vector<4x1x128xf32>,
    %504 = vector.extract_strided_slice %500 {offsets = [0, 0], sizes = [4, 1], strides = [1, 1]} : vector<4x128xf32> to vector<4x1xf32>
    %505 = vector.extract_strided_slice %409 {offsets = [0, 0], sizes = [1, 512], strides = [1, 1]} : vector<3x512xf32> to vector<1x512xf32>
    %506 = vector.broadcast %504 : vector<4x1xf32> to vector<4x512xf32>
    %507 = vector.broadcast %505 : vector<1x512xf32> to vector<4x512xf32>
    %508 = arith.mulf %506, %507 : vector<4x512xf32>
    %509 = arith.addf %408, %508 : vector<4x512xf32>
    %510 = vector.extract_strided_slice %500 {offsets = [0, 1], sizes = [4, 1], strides = [1, 1]} : vector<4x128xf32> to vector<4x1xf32>
    %511 = vector.extract_strided_slice %409 {offsets = [1, 0], sizes = [1, 512], strides = [1, 1]} : vector<3x512xf32> to vector<1x512xf32>
    %512 = vector.broadcast %510 : vector<4x1xf32> to vector<4x512xf32>
    %513 = vector.broadcast %511 : vector<1x512xf32> to vector<4x512xf32>
    %514 = arith.mulf %512, %513 : vector<4x512xf32>
    %515 = arith.addf %509, %514 : vector<4x512xf32>
    %516 = vector.extract_strided_slice %500 {offsets = [0, 2], sizes = [4, 1], strides = [1, 1]} : vector<4x128xf32> to vector<4x1xf32>
    %517 = vector.extract_strided_slice %409 {offsets = [2, 0], sizes = [1, 512], strides = [1, 1]} : vector<3x512xf32> to vector<1x512xf32>
    %518 = vector.broadcast %516 : vector<4x1xf32> to vector<4x512xf32>
    %519 = vector.broadcast %517 : vector<1x512xf32> to vector<4x512xf32>
    %520 = arith.mulf %518, %519 : vector<4x512xf32>
    %521 = arith.addf %515, %520 : vector<4x512xf32>
    %522 = vector.extract_strided_slice %521 {offsets = [0, 0], sizes = [4, 128], strides = [1, 1]} : vector<4x512xf32> to vector<4x128xf32>
    %523 = arith.negf %522 : vector<4x128xf32>
    %524 = math.exp %523 : vector<4x128xf32>
    %cst_90 = arith.constant 1.000000e+00 : f32
    %525 = vector.broadcast %cst_90 : f32 to vector<4x128xf32>
    %526 = arith.addf %525, %524 : vector<4x128xf32>
    %527 = arith.divf %525, %526 : vector<4x128xf32>
    %528 = vector.extract_strided_slice %521 {offsets = [0, 128], sizes = [4, 128], strides = [1, 1]} : vector<4x512xf32> to vector<4x128xf32>
    %529 = arith.negf %528 : vector<4x128xf32>
    %530 = math.exp %529 : vector<4x128xf32>
    %cst_91 = arith.constant 1.000000e+00 : f32
    %531 = vector.broadcast %cst_91 : f32 to vector<4x128xf32>
    %532 = arith.addf %531, %530 : vector<4x128xf32>
    %533 = arith.divf %531, %532 : vector<4x128xf32>
    %534 = vector.extract_strided_slice %521 {offsets = [0, 256], sizes = [4, 128], strides = [1, 1]} : vector<4x512xf32> to vector<4x128xf32>
    %535 = math.tanh %534 : vector<4x128xf32>
    %536 = vector.extract_strided_slice %521 {offsets = [0, 384], sizes = [4, 128], strides = [1, 1]} : vector<4x512xf32> to vector<4x128xf32>
    %537 = arith.negf %536 : vector<4x128xf32>
    %538 = math.exp %537 : vector<4x128xf32>
    %cst_92 = arith.constant 1.000000e+00 : f32
    %539 = vector.broadcast %cst_92 : f32 to vector<4x128xf32>
    %540 = arith.addf %539, %538 : vector<4x128xf32>
    %541 = arith.divf %539, %540 : vector<4x128xf32>
    %542 = arith.mulf %533, %498 : vector<4x128xf32>
    %543 = arith.mulf %527, %535 : vector<4x128xf32>
    %544 = arith.addf %542, %543 : vector<4x128xf32>
    %545 = math.tanh %544 : vector<4x128xf32>
    %546 = arith.mulf %541, %545 : vector<4x128xf32>
    %c0_93 = arith.constant 0 : index
    %c2_94 = arith.constant 2 : index
    %c0_95 = arith.constant 0 : index
    %547 = vector.load %arg7[%c0_93, %c2_94, %c0_95] : memref<4x8x128xf32, #tpu.memory_space<vmem>>, vector<4x1x128xf32>
    %548 = vector.shape_cast %547 : vector<4x1x128xf32> to vector<4x128xf32>
    %549 = vector.shape_cast %546 : vector<4x128xf32> to vector<4x1x128xf32>
    tpu.vector_store %arg7[%c0_93, %c2_94, %c0_95], %549 {strides = array<i32>} : memref<4x8x128xf32, #tpu.memory_space<vmem>>, vector<4x1x128xf32>,
    %550 = vector.extract_strided_slice %546 {offsets = [0, 0], sizes = [4, 1], strides = [1, 1]} : vector<4x128xf32> to vector<4x1xf32>
    %551 = vector.extract_strided_slice %409 {offsets = [0, 0], sizes = [1, 512], strides = [1, 1]} : vector<3x512xf32> to vector<1x512xf32>
    %552 = vector.broadcast %550 : vector<4x1xf32> to vector<4x512xf32>
    %553 = vector.broadcast %551 : vector<1x512xf32> to vector<4x512xf32>
    %554 = arith.mulf %552, %553 : vector<4x512xf32>
    %555 = arith.addf %408, %554 : vector<4x512xf32>
    %556 = vector.extract_strided_slice %546 {offsets = [0, 1], sizes = [4, 1], strides = [1, 1]} : vector<4x128xf32> to vector<4x1xf32>
    %557 = vector.extract_strided_slice %409 {offsets = [1, 0], sizes = [1, 512], strides = [1, 1]} : vector<3x512xf32> to vector<1x512xf32>
    %558 = vector.broadcast %556 : vector<4x1xf32> to vector<4x512xf32>
    %559 = vector.broadcast %557 : vector<1x512xf32> to vector<4x512xf32>
    %560 = arith.mulf %558, %559 : vector<4x512xf32>
    %561 = arith.addf %555, %560 : vector<4x512xf32>
    %562 = vector.extract_strided_slice %546 {offsets = [0, 2], sizes = [4, 1], strides = [1, 1]} : vector<4x128xf32> to vector<4x1xf32>
    %563 = vector.extract_strided_slice %409 {offsets = [2, 0], sizes = [1, 512], strides = [1, 1]} : vector<3x512xf32> to vector<1x512xf32>
    %564 = vector.broadcast %562 : vector<4x1xf32> to vector<4x512xf32>
    %565 = vector.broadcast %563 : vector<1x512xf32> to vector<4x512xf32>
    %566 = arith.mulf %564, %565 : vector<4x512xf32>
    %567 = arith.addf %561, %566 : vector<4x512xf32>
    %568 = vector.extract_strided_slice %567 {offsets = [0, 0], sizes = [4, 128], strides = [1, 1]} : vector<4x512xf32> to vector<4x128xf32>
    %569 = arith.negf %568 : vector<4x128xf32>
    %570 = math.exp %569 : vector<4x128xf32>
    %cst_96 = arith.constant 1.000000e+00 : f32
    %571 = vector.broadcast %cst_96 : f32 to vector<4x128xf32>
    %572 = arith.addf %571, %570 : vector<4x128xf32>
    %573 = arith.divf %571, %572 : vector<4x128xf32>
    %574 = vector.extract_strided_slice %567 {offsets = [0, 128], sizes = [4, 128], strides = [1, 1]} : vector<4x512xf32> to vector<4x128xf32>
    %575 = arith.negf %574 : vector<4x128xf32>
    %576 = math.exp %575 : vector<4x128xf32>
    %cst_97 = arith.constant 1.000000e+00 : f32
    %577 = vector.broadcast %cst_97 : f32 to vector<4x128xf32>
    %578 = arith.addf %577, %576 : vector<4x128xf32>
    %579 = arith.divf %577, %578 : vector<4x128xf32>
    %580 = vector.extract_strided_slice %567 {offsets = [0, 256], sizes = [4, 128], strides = [1, 1]} : vector<4x512xf32> to vector<4x128xf32>
    %581 = math.tanh %580 : vector<4x128xf32>
    %582 = vector.extract_strided_slice %567 {offsets = [0, 384], sizes = [4, 128], strides = [1, 1]} : vector<4x512xf32> to vector<4x128xf32>
    %583 = arith.negf %582 : vector<4x128xf32>
    %584 = math.exp %583 : vector<4x128xf32>
    %cst_98 = arith.constant 1.000000e+00 : f32
    %585 = vector.broadcast %cst_98 : f32 to vector<4x128xf32>
    %586 = arith.addf %585, %584 : vector<4x128xf32>
    %587 = arith.divf %585, %586 : vector<4x128xf32>
    %588 = arith.mulf %579, %544 : vector<4x128xf32>
    %589 = arith.mulf %573, %581 : vector<4x128xf32>
    %590 = arith.addf %588, %589 : vector<4x128xf32>
    %591 = math.tanh %590 : vector<4x128xf32>
    %592 = arith.mulf %587, %591 : vector<4x128xf32>
    %c0_99 = arith.constant 0 : index
    %c3_100 = arith.constant 3 : index
    %c0_101 = arith.constant 0 : index
    %593 = vector.load %arg7[%c0_99, %c3_100, %c0_101] : memref<4x8x128xf32, #tpu.memory_space<vmem>>, vector<4x1x128xf32>
    %594 = vector.shape_cast %593 : vector<4x1x128xf32> to vector<4x128xf32>
    %595 = vector.shape_cast %592 : vector<4x128xf32> to vector<4x1x128xf32>
    tpu.vector_store %arg7[%c0_99, %c3_100, %c0_101], %595 {strides = array<i32>} : memref<4x8x128xf32, #tpu.memory_space<vmem>>, vector<4x1x128xf32>,
    %596 = vector.extract_strided_slice %592 {offsets = [0, 0], sizes = [4, 1], strides = [1, 1]} : vector<4x128xf32> to vector<4x1xf32>
    %597 = vector.extract_strided_slice %409 {offsets = [0, 0], sizes = [1, 512], strides = [1, 1]} : vector<3x512xf32> to vector<1x512xf32>
    %598 = vector.broadcast %596 : vector<4x1xf32> to vector<4x512xf32>
    %599 = vector.broadcast %597 : vector<1x512xf32> to vector<4x512xf32>
    %600 = arith.mulf %598, %599 : vector<4x512xf32>
    %601 = arith.addf %408, %600 : vector<4x512xf32>
    %602 = vector.extract_strided_slice %592 {offsets = [0, 1], sizes = [4, 1], strides = [1, 1]} : vector<4x128xf32> to vector<4x1xf32>
    %603 = vector.extract_strided_slice %409 {offsets = [1, 0], sizes = [1, 512], strides = [1, 1]} : vector<3x512xf32> to vector<1x512xf32>
    %604 = vector.broadcast %602 : vector<4x1xf32> to vector<4x512xf32>
    %605 = vector.broadcast %603 : vector<1x512xf32> to vector<4x512xf32>
    %606 = arith.mulf %604, %605 : vector<4x512xf32>
    %607 = arith.addf %601, %606 : vector<4x512xf32>
    %608 = vector.extract_strided_slice %592 {offsets = [0, 2], sizes = [4, 1], strides = [1, 1]} : vector<4x128xf32> to vector<4x1xf32>
    %609 = vector.extract_strided_slice %409 {offsets = [2, 0], sizes = [1, 512], strides = [1, 1]} : vector<3x512xf32> to vector<1x512xf32>
    %610 = vector.broadcast %608 : vector<4x1xf32> to vector<4x512xf32>
    %611 = vector.broadcast %609 : vector<1x512xf32> to vector<4x512xf32>
    %612 = arith.mulf %610, %611 : vector<4x512xf32>
    %613 = arith.addf %607, %612 : vector<4x512xf32>
    %614 = vector.extract_strided_slice %613 {offsets = [0, 0], sizes = [4, 128], strides = [1, 1]} : vector<4x512xf32> to vector<4x128xf32>
    %615 = arith.negf %614 : vector<4x128xf32>
    %616 = math.exp %615 : vector<4x128xf32>
    %cst_102 = arith.constant 1.000000e+00 : f32
    %617 = vector.broadcast %cst_102 : f32 to vector<4x128xf32>
    %618 = arith.addf %617, %616 : vector<4x128xf32>
    %619 = arith.divf %617, %618 : vector<4x128xf32>
    %620 = vector.extract_strided_slice %613 {offsets = [0, 128], sizes = [4, 128], strides = [1, 1]} : vector<4x512xf32> to vector<4x128xf32>
    %621 = arith.negf %620 : vector<4x128xf32>
    %622 = math.exp %621 : vector<4x128xf32>
    %cst_103 = arith.constant 1.000000e+00 : f32
    %623 = vector.broadcast %cst_103 : f32 to vector<4x128xf32>
    %624 = arith.addf %623, %622 : vector<4x128xf32>
    %625 = arith.divf %623, %624 : vector<4x128xf32>
    %626 = vector.extract_strided_slice %613 {offsets = [0, 256], sizes = [4, 128], strides = [1, 1]} : vector<4x512xf32> to vector<4x128xf32>
    %627 = math.tanh %626 : vector<4x128xf32>
    %628 = vector.extract_strided_slice %613 {offsets = [0, 384], sizes = [4, 128], strides = [1, 1]} : vector<4x512xf32> to vector<4x128xf32>
    %629 = arith.negf %628 : vector<4x128xf32>
    %630 = math.exp %629 : vector<4x128xf32>
    %cst_104 = arith.constant 1.000000e+00 : f32
    %631 = vector.broadcast %cst_104 : f32 to vector<4x128xf32>
    %632 = arith.addf %631, %630 : vector<4x128xf32>
    %633 = arith.divf %631, %632 : vector<4x128xf32>
    %634 = arith.mulf %625, %590 : vector<4x128xf32>
    %635 = arith.mulf %619, %627 : vector<4x128xf32>
    %636 = arith.addf %634, %635 : vector<4x128xf32>
    %637 = math.tanh %636 : vector<4x128xf32>
    %638 = arith.mulf %633, %637 : vector<4x128xf32>
    %c0_105 = arith.constant 0 : index
    %c4_106 = arith.constant 4 : index
    %c0_107 = arith.constant 0 : index
    %639 = vector.load %arg7[%c0_105, %c4_106, %c0_107] : memref<4x8x128xf32, #tpu.memory_space<vmem>>, vector<4x1x128xf32>
    %640 = vector.shape_cast %639 : vector<4x1x128xf32> to vector<4x128xf32>
    %641 = vector.shape_cast %638 : vector<4x128xf32> to vector<4x1x128xf32>
    tpu.vector_store %arg7[%c0_105, %c4_106, %c0_107], %641 {strides = array<i32>} : memref<4x8x128xf32, #tpu.memory_space<vmem>>, vector<4x1x128xf32>,
    %642 = vector.extract_strided_slice %638 {offsets = [0, 0], sizes = [4, 1], strides = [1, 1]} : vector<4x128xf32> to vector<4x1xf32>
    %643 = vector.extract_strided_slice %409 {offsets = [0, 0], sizes = [1, 512], strides = [1, 1]} : vector<3x512xf32> to vector<1x512xf32>
    %644 = vector.broadcast %642 : vector<4x1xf32> to vector<4x512xf32>
    %645 = vector.broadcast %643 : vector<1x512xf32> to vector<4x512xf32>
    %646 = arith.mulf %644, %645 : vector<4x512xf32>
    %647 = arith.addf %408, %646 : vector<4x512xf32>
    %648 = vector.extract_strided_slice %638 {offsets = [0, 1], sizes = [4, 1], strides = [1, 1]} : vector<4x128xf32> to vector<4x1xf32>
    %649 = vector.extract_strided_slice %409 {offsets = [1, 0], sizes = [1, 512], strides = [1, 1]} : vector<3x512xf32> to vector<1x512xf32>
    %650 = vector.broadcast %648 : vector<4x1xf32> to vector<4x512xf32>
    %651 = vector.broadcast %649 : vector<1x512xf32> to vector<4x512xf32>
    %652 = arith.mulf %650, %651 : vector<4x512xf32>
    %653 = arith.addf %647, %652 : vector<4x512xf32>
    %654 = vector.extract_strided_slice %638 {offsets = [0, 2], sizes = [4, 1], strides = [1, 1]} : vector<4x128xf32> to vector<4x1xf32>
    %655 = vector.extract_strided_slice %409 {offsets = [2, 0], sizes = [1, 512], strides = [1, 1]} : vector<3x512xf32> to vector<1x512xf32>
    %656 = vector.broadcast %654 : vector<4x1xf32> to vector<4x512xf32>
    %657 = vector.broadcast %655 : vector<1x512xf32> to vector<4x512xf32>
    %658 = arith.mulf %656, %657 : vector<4x512xf32>
    %659 = arith.addf %653, %658 : vector<4x512xf32>
    %660 = vector.extract_strided_slice %659 {offsets = [0, 0], sizes = [4, 128], strides = [1, 1]} : vector<4x512xf32> to vector<4x128xf32>
    %661 = arith.negf %660 : vector<4x128xf32>
    %662 = math.exp %661 : vector<4x128xf32>
    %cst_108 = arith.constant 1.000000e+00 : f32
    %663 = vector.broadcast %cst_108 : f32 to vector<4x128xf32>
    %664 = arith.addf %663, %662 : vector<4x128xf32>
    %665 = arith.divf %663, %664 : vector<4x128xf32>
    %666 = vector.extract_strided_slice %659 {offsets = [0, 128], sizes = [4, 128], strides = [1, 1]} : vector<4x512xf32> to vector<4x128xf32>
    %667 = arith.negf %666 : vector<4x128xf32>
    %668 = math.exp %667 : vector<4x128xf32>
    %cst_109 = arith.constant 1.000000e+00 : f32
    %669 = vector.broadcast %cst_109 : f32 to vector<4x128xf32>
    %670 = arith.addf %669, %668 : vector<4x128xf32>
    %671 = arith.divf %669, %670 : vector<4x128xf32>
    %672 = vector.extract_strided_slice %659 {offsets = [0, 256], sizes = [4, 128], strides = [1, 1]} : vector<4x512xf32> to vector<4x128xf32>
    %673 = math.tanh %672 : vector<4x128xf32>
    %674 = vector.extract_strided_slice %659 {offsets = [0, 384], sizes = [4, 128], strides = [1, 1]} : vector<4x512xf32> to vector<4x128xf32>
    %675 = arith.negf %674 : vector<4x128xf32>
    %676 = math.exp %675 : vector<4x128xf32>
    %cst_110 = arith.constant 1.000000e+00 : f32
    %677 = vector.broadcast %cst_110 : f32 to vector<4x128xf32>
    %678 = arith.addf %677, %676 : vector<4x128xf32>
    %679 = arith.divf %677, %678 : vector<4x128xf32>
    %680 = arith.mulf %671, %636 : vector<4x128xf32>
    %681 = arith.mulf %665, %673 : vector<4x128xf32>
    %682 = arith.addf %680, %681 : vector<4x128xf32>
    %683 = math.tanh %682 : vector<4x128xf32>
    %684 = arith.mulf %679, %683 : vector<4x128xf32>
    %c0_111 = arith.constant 0 : index
    %c5_112 = arith.constant 5 : index
    %c0_113 = arith.constant 0 : index
    %685 = vector.load %arg7[%c0_111, %c5_112, %c0_113] : memref<4x8x128xf32, #tpu.memory_space<vmem>>, vector<4x1x128xf32>
    %686 = vector.shape_cast %685 : vector<4x1x128xf32> to vector<4x128xf32>
    %687 = vector.shape_cast %684 : vector<4x128xf32> to vector<4x1x128xf32>
    tpu.vector_store %arg7[%c0_111, %c5_112, %c0_113], %687 {strides = array<i32>} : memref<4x8x128xf32, #tpu.memory_space<vmem>>, vector<4x1x128xf32>,
    %688 = vector.extract_strided_slice %684 {offsets = [0, 0], sizes = [4, 1], strides = [1, 1]} : vector<4x128xf32> to vector<4x1xf32>
    %689 = vector.extract_strided_slice %409 {offsets = [0, 0], sizes = [1, 512], strides = [1, 1]} : vector<3x512xf32> to vector<1x512xf32>
    %690 = vector.broadcast %688 : vector<4x1xf32> to vector<4x512xf32>
    %691 = vector.broadcast %689 : vector<1x512xf32> to vector<4x512xf32>
    %692 = arith.mulf %690, %691 : vector<4x512xf32>
    %693 = arith.addf %408, %692 : vector<4x512xf32>
    %694 = vector.extract_strided_slice %684 {offsets = [0, 1], sizes = [4, 1], strides = [1, 1]} : vector<4x128xf32> to vector<4x1xf32>
    %695 = vector.extract_strided_slice %409 {offsets = [1, 0], sizes = [1, 512], strides = [1, 1]} : vector<3x512xf32> to vector<1x512xf32>
    %696 = vector.broadcast %694 : vector<4x1xf32> to vector<4x512xf32>
    %697 = vector.broadcast %695 : vector<1x512xf32> to vector<4x512xf32>
    %698 = arith.mulf %696, %697 : vector<4x512xf32>
    %699 = arith.addf %693, %698 : vector<4x512xf32>
    %700 = vector.extract_strided_slice %684 {offsets = [0, 2], sizes = [4, 1], strides = [1, 1]} : vector<4x128xf32> to vector<4x1xf32>
    %701 = vector.extract_strided_slice %409 {offsets = [2, 0], sizes = [1, 512], strides = [1, 1]} : vector<3x512xf32> to vector<1x512xf32>
    %702 = vector.broadcast %700 : vector<4x1xf32> to vector<4x512xf32>
    %703 = vector.broadcast %701 : vector<1x512xf32> to vector<4x512xf32>
    %704 = arith.mulf %702, %703 : vector<4x512xf32>
    %705 = arith.addf %699, %704 : vector<4x512xf32>
    %706 = vector.extract_strided_slice %705 {offsets = [0, 0], sizes = [4, 128], strides = [1, 1]} : vector<4x512xf32> to vector<4x128xf32>
    %707 = arith.negf %706 : vector<4x128xf32>
    %708 = math.exp %707 : vector<4x128xf32>
    %cst_114 = arith.constant 1.000000e+00 : f32
    %709 = vector.broadcast %cst_114 : f32 to vector<4x128xf32>
    %710 = arith.addf %709, %708 : vector<4x128xf32>
    %711 = arith.divf %709, %710 : vector<4x128xf32>
    %712 = vector.extract_strided_slice %705 {offsets = [0, 128], sizes = [4, 128], strides = [1, 1]} : vector<4x512xf32> to vector<4x128xf32>
    %713 = arith.negf %712 : vector<4x128xf32>
    %714 = math.exp %713 : vector<4x128xf32>
    %cst_115 = arith.constant 1.000000e+00 : f32
    %715 = vector.broadcast %cst_115 : f32 to vector<4x128xf32>
    %716 = arith.addf %715, %714 : vector<4x128xf32>
    %717 = arith.divf %715, %716 : vector<4x128xf32>
    %718 = vector.extract_strided_slice %705 {offsets = [0, 256], sizes = [4, 128], strides = [1, 1]} : vector<4x512xf32> to vector<4x128xf32>
    %719 = math.tanh %718 : vector<4x128xf32>
    %720 = vector.extract_strided_slice %705 {offsets = [0, 384], sizes = [4, 128], strides = [1, 1]} : vector<4x512xf32> to vector<4x128xf32>
    %721 = arith.negf %720 : vector<4x128xf32>
    %722 = math.exp %721 : vector<4x128xf32>
    %cst_116 = arith.constant 1.000000e+00 : f32
    %723 = vector.broadcast %cst_116 : f32 to vector<4x128xf32>
    %724 = arith.addf %723, %722 : vector<4x128xf32>
    %725 = arith.divf %723, %724 : vector<4x128xf32>
    %726 = arith.mulf %717, %682 : vector<4x128xf32>
    %727 = arith.mulf %711, %719 : vector<4x128xf32>
    %728 = arith.addf %726, %727 : vector<4x128xf32>
    %729 = math.tanh %728 : vector<4x128xf32>
    %730 = arith.mulf %725, %729 : vector<4x128xf32>
    %c0_117 = arith.constant 0 : index
    %c6_118 = arith.constant 6 : index
    %c0_119 = arith.constant 0 : index
    %731 = vector.load %arg7[%c0_117, %c6_118, %c0_119] : memref<4x8x128xf32, #tpu.memory_space<vmem>>, vector<4x1x128xf32>
    %732 = vector.shape_cast %731 : vector<4x1x128xf32> to vector<4x128xf32>
    %733 = vector.shape_cast %730 : vector<4x128xf32> to vector<4x1x128xf32>
    tpu.vector_store %arg7[%c0_117, %c6_118, %c0_119], %733 {strides = array<i32>} : memref<4x8x128xf32, #tpu.memory_space<vmem>>, vector<4x1x128xf32>,
    %734 = vector.extract_strided_slice %730 {offsets = [0, 0], sizes = [4, 1], strides = [1, 1]} : vector<4x128xf32> to vector<4x1xf32>
    %735 = vector.extract_strided_slice %409 {offsets = [0, 0], sizes = [1, 512], strides = [1, 1]} : vector<3x512xf32> to vector<1x512xf32>
    %736 = vector.broadcast %734 : vector<4x1xf32> to vector<4x512xf32>
    %737 = vector.broadcast %735 : vector<1x512xf32> to vector<4x512xf32>
    %738 = arith.mulf %736, %737 : vector<4x512xf32>
    %739 = arith.addf %408, %738 : vector<4x512xf32>
    %740 = vector.extract_strided_slice %730 {offsets = [0, 1], sizes = [4, 1], strides = [1, 1]} : vector<4x128xf32> to vector<4x1xf32>
    %741 = vector.extract_strided_slice %409 {offsets = [1, 0], sizes = [1, 512], strides = [1, 1]} : vector<3x512xf32> to vector<1x512xf32>
    %742 = vector.broadcast %740 : vector<4x1xf32> to vector<4x512xf32>
    %743 = vector.broadcast %741 : vector<1x512xf32> to vector<4x512xf32>
    %744 = arith.mulf %742, %743 : vector<4x512xf32>
    %745 = arith.addf %739, %744 : vector<4x512xf32>
    %746 = vector.extract_strided_slice %730 {offsets = [0, 2], sizes = [4, 1], strides = [1, 1]} : vector<4x128xf32> to vector<4x1xf32>
    %747 = vector.extract_strided_slice %409 {offsets = [2, 0], sizes = [1, 512], strides = [1, 1]} : vector<3x512xf32> to vector<1x512xf32>
    %748 = vector.broadcast %746 : vector<4x1xf32> to vector<4x512xf32>
    %749 = vector.broadcast %747 : vector<1x512xf32> to vector<4x512xf32>
    %750 = arith.mulf %748, %749 : vector<4x512xf32>
    %751 = arith.addf %745, %750 : vector<4x512xf32>
    %752 = vector.extract_strided_slice %751 {offsets = [0, 0], sizes = [4, 128], strides = [1, 1]} : vector<4x512xf32> to vector<4x128xf32>
    %753 = arith.negf %752 : vector<4x128xf32>
    %754 = math.exp %753 : vector<4x128xf32>
    %cst_120 = arith.constant 1.000000e+00 : f32
    %755 = vector.broadcast %cst_120 : f32 to vector<4x128xf32>
    %756 = arith.addf %755, %754 : vector<4x128xf32>
    %757 = arith.divf %755, %756 : vector<4x128xf32>
    %758 = vector.extract_strided_slice %751 {offsets = [0, 128], sizes = [4, 128], strides = [1, 1]} : vector<4x512xf32> to vector<4x128xf32>
    %759 = arith.negf %758 : vector<4x128xf32>
    %760 = math.exp %759 : vector<4x128xf32>
    %cst_121 = arith.constant 1.000000e+00 : f32
    %761 = vector.broadcast %cst_121 : f32 to vector<4x128xf32>
    %762 = arith.addf %761, %760 : vector<4x128xf32>
    %763 = arith.divf %761, %762 : vector<4x128xf32>
    %764 = vector.extract_strided_slice %751 {offsets = [0, 256], sizes = [4, 128], strides = [1, 1]} : vector<4x512xf32> to vector<4x128xf32>
    %765 = math.tanh %764 : vector<4x128xf32>
    %766 = vector.extract_strided_slice %751 {offsets = [0, 384], sizes = [4, 128], strides = [1, 1]} : vector<4x512xf32> to vector<4x128xf32>
    %767 = arith.negf %766 : vector<4x128xf32>
    %768 = math.exp %767 : vector<4x128xf32>
    %cst_122 = arith.constant 1.000000e+00 : f32
    %769 = vector.broadcast %cst_122 : f32 to vector<4x128xf32>
    %770 = arith.addf %769, %768 : vector<4x128xf32>
    %771 = arith.divf %769, %770 : vector<4x128xf32>
    %772 = arith.mulf %763, %728 : vector<4x128xf32>
    %773 = arith.mulf %757, %765 : vector<4x128xf32>
    %774 = arith.addf %772, %773 : vector<4x128xf32>
    %775 = math.tanh %774 : vector<4x128xf32>
    %776 = arith.mulf %771, %775 : vector<4x128xf32>
    %c0_123 = arith.constant 0 : index
    %c7_124 = arith.constant 7 : index
    %c0_125 = arith.constant 0 : index
    %777 = vector.load %arg7[%c0_123, %c7_124, %c0_125] : memref<4x8x128xf32, #tpu.memory_space<vmem>>, vector<4x1x128xf32>
    %778 = vector.shape_cast %777 : vector<4x1x128xf32> to vector<4x128xf32>
    %779 = vector.shape_cast %776 : vector<4x128xf32> to vector<4x1x128xf32>
    tpu.vector_store %arg7[%c0_123, %c7_124, %c0_125], %779 {strides = array<i32>} : memref<4x8x128xf32, #tpu.memory_space<vmem>>, vector<4x1x128xf32>,
    return
  }
}

</mosaic_0001>

<llo_original>
// kernel: lstm_autoencoder_forward.1
$region0: #{lstm_autoencoder_forward.1}
  #allocation0 [shape = 'u32[]', space=smem, size = 0x4, offset = 0x4, fixed_abs, tag = 'smem constant byte address 0x4 - core index']
  #allocation1 [shape = 'u32[144,128]{1,0:T(1,128)}', space=vmem, size = 0x12000, scoped, tag = 'internal scratch']
  %s0 = inlined_call_operand.vmem [shape: f32[4,8,3], index: 0, kind: input, shape index: {}]
  %s1 = inlined_call_operand.vmem [shape: f32[3,512], index: 1, kind: input, shape index: {}]
  %s2 = inlined_call_operand.vmem [shape: f32[1,512], index: 2, kind: input, shape index: {}]
  %s3 = inlined_call_operand.hbm [shape: bf16[128,512], index: 3, kind: input, shape index: {}]
  %s4 = inlined_call_operand.hbm [shape: f32[128,512], index: 4, kind: input, shape index: {}]
  %s5 = inlined_call_operand.vmem [shape: f32[1,512], index: 5, kind: input, shape index: {}]
  %s6 = inlined_call_operand.vmem [shape: f32[3,512], index: 6, kind: input, shape index: {}]
  %s7 = inlined_call_operand.vmem [shape: f32[4,8,128], index: 7, kind: output, shape index: {}]
  %s8 = sld [smem:[#allocation0]]
  $region46: #{lstm_autoencoder_forward.1} parent=0
    _
  %s10 = ssub.s32 1, %s8
  %s11 = scalar_select 0, %s10, %s8
  $region1: #{lstm_autoencoder_forward.1} parent=0
    #allocation2 [shape = 'u8[131072]{0}', space=vmem, size = 0x20000, scoped, tag = 'input window, operand 3, single buffered']
    #allocation3 [shape = 's32[1]{0}', space=sflag, size = 0x4, scoped, tag = 'scoped memory for lstm_autoencoder_forward.1']
    #allocation4 [shape = 'u8[262144]{0}', space=vmem, size = 0x40000, scoped, tag = 'input window, operand 4, single buffered']
    #allocation5 [shape = 's32[1]{0}', space=sflag, size = 0x4, scoped, tag = 'scoped memory for lstm_autoencoder_forward.1']
    %12 = vsyncpa [#allocation3], 0
    %13 = vsyncpa [#allocation5], 0
    // Predicated region
    $region2: #{lstm_autoencoder_forward.1} parent=1 // pred_check
      _
    $region3: #{lstm_autoencoder_forward.1} parent=1 // pred_check_branch
      %15 = sbr.rel (0) target = $region5
    $region4: #{lstm_autoencoder_forward.1} parent=1 // pred_region
      _
    $region5: #{lstm_autoencoder_forward.1} parent=1 // pred_fallthru
      _
    // Predicated region
    $region6: #{lstm_autoencoder_forward.1} parent=1 // pred_check
      _
    $region7: #{lstm_autoencoder_forward.1} parent=1 // pred_check_branch
      %17 = sbr.rel (0) target = $region9
    $region8: #{lstm_autoencoder_forward.1} parent=1 // pred_region
      _
    $region9: #{lstm_autoencoder_forward.1} parent=1 // pred_fallthru
      _
    // Predicated region
    $region10: #{lstm_autoencoder_forward.1} parent=1 // pred_check
      _
    $region11: #{lstm_autoencoder_forward.1} parent=1 // pred_check_branch
      %19 = sbr.rel (0) target = $region13
    $region12: #{lstm_autoencoder_forward.1} parent=1 // pred_region
      _
    $region13: #{lstm_autoencoder_forward.1} parent=1 // pred_fallthru
      _
    // Predicated region
    $region14: #{lstm_autoencoder_forward.1} parent=1 // pred_check
      _
    $region15: #{lstm_autoencoder_forward.1} parent=1 // pred_check_branch
      %21 = sbr.rel (0) target = $region17
    $region16: #{lstm_autoencoder_forward.1} parent=1 // pred_region
      %s23 = ssub.s32 4096, 4096
      %24 = vsyncadd [#allocation3], %s23
      %s25 = sshll.u32 [#allocation2], 4
      %s26 = int_to_ptr.vmem [resolvable:$true] %s25
      %31 = dma.hbm_to_vmem [thread:$0]  %s3, 4096, %s26, [#allocation3], 256, 256, 16
    $region17: #{lstm_autoencoder_forward.1} parent=1 // pred_fallthru
      _
    // Predicated region
    $region18: #{lstm_autoencoder_forward.1} parent=1 // pred_check
      _
    $region19: #{lstm_autoencoder_forward.1} parent=1 // pred_check_branch
      %33 = sbr.rel (0) target = $region21
    $region20: #{lstm_autoencoder_forward.1} parent=1 // pred_region
      %s35 = ssub.s32 8192, 8192
      %36 = vsyncadd [#allocation5], %s35
      %s37 = sshll.u32 [#allocation4], 4
      %s38 = int_to_ptr.vmem [resolvable:$true] %s37
      %43 = dma.hbm_to_vmem [thread:$0]  %s4, 8192, %s38, [#allocation5], 512, 512, 32
    $region21: #{lstm_autoencoder_forward.1} parent=1 // pred_fallthru
      _
    // Predicated region
    $region22: #{lstm_autoencoder_forward.1} parent=1 // pred_check
      _
    $region23: #{lstm_autoencoder_forward.1} parent=1 // pred_check_branch
      %45 = sbr.rel (0) target = $region25
    $region24: #{lstm_autoencoder_forward.1} parent=1 // pred_region
      _
    $region25: #{lstm_autoencoder_forward.1} parent=1 // pred_fallthru
      _
    // Predicated region
    $region26: #{lstm_autoencoder_forward.1} parent=1 // pred_check
      _
    $region27: #{lstm_autoencoder_forward.1} parent=1 // pred_check_branch
      %47 = sbr.rel (0) target = $region29
    $region28: #{lstm_autoencoder_forward.1} parent=1 // pred_region
      _
    $region29: #{lstm_autoencoder_forward.1} parent=1 // pred_fallthru
      _
    // Predicated region
    $region30: #{lstm_autoencoder_forward.1} parent=1 // pred_check
      _
    $region31: #{lstm_autoencoder_forward.1} parent=1 // pred_check_branch
      %49 = sbr.rel (0) target = $region33
    $region32: #{lstm_autoencoder_forward.1} parent=1 // pred_region
      %50 = dma.done [#allocation3], 4096
    $region33: #{lstm_autoencoder_forward.1} parent=1 // pred_fallthru
      _
    // Predicated region
    $region34: #{lstm_autoencoder_forward.1} parent=1 // pred_check
      _
    $region35: #{lstm_autoencoder_forward.1} parent=1 // pred_check_branch
      %52 = sbr.rel (0) target = $region37
    $region36: #{lstm_autoencoder_forward.1} parent=1 // pred_region
      %53 = dma.done [#allocation5], 8192
    $region37: #{lstm_autoencoder_forward.1} parent=1 // pred_fallthru
      _
    %v55 = vld [vmem:[%s1] sm:$0x77]
    %v56 = vld [vmem:[%s1 + $0x8] sm:$0x77]
    %v57 = vld [vmem:[%s2] sm:$0xf]
    %v58 = vld [vmem:[%s0] sm:$0x1]
    %v59 = vld [vmem:[%s0 + $0x8] sm:$0x1]
    %v60 = vld [vmem:[%s0 + $0x10] sm:$0x1]
    %v61 = vld [vmem:[%s0 + $0x18] sm:$0x1]
    %63 = vset.pattern.permute.xlu0 0
    %64 = vperm.xlu0 %63, %v58
    %v65 = vpop.permute.xlu0 %64
    %68 = vset.pattern.permute.xlu0 0
    %69 = vperm.xlu0 %68, %v59
    %v70 = vpop.permute.xlu0 %69
    %73 = vset.pattern.permute.xlu0 0
    %74 = vperm.xlu0 %73, %v60
    %v75 = vpop.permute.xlu0 %74
    %78 = vset.pattern.permute.xlu0 0
    %79 = vperm.xlu0 %78, %v61
    %v80 = vpop.permute.xlu0 %79
    %v84 = vlaneseq
    %v85 = vshrl.u32 %v84, 7
    %v86 = vsub.s32 0, %v85
    %v87 = vrot.slane %v55, %v86
    %v88 = vlaneseq
    %v89 = vshrl.u32 %v88, 7
    %v90 = vsub.s32 4, %v89
    %v91 = vrot.slane %v55, %v90
    %v92 = vlaneseq
    %v93 = vshrl.u32 %v92, 7
    %v94 = vsub.s32 0, %v93
    %v95 = vrot.slane %v56, %v94
    %v96 = vlaneseq
    %v97 = vshrl.u32 %v96, 7
    %v98 = vsub.s32 4, %v97
    %v99 = vrot.slane %v56, %v98
    %v104 = vlaneseq
    %v105 = vshrl.u32 %v104, 7
    %v106 = vsub.s32 0, %v105
    %v107 = vrot.slane %v87, %v106
    %v108 = vlaneseq
    %v109 = vshrl.u32 %v108, 7
    %v110 = vsub.s32 0, %v109
    %v111 = vrot.slane %v91, %v110
    %v112 = vlaneseq
    %v113 = vshrl.u32 %v112, 7
    %v114 = vsub.s32 0, %v113
    %v115 = vrot.slane %v95, %v114
    %v116 = vlaneseq
    %v117 = vshrl.u32 %v116, 7
    %v118 = vsub.s32 0, %v117
    %v119 = vrot.slane %v99, %v118
    %v120 = vmul.f32 %v65, %v107
    %v121 = vmul.f32 %v65, %v111
    %v122 = vmul.f32 %v65, %v115
    %v123 = vmul.f32 %v65, %v119
    %v124 = vmul.f32 %v70, %v107
    %v125 = vmul.f32 %v70, %v111
    %v126 = vmul.f32 %v70, %v115
    %v127 = vmul.f32 %v70, %v119
    %v128 = vmul.f32 %v75, %v107
    %v129 = vmul.f32 %v75, %v111
    %v130 = vmul.f32 %v75, %v115
    %v131 = vmul.f32 %v75, %v119
    %v132 = vmul.f32 %v80, %v107
    %v133 = vmul.f32 %v80, %v111
    %v134 = vmul.f32 %v80, %v115
    %v135 = vmul.f32 %v80, %v119
    %v137 = vlaneseq
    %v138 = vshrl.u32 %v137, 7
    %v139 = vsub.s32 0, %v138
    %v140 = vrot.slane %v57, %v139
    %v141 = vlaneseq
    %v142 = vshrl.u32 %v141, 7
    %v143 = vsub.s32 1, %v142
    %v144 = vrot.slane %v57, %v143
    %v145 = vlaneseq
    %v146 = vshrl.u32 %v145, 7
    %v147 = vsub.s32 2, %v146
    %v148 = vrot.slane %v57, %v147
    %v149 = vlaneseq
    %v150 = vshrl.u32 %v149, 7
    %v151 = vsub.s32 3, %v150
    %v152 = vrot.slane %v57, %v151
    %v173 = vrot.slane %v124, 7
    %vm174 = vcmask 1041409
    %v175 = vsel %vm174, %v173, %v120
    %v176 = vrot.slane %v128, 6
    %vm177 = vcmask 1042434
    %v178 = vsel %vm177, %v176, %v175
    %v179 = vrot.slane %v132, 5
    %vm180 = vcmask 1043459
    %v181 = vsel %vm180, %v179, %v178
    %v182 = vrot.slane %v125, 7
    %v183 = vsel %vm174, %v182, %v121
    %v184 = vrot.slane %v129, 6
    %v185 = vsel %vm177, %v184, %v183
    %v186 = vrot.slane %v133, 5
    %v187 = vsel %vm180, %v186, %v185
    %v188 = vrot.slane %v126, 7
    %v189 = vsel %vm174, %v188, %v122
    %v190 = vrot.slane %v130, 6
    %v191 = vsel %vm177, %v190, %v189
    %v192 = vrot.slane %v134, 5
    %v193 = vsel %vm180, %v192, %v191
    %v194 = vrot.slane %v127, 7
    %v195 = vsel %vm174, %v194, %v123
    %v196 = vrot.slane %v131, 6
    %v197 = vsel %vm177, %v196, %v195
    %v198 = vrot.slane %v135, 5
    %v199 = vsel %vm180, %v198, %v197
    %v204 = vadd.f32 %v140, %v181
    %v205 = vadd.f32 %v144, %v187
    %v206 = vadd.f32 %v148, %v193
    %v207 = vadd.f32 %v152, %v199
    %208 = vset.pattern.permute.xlu0 1
    %209 = vperm.xlu0 %208, %v58
    %v210 = vpop.permute.xlu0 %209
    %212 = vset.pattern.permute.xlu0 1
    %213 = vperm.xlu0 %212, %v59
    %v214 = vpop.permute.xlu0 %213
    %216 = vset.pattern.permute.xlu0 1
    %217 = vperm.xlu0 %216, %v60
    %v218 = vpop.permute.xlu0 %217
    %220 = vset.pattern.permute.xlu0 1
    %221 = vperm.xlu0 %220, %v61
    %v222 = vpop.permute.xlu0 %221
    %v224 = vlaneseq
    %v225 = vshrl.u32 %v224, 7
    %v226 = vsub.s32 1, %v225
    %v227 = vrot.slane %v55, %v226
    %v228 = vlaneseq
    %v229 = vshrl.u32 %v228, 7
    %v230 = vsub.s32 5, %v229
    %v231 = vrot.slane %v55, %v230
    %v232 = vlaneseq
    %v233 = vshrl.u32 %v232, 7
    %v234 = vsub.s32 1, %v233
    %v235 = vrot.slane %v56, %v234
    %v236 = vlaneseq
    %v237 = vshrl.u32 %v236, 7
    %v238 = vsub.s32 5, %v237
    %v239 = vrot.slane %v56, %v238
    %v244 = vlaneseq
    %v245 = vshrl.u32 %v244, 7
    %v246 = vsub.s32 1, %v245
    %v247 = vrot.slane %v227, %v246
    %v248 = vlaneseq
    %v249 = vshrl.u32 %v248, 7
    %v250 = vsub.s32 1, %v249
    %v251 = vrot.slane %v231, %v250
    %v252 = vlaneseq
    %v253 = vshrl.u32 %v252, 7
    %v254 = vsub.s32 1, %v253
    %v255 = vrot.slane %v235, %v254
    %v256 = vlaneseq
    %v257 = vshrl.u32 %v256, 7
    %v258 = vsub.s32 1, %v257
    %v259 = vrot.slane %v239, %v258
    %v260 = vmul.f32 %v210, %v247
    %v261 = vmul.f32 %v210, %v251
    %v262 = vmul.f32 %v210, %v255
    %v263 = vmul.f32 %v210, %v259
    %v264 = vmul.f32 %v214, %v247
    %v265 = vmul.f32 %v214, %v251
    %v266 = vmul.f32 %v214, %v255
    %v267 = vmul.f32 %v214, %v259
    %v268 = vmul.f32 %v218, %v247
    %v269 = vmul.f32 %v218, %v251
    %v270 = vmul.f32 %v218, %v255
    %v271 = vmul.f32 %v218, %v259
    %v272 = vmul.f32 %v222, %v247
    %v273 = vmul.f32 %v222, %v251
    %v274 = vmul.f32 %v222, %v255
    %v275 = vmul.f32 %v222, %v259
    %v292 = vrot.slane %v264, 7
    %v293 = vsel %vm174, %v292, %v260
    %v294 = vrot.slane %v268, 6
    %v295 = vsel %vm177, %v294, %v293
    %v296 = vrot.slane %v272, 5
    %v297 = vsel %vm180, %v296, %v295
    %v298 = vrot.slane %v265, 7
    %v299 = vsel %vm174, %v298, %v261
    %v300 = vrot.slane %v269, 6
    %v301 = vsel %vm177, %v300, %v299
    %v302 = vrot.slane %v273, 5
    %v303 = vsel %vm180, %v302, %v301
    %v304 = vrot.slane %v266, 7
    %v305 = vsel %vm174, %v304, %v262
    %v306 = vrot.slane %v270, 6
    %v307 = vsel %vm177, %v306, %v305
    %v308 = vrot.slane %v274, 5
    %v309 = vsel %vm180, %v308, %v307
    %v310 = vrot.slane %v267, 7
    %v311 = vsel %vm174, %v310, %v263
    %v312 = vrot.slane %v271, 6
    %v313 = vsel %vm177, %v312, %v311
    %v314 = vrot.slane %v275, 5
    %v315 = vsel %vm180, %v314, %v313
    %v320 = vadd.f32 %v204, %v297
    %v321 = vadd.f32 %v205, %v303
    %v322 = vadd.f32 %v206, %v309
    %v323 = vadd.f32 %v207, %v315
    %324 = vset.pattern.permute.xlu0 2
    %325 = vperm.xlu0 %324, %v58
    %v326 = vpop.permute.xlu0 %325
    %328 = vset.pattern.permute.xlu0 2
    %329 = vperm.xlu0 %328, %v59
    %v330 = vpop.permute.xlu0 %329
    %332 = vset.pattern.permute.xlu0 2
    %333 = vperm.xlu0 %332, %v60
    %v334 = vpop.permute.xlu0 %333
    %336 = vset.pattern.permute.xlu0 2
    %337 = vperm.xlu0 %336, %v61
    %v338 = vpop.permute.xlu0 %337
    %v340 = vlaneseq
    %v341 = vshrl.u32 %v340, 7
    %v342 = vsub.s32 2, %v341
    %v343 = vrot.slane %v55, %v342
    %v344 = vlaneseq
    %v345 = vshrl.u32 %v344, 7
    %v346 = vsub.s32 6, %v345
    %v347 = vrot.slane %v55, %v346
    %v348 = vlaneseq
    %v349 = vshrl.u32 %v348, 7
    %v350 = vsub.s32 2, %v349
    %v351 = vrot.slane %v56, %v350
    %v352 = vlaneseq
    %v353 = vshrl.u32 %v352, 7
    %v354 = vsub.s32 6, %v353
    %v355 = vrot.slane %v56, %v354
    %v360 = vlaneseq
    %v361 = vshrl.u32 %v360, 7
    %v362 = vsub.s32 2, %v361
    %v363 = vrot.slane %v343, %v362
    %v364 = vlaneseq
    %v365 = vshrl.u32 %v364, 7
    %v366 = vsub.s32 2, %v365
    %v367 = vrot.slane %v347, %v366
    %v368 = vlaneseq
    %v369 = vshrl.u32 %v368, 7
    %v370 = vsub.s32 2, %v369
    %v371 = vrot.slane %v351, %v370
    %v372 = vlaneseq
    %v373 = vshrl.u32 %v372, 7
    %v374 = vsub.s32 2, %v373
    %v375 = vrot.slane %v355, %v374
    %v376 = vmul.f32 %v326, %v363
    %v377 = vmul.f32 %v326, %v367
    %v378 = vmul.f32 %v326, %v371
    %v379 = vmul.f32 %v326, %v375
    %v380 = vmul.f32 %v330, %v363
    %v381 = vmul.f32 %v330, %v367
    %v382 = vmul.f32 %v330, %v371
    %v383 = vmul.f32 %v330, %v375
    %v384 = vmul.f32 %v334, %v363
    %v385 = vmul.f32 %v334, %v367
    %v386 = vmul.f32 %v334, %v371
    %v387 = vmul.f32 %v334, %v375
    %v388 = vmul.f32 %v338, %v363
    %v389 = vmul.f32 %v338, %v367
    %v390 = vmul.f32 %v338, %v371
    %v391 = vmul.f32 %v338, %v375
    %v408 = vrot.slane %v380, 7
    %v409 = vsel %vm174, %v408, %v376
    %v410 = vrot.slane %v384, 6
    %v411 = vsel %vm177, %v410, %v409
    %v412 = vrot.slane %v388, 5
    %v413 = vsel %vm180, %v412, %v411
    %v414 = vrot.slane %v381, 7
    %v415 = vsel %vm174, %v414, %v377
    %v416 = vrot.slane %v385, 6
    %v417 = vsel %vm177, %v416, %v415
    %v418 = vrot.slane %v389, 5
    %v419 = vsel %vm180, %v418, %v417
    %v420 = vrot.slane %v382, 7
    %v421 = vsel %vm174, %v420, %v378
    %v422 = vrot.slane %v386, 6
    %v423 = vsel %vm177, %v422, %v421
    %v424 = vrot.slane %v390, 5
    %v425 = vsel %vm180, %v424, %v423
    %v426 = vrot.slane %v383, 7
    %v427 = vsel %vm174, %v426, %v379
    %v428 = vrot.slane %v387, 6
    %v429 = vsel %vm177, %v428, %v427
    %v430 = vrot.slane %v391, 5
    %v431 = vsel %vm180, %v430, %v429
    %v436 = vadd.f32 %v320, %v413
    %v437 = vadd.f32 %v321, %v419
    %v438 = vadd.f32 %v322, %v425
    %v439 = vadd.f32 %v323, %v431
    %v440 = vld [vmem:[#allocation2] sm:$0xff]
    %v441 = vld [vmem:[#allocation2 + $0x8] sm:$0xff]
    %v442 = vld [vmem:[#allocation2 + $0x10] sm:$0xff]
    %v443 = vld [vmem:[#allocation2 + $0x18] sm:$0xff]
    %v444 = vld [vmem:[#allocation2 + $0x20] sm:$0xff]
    %v445 = vld [vmem:[#allocation2 + $0x28] sm:$0xff]
    %v446 = vld [vmem:[#allocation2 + $0x30] sm:$0xff]
    %v447 = vld [vmem:[#allocation2 + $0x38] sm:$0xff]
    %v448 = vld [vmem:[#allocation2 + $0x40] sm:$0xff]
    %v449 = vld [vmem:[#allocation2 + $0x48] sm:$0xff]
    %v450 = vld [vmem:[#allocation2 + $0x50] sm:$0xff]
    %v451 = vld [vmem:[#allocation2 + $0x58] sm:$0xff]
    %v452 = vld [vmem:[#allocation2 + $0x60] sm:$0xff]
    %v453 = vld [vmem:[#allocation2 + $0x68] sm:$0xff]
    %v454 = vld [vmem:[#allocation2 + $0x70] sm:$0xff]
    %v455 = vld [vmem:[#allocation2 + $0x78] sm:$0xff]
    %v456 = vld [vmem:[#allocation2 + $0x80] sm:$0xff]
    %v457 = vld [vmem:[#allocation2 + $0x88] sm:$0xff]
    %v458 = vld [vmem:[#allocation2 + $0x90] sm:$0xff]
    %v459 = vld [vmem:[#allocation2 + $0x98] sm:$0xff]
    %v460 = vld [vmem:[#allocation2 + $0xa0] sm:$0xff]
    %v461 = vld [vmem:[#allocation2 + $0xa8] sm:$0xff]
    %v462 = vld [vmem:[#allocation2 + $0xb0] sm:$0xff]
    %v463 = vld [vmem:[#allocation2 + $0xb8] sm:$0xff]
    %v464 = vld [vmem:[#allocation2 + $0xc0] sm:$0xff]
    %v465 = vld [vmem:[#allocation2 + $0xc8] sm:$0xff]
    %v466 = vld [vmem:[#allocation2 + $0xd0] sm:$0xff]
    %v467 = vld [vmem:[#allocation2 + $0xd8] sm:$0xff]
    %v468 = vld [vmem:[#allocation2 + $0xe0] sm:$0xff]
    %v469 = vld [vmem:[#allocation2 + $0xe8] sm:$0xff]
    %v470 = vld [vmem:[#allocation2 + $0xf0] sm:$0xff]
    %v471 = vld [vmem:[#allocation2 + $0xf8] sm:$0xff]
    %v504 = vunpack.c.l.b16 %v440
    %v505 = vunpack.c.h.b16 %v440
    %v506 = vunpack.c.l.b16 %v441
    %v507 = vunpack.c.h.b16 %v441
    %v508 = vunpack.c.l.b16 %v442
    %v509 = vunpack.c.h.b16 %v442
    %v510 = vunpack.c.l.b16 %v443
    %v511 = vunpack.c.h.b16 %v443
    %v512 = vunpack.c.l.b16 %v444
    %v513 = vunpack.c.h.b16 %v444
    %v514 = vunpack.c.l.b16 %v445
    %v515 = vunpack.c.h.b16 %v445
    %v516 = vunpack.c.l.b16 %v446
    %v517 = vunpack.c.h.b16 %v446
    %v518 = vunpack.c.l.b16 %v447
    %v519 = vunpack.c.h.b16 %v447
    %v520 = vunpack.c.l.b16 %v448
    %v521 = vunpack.c.h.b16 %v448
    %v522 = vunpack.c.l.b16 %v449
    %v523 = vunpack.c.h.b16 %v449
    %v524 = vunpack.c.l.b16 %v450
    %v525 = vunpack.c.h.b16 %v450
    %v526 = vunpack.c.l.b16 %v451
    %v527 = vunpack.c.h.b16 %v451
    %v528 = vunpack.c.l.b16 %v452
    %v529 = vunpack.c.h.b16 %v452
    %v530 = vunpack.c.l.b16 %v453
    %v531 = vunpack.c.h.b16 %v453
    %v532 = vunpack.c.l.b16 %v454
    %v533 = vunpack.c.h.b16 %v454
    %v534 = vunpack.c.l.b16 %v455
    %v535 = vunpack.c.h.b16 %v455
    %v536 = vunpack.c.l.b16 %v456
    %v537 = vunpack.c.h.b16 %v456
    %v538 = vunpack.c.l.b16 %v457
    %v539 = vunpack.c.h.b16 %v457
    %v540 = vunpack.c.l.b16 %v458
    %v541 = vunpack.c.h.b16 %v458
    %v542 = vunpack.c.l.b16 %v459
    %v543 = vunpack.c.h.b16 %v459
    %v544 = vunpack.c.l.b16 %v460
    %v545 = vunpack.c.h.b16 %v460
    %v546 = vunpack.c.l.b16 %v461
    %v547 = vunpack.c.h.b16 %v461
    %v548 = vunpack.c.l.b16 %v462
    %v549 = vunpack.c.h.b16 %v462
    %v550 = vunpack.c.l.b16 %v463
    %v551 = vunpack.c.h.b16 %v463
    %v552 = vunpack.c.l.b16 %v464
    %v553 = vunpack.c.h.b16 %v464
    %v554 = vunpack.c.l.b16 %v465
    %v555 = vunpack.c.h.b16 %v465
    %v556 = vunpack.c.l.b16 %v466
    %v557 = vunpack.c.h.b16 %v466
    %v558 = vunpack.c.l.b16 %v467
    %v559 = vunpack.c.h.b16 %v467
    %v560 = vunpack.c.l.b16 %v468
    %v561 = vunpack.c.h.b16 %v468
    %v562 = vunpack.c.l.b16 %v469
    %v563 = vunpack.c.h.b16 %v469
    %v564 = vunpack.c.l.b16 %v470
    %v565 = vunpack.c.h.b16 %v470
    %v566 = vunpack.c.l.b16 %v471
    %v567 = vunpack.c.h.b16 %v471
    %v568 = vpack.c.b16 %v508, %v504
    %v569 = vpack.c.b16 %v509, %v505
    %v570 = vpack.c.b16 %v510, %v506
    %v571 = vpack.c.b16 %v511, %v507
    %v572 = vpack.c.b16 %v516, %v512
    %v573 = vpack.c.b16 %v517, %v513
    %v574 = vpack.c.b16 %v518, %v514
    %v575 = vpack.c.b16 %v519, %v515
    %v576 = vpack.c.b16 %v524, %v520
    %v577 = vpack.c.b16 %v525, %v521
    %v578 = vpack.c.b16 %v526, %v522
    %v579 = vpack.c.b16 %v527, %v523
    %v580 = vpack.c.b16 %v532, %v528
    %v581 = vpack.c.b16 %v533, %v529
    %v582 = vpack.c.b16 %v534, %v530
    %v583 = vpack.c.b16 %v535, %v531
    %v584 = vpack.c.b16 %v540, %v536
    %v585 = vpack.c.b16 %v541, %v537
    %v586 = vpack.c.b16 %v542, %v538
    %v587 = vpack.c.b16 %v543, %v539
    %v588 = vpack.c.b16 %v548, %v544
    %v589 = vpack.c.b16 %v549, %v545
    %v590 = vpack.c.b16 %v550, %v546
    %v591 = vpack.c.b16 %v551, %v547
    %v592 = vpack.c.b16 %v556, %v552
    %v593 = vpack.c.b16 %v557, %v553
    %v594 = vpack.c.b16 %v558, %v554
    %v595 = vpack.c.b16 %v559, %v555
    %v596 = vpack.c.b16 %v564, %v560
    %v597 = vpack.c.b16 %v565, %v561
    %v598 = vpack.c.b16 %v566, %v562
    %v599 = vpack.c.b16 %v567, %v563
    %632 = vmatprep.subr.bf16.mxu0 %v569
    %633 = vmatpush1.bf16.msra.mxu0 %v568
    %634 = vmatprep.subr.bf16.mxu0 %v573
    %635 = vmatpush1.bf16.msra.mxu0 %v572
    %636 = vmatprep.subr.bf16.mxu0 %v577
    %637 = vmatpush1.bf16.msra.mxu0 %v576
    %638 = vmatprep.subr.bf16.mxu0 %v581
    %639 = vmatpush1.bf16.msra.mxu0 %v580
    %640 = vmatprep.subr.bf16.mxu0 %v585
    %641 = vmatpush1.bf16.msra.mxu0 %v584
    %642 = vmatprep.subr.bf16.mxu0 %v589
    %643 = vmatpush1.bf16.msra.mxu0 %v588
    %644 = vmatprep.subr.bf16.mxu0 %v593
    %645 = vmatpush1.bf16.msra.mxu0 %v592
    %646 = vmatprep.subr.bf16.mxu0 %v597
    %647 = vmatpush1.bf16.msra.mxu0 %v596
    %648 = vmatprep.subr.bf16.mxu0 0
    %649 = vmatpush1.bf16.msra.mxu0 0
    %650 = vmatprep.subr.bf16.mxu0 0
    %651 = vmatpush1.bf16.msra.mxu0 0
    %652 = vmatprep.subr.bf16.mxu0 0
    %653 = vmatpush1.bf16.msra.mxu0 0
    %654 = vmatprep.subr.bf16.mxu0 0
    %655 = vmatpush1.bf16.msra.mxu0 0
    %656 = vmatprep.subr.bf16.mxu0 0
    %657 = vmatpush1.bf16.msra.mxu0 0
    %658 = vmatprep.subr.bf16.mxu0 0
    %659 = vmatpush1.bf16.msra.mxu0 0
    %660 = vmatprep.subr.bf16.mxu0 0
    %661 = vmatpush1.bf16.msra.mxu0 0
    %662 = vmatprep.subr.bf16.mxu0 0
    %663 = vmatpush1.bf16.msra.mxu0 0
    %664 = vmatprep.mubr.bf16.mxu0 0
    %665 = vmatmul.mubr.bf16.gmra.mrb[0].mxu0 0
    %v666 = vpop.f32.mrb[0].mxu0
    %v667 = vadd.f32 0.0, %v666
    %v668 = vpop.f32.mrb[0].mxu0
    %v669 = vadd.f32 0.0, %v668
    %v670 = vpop.f32.mrb[0].mxu0
    %v671 = vpop.f32.mrb[0].mxu0
    %672 = vdwg.mxu0
    %673 = vmatprep.subr.bf16.mxu0 %v571
    %674 = vmatpush1.bf16.msra.mxu0 %v570
    %675 = vmatprep.subr.bf16.mxu0 %v575
    %676 = vmatpush1.bf16.msra.mxu0 %v574
    %677 = vmatprep.subr.bf16.mxu0 %v579
    %678 = vmatpush1.bf16.msra.mxu0 %v578
    %679 = vmatprep.subr.bf16.mxu0 %v583
    %680 = vmatpush1.bf16.msra.mxu0 %v582
    %681 = vmatprep.subr.bf16.mxu0 %v587
    %682 = vmatpush1.bf16.msra.mxu0 %v586
    %683 = vmatprep.subr.bf16.mxu0 %v591
    %684 = vmatpush1.bf16.msra.mxu0 %v590
    %685 = vmatprep.subr.bf16.mxu0 %v595
    %686 = vmatpush1.bf16.msra.mxu0 %v594
    %687 = vmatprep.subr.bf16.mxu0 %v599
    %688 = vmatpush1.bf16.msra.mxu0 %v598
    %689 = vmatprep.subr.bf16.mxu0 0
    %690 = vmatpush1.bf16.msra.mxu0 0
    %691 = vmatprep.subr.bf16.mxu0 0
    %692 = vmatpush1.bf16.msra.mxu0 0
    %693 = vmatprep.subr.bf16.mxu0 0
    %694 = vmatpush1.bf16.msra.mxu0 0
    %695 = vmatprep.subr.bf16.mxu0 0
    %696 = vmatpush1.bf16.msra.mxu0 0
    %697 = vmatprep.subr.bf16.mxu0 0
    %698 = vmatpush1.bf16.msra.mxu0 0
    %699 = vmatprep.subr.bf16.mxu0 0
    %700 = vmatpush1.bf16.msra.mxu0 0
    %701 = vmatprep.subr.bf16.mxu0 0
    %702 = vmatpush1.bf16.msra.mxu0 0
    %703 = vmatprep.subr.bf16.mxu0 0
    %704 = vmatpush1.bf16.msra.mxu0 0
    %705 = vmatprep.mubr.bf16.mxu0 0
    %706 = vmatmul.mubr.bf16.gmra.mrb[0].mxu0 0
    %v707 = vpop.f32.mrb[0].mxu0
    %v708 = vadd.f32 0.0, %v707
    %v709 = vpop.f32.mrb[0].mxu0
    %v710 = vadd.f32 0.0, %v709
    %v711 = vpop.f32.mrb[0].mxu0
    %v712 = vpop.f32.mrb[0].mxu0
    %713 = vdwg.mxu0
    %v714 = vadd.f32 %v436, %v667
    %v715 = vadd.f32 %v437, %v669
    %v716 = vadd.f32 %v438, %v708
    %v717 = vadd.f32 %v439, %v710
    %v718 = vxor.u32 %v714, 2147483648
    %v719 = vmul.f32 %v718, 1.442695
    %v720 = vpow.pop %v719
    %v721 = vadd.f32 %v720, 1.0
    %v722 = vrcp.pop %v721
    %v723 = vmul.f32 1.0, %v722
    %v724 = vxor.u32 %v715, 2147483648
    %v725 = vmul.f32 %v724, 1.442695
    %v726 = vpow.pop %v725
    %v727 = vadd.f32 %v726, 1.0
    %v728 = vrcp.pop %v727
    %v729 = vmul.f32 1.0, %v728
    %v730 = vtanh.pop %v716
    %v731 = vxor.u32 %v717, 2147483648
    %v732 = vmul.f32 %v731, 1.442695
    %v733 = vpow.pop %v732
    %v734 = vadd.f32 %v733, 1.0
    %v735 = vrcp.pop %v734
    %v736 = vmul.f32 1.0, %v735
    %v737 = vmul.f32 %v729, 0.0
    %v738 = vmul.f32 %v723, %v730
    %v739 = vadd.f32 %v737, %v738
    %v740 = vtanh.pop %v739
    %v741 = vmul.f32 %v736, %v740
    %v742 = vld [vmem:[%s0 + $0x1] sm:$0x1]
    %v743 = vld [vmem:[%s0 + $0x9] sm:$0x1]
    %v744 = vld [vmem:[%s0 + $0x11] sm:$0x1]
    %v745 = vld [vmem:[%s0 + $0x19] sm:$0x1]
    %747 = vset.pattern.permute.xlu0 0
    %748 = vperm.xlu0 %747, %v742
    %v749 = vpop.permute.xlu0 %748
    %752 = vset.pattern.permute.xlu0 0
    %753 = vperm.xlu0 %752, %v743
    %v754 = vpop.permute.xlu0 %753
    %757 = vset.pattern.permute.xlu0 0
    %758 = vperm.xlu0 %757, %v744
    %v759 = vpop.permute.xlu0 %758
    %762 = vset.pattern.permute.xlu0 0
    %763 = vperm.xlu0 %762, %v745
    %v764 = vpop.permute.xlu0 %763
    %v766 = vmul.f32 %v749, %v107
    %v767 = vmul.f32 %v749, %v111
    %v768 = vmul.f32 %v749, %v115
    %v769 = vmul.f32 %v749, %v119
    %v770 = vmul.f32 %v754, %v107
    %v771 = vmul.f32 %v754, %v111
    %v772 = vmul.f32 %v754, %v115
    %v773 = vmul.f32 %v754, %v119
    %v774 = vmul.f32 %v759, %v107
    %v775 = vmul.f32 %v759, %v111
    %v776 = vmul.f32 %v759, %v115
    %v777 = vmul.f32 %v759, %v119
    %v778 = vmul.f32 %v764, %v107
    %v779 = vmul.f32 %v764, %v111
    %v780 = vmul.f32 %v764, %v115
    %v781 = vmul.f32 %v764, %v119
    %v798 = vrot.slane %v770, 7
    %v799 = vsel %vm174, %v798, %v766
    %v800 = vrot.slane %v774, 6
    %v801 = vsel %vm177, %v800, %v799
    %v802 = vrot.slane %v778, 5
    %v803 = vsel %vm180, %v802, %v801
    %v804 = vrot.slane %v771, 7
    %v805 = vsel %vm174, %v804, %v767
    %v806 = vrot.slane %v775, 6
    %v807 = vsel %vm177, %v806, %v805
    %v808 = vrot.slane %v779, 5
    %v809 = vsel %vm180, %v808, %v807
    %v810 = vrot.slane %v772, 7
    %v811 = vsel %vm174, %v810, %v768
    %v812 = vrot.slane %v776, 6
    %v813 = vsel %vm177, %v812, %v811
    %v814 = vrot.slane %v780, 5
    %v815 = vsel %vm180, %v814, %v813
    %v816 = vrot.slane %v773, 7
    %v817 = vsel %vm174, %v816, %v769
    %v818 = vrot.slane %v777, 6
    %v819 = vsel %vm177, %v818, %v817
    %v820 = vrot.slane %v781, 5
    %v821 = vsel %vm180, %v820, %v819
    %v826 = vadd.f32 %v140, %v803
    %v827 = vadd.f32 %v144, %v809
    %v828 = vadd.f32 %v148, %v815
    %v829 = vadd.f32 %v152, %v821
    %830 = vset.pattern.permute.xlu0 1
    %831 = vperm.xlu0 %830, %v742
    %v832 = vpop.permute.xlu0 %831
    %834 = vset.pattern.permute.xlu0 1
    %835 = vperm.xlu0 %834, %v743
    %v836 = vpop.permute.xlu0 %835
    %838 = vset.pattern.permute.xlu0 1
    %839 = vperm.xlu0 %838, %v744
    %v840 = vpop.permute.xlu0 %839
    %842 = vset.pattern.permute.xlu0 1
    %843 = vperm.xlu0 %842, %v745
    %v844 = vpop.permute.xlu0 %843
    %v846 = vmul.f32 %v832, %v247
    %v847 = vmul.f32 %v832, %v251
    %v848 = vmul.f32 %v832, %v255
    %v849 = vmul.f32 %v832, %v259
    %v850 = vmul.f32 %v836, %v247
    %v851 = vmul.f32 %v836, %v251
    %v852 = vmul.f32 %v836, %v255
    %v853 = vmul.f32 %v836, %v259
    %v854 = vmul.f32 %v840, %v247
    %v855 = vmul.f32 %v840, %v251
    %v856 = vmul.f32 %v840, %v255
    %v857 = vmul.f32 %v840, %v259
    %v858 = vmul.f32 %v844, %v247
    %v859 = vmul.f32 %v844, %v251
    %v860 = vmul.f32 %v844, %v255
    %v861 = vmul.f32 %v844, %v259
    %v878 = vrot.slane %v850, 7
    %v879 = vsel %vm174, %v878, %v846
    %v880 = vrot.slane %v854, 6
    %v881 = vsel %vm177, %v880, %v879
    %v882 = vrot.slane %v858, 5
    %v883 = vsel %vm180, %v882, %v881
    %v884 = vrot.slane %v851, 7
    %v885 = vsel %vm174, %v884, %v847
    %v886 = vrot.slane %v855, 6
    %v887 = vsel %vm177, %v886, %v885
    %v888 = vrot.slane %v859, 5
    %v889 = vsel %vm180, %v888, %v887
    %v890 = vrot.slane %v852, 7
    %v891 = vsel %vm174, %v890, %v848
    %v892 = vrot.slane %v856, 6
    %v893 = vsel %vm177, %v892, %v891
    %v894 = vrot.slane %v860, 5
    %v895 = vsel %vm180, %v894, %v893
    %v896 = vrot.slane %v853, 7
    %v897 = vsel %vm174, %v896, %v849
    %v898 = vrot.slane %v857, 6
    %v899 = vsel %vm177, %v898, %v897
    %v900 = vrot.slane %v861, 5
    %v901 = vsel %vm180, %v900, %v899
    %v906 = vadd.f32 %v826, %v883
    %v907 = vadd.f32 %v827, %v889
    %v908 = vadd.f32 %v828, %v895
    %v909 = vadd.f32 %v829, %v901
    %910 = vset.pattern.permute.xlu0 2
    %911 = vperm.xlu0 %910, %v742
    %v912 = vpop.permute.xlu0 %911
    %914 = vset.pattern.permute.xlu0 2
    %915 = vperm.xlu0 %914, %v743
    %v916 = vpop.permute.xlu0 %915
    %918 = vset.pattern.permute.xlu0 2
    %919 = vperm.xlu0 %918, %v744
    %v920 = vpop.permute.xlu0 %919
    %922 = vset.pattern.permute.xlu0 2
    %923 = vperm.xlu0 %922, %v745
    %v924 = vpop.permute.xlu0 %923
    %v926 = vmul.f32 %v912, %v363
    %v927 = vmul.f32 %v912, %v367
    %v928 = vmul.f32 %v912, %v371
    %v929 = vmul.f32 %v912, %v375
    %v930 = vmul.f32 %v916, %v363
    %v931 = vmul.f32 %v916, %v367
    %v932 = vmul.f32 %v916, %v371
    %v933 = vmul.f32 %v916, %v375
    %v934 = vmul.f32 %v920, %v363
    %v935 = vmul.f32 %v920, %v367
    %v936 = vmul.f32 %v920, %v371
    %v937 = vmul.f32 %v920, %v375
    %v938 = vmul.f32 %v924, %v363
    %v939 = vmul.f32 %v924, %v367
    %v940 = vmul.f32 %v924, %v371
    %v941 = vmul.f32 %v924, %v375
    %v958 = vrot.slane %v930, 7
    %v959 = vsel %vm174, %v958, %v926
    %v960 = vrot.slane %v934, 6
    %v961 = vsel %vm177, %v960, %v959
    %v962 = vrot.slane %v938, 5
    %v963 = vsel %vm180, %v962, %v961
    %v964 = vrot.slane %v931, 7
    %v965 = vsel %vm174, %v964, %v927
    %v966 = vrot.slane %v935, 6
    %v967 = vsel %vm177, %v966, %v965
    %v968 = vrot.slane %v939, 5
    %v969 = vsel %vm180, %v968, %v967
    %v970 = vrot.slane %v932, 7
    %v971 = vsel %vm174, %v970, %v928
    %v972 = vrot.slane %v936, 6
    %v973 = vsel %vm177, %v972, %v971
    %v974 = vrot.slane %v940, 5
    %v975 = vsel %vm180, %v974, %v973
    %v976 = vrot.slane %v933, 7
    %v977 = vsel %vm174, %v976, %v929
    %v978 = vrot.slane %v937, 6
    %v979 = vsel %vm177, %v978, %v977
    %v980 = vrot.slane %v941, 5
    %v981 = vsel %vm180, %v980, %v979
    %v986 = vadd.f32 %v906, %v963
    %v987 = vadd.f32 %v907, %v969
    %v988 = vadd.f32 %v908, %v975
    %v989 = vadd.f32 %v909, %v981
    %v990 = vpack.c.bf16 %v741, %v741
    %991 = vmatprep.subr.bf16.mxu0 %v569
    %992 = vmatpush1.bf16.msra.mxu0 %v568
    %993 = vmatprep.subr.bf16.mxu0 %v573
    %994 = vmatpush1.bf16.msra.mxu0 %v572
    %995 = vmatprep.subr.bf16.mxu0 %v577
    %996 = vmatpush1.bf16.msra.mxu0 %v576
    %997 = vmatprep.subr.bf16.mxu0 %v581
    %998 = vmatpush1.bf16.msra.mxu0 %v580
    %999 = vmatprep.subr.bf16.mxu0 %v585
    %1000 = vmatpush1.bf16.msra.mxu0 %v584
    %1001 = vmatprep.subr.bf16.mxu0 %v589
    %1002 = vmatpush1.bf16.msra.mxu0 %v588
    %1003 = vmatprep.subr.bf16.mxu0 %v593
    %1004 = vmatpush1.bf16.msra.mxu0 %v592
    %1005 = vmatprep.subr.bf16.mxu0 %v597
    %1006 = vmatpush1.bf16.msra.mxu0 %v596
    %1007 = vmatprep.subr.bf16.mxu0 0
    %1008 = vmatpush1.bf16.msra.mxu0 0
    %1009 = vmatprep.subr.bf16.mxu0 0
    %1010 = vmatpush1.bf16.msra.mxu0 0
    %1011 = vmatprep.subr.bf16.mxu0 0
    %1012 = vmatpush1.bf16.msra.mxu0 0
    %1013 = vmatprep.subr.bf16.mxu0 0
    %1014 = vmatpush1.bf16.msra.mxu0 0
    %1015 = vmatprep.subr.bf16.mxu0 0
    %1016 = vmatpush1.bf16.msra.mxu0 0
    %1017 = vmatprep.subr.bf16.mxu0 0
    %1018 = vmatpush1.bf16.msra.mxu0 0
    %1019 = vmatprep.subr.bf16.mxu0 0
    %1020 = vmatpush1.bf16.msra.mxu0 0
    %1021 = vmatprep.subr.bf16.mxu0 0
    %1022 = vmatpush1.bf16.msra.mxu0 0
    %1023 = vmatprep.mubr.bf16.mxu0 0
    %1024 = vmatmul.mubr.bf16.gmra.mrb[0].mxu0 %v990
    %v1025 = vpop.f32.mrb[0].mxu0
    %v1026 = vadd.f32 0.0, %v1025
    %v1027 = vpop.f32.mrb[0].mxu0
    %v1028 = vadd.f32 0.0, %v1027
    %v1029 = vpop.f32.mrb[0].mxu0
    %v1030 = vpop.f32.mrb[0].mxu0
    %1031 = vdwg.mxu0
    %1032 = vmatprep.subr.bf16.mxu0 %v571
    %1033 = vmatpush1.bf16.msra.mxu0 %v570
    %1034 = vmatprep.subr.bf16.mxu0 %v575
    %1035 = vmatpush1.bf16.msra.mxu0 %v574
    %1036 = vmatprep.subr.bf16.mxu0 %v579
    %1037 = vmatpush1.bf16.msra.mxu0 %v578
    %1038 = vmatprep.subr.bf16.mxu0 %v583
    %1039 = vmatpush1.bf16.msra.mxu0 %v582
    %1040 = vmatprep.subr.bf16.mxu0 %v587
    %1041 = vmatpush1.bf16.msra.mxu0 %v586
    %1042 = vmatprep.subr.bf16.mxu0 %v591
    %1043 = vmatpush1.bf16.msra.mxu0 %v590
    %1044 = vmatprep.subr.bf16.mxu0 %v595
    %1045 = vmatpush1.bf16.msra.mxu0 %v594
    %1046 = vmatprep.subr.bf16.mxu0 %v599
    %1047 = vmatpush1.bf16.msra.mxu0 %v598
    %1048 = vmatprep.subr.bf16.mxu0 0
    %1049 = vmatpush1.bf16.msra.mxu0 0
    %1050 = vmatprep.subr.bf16.mxu0 0
    %1051 = vmatpush1.bf16.msra.mxu0 0
    %1052 = vmatprep.subr.bf16.mxu0 0
    %1053 = vmatpush1.bf16.msra.mxu0 0
    %1054 = vmatprep.subr.bf16.mxu0 0
    %1055 = vmatpush1.bf16.msra.mxu0 0
    %1056 = vmatprep.subr.bf16.mxu0 0
    %1057 = vmatpush1.bf16.msra.mxu0 0
    %1058 = vmatprep.subr.bf16.mxu0 0
    %1059 = vmatpush1.bf16.msra.mxu0 0
    %1060 = vmatprep.subr.bf16.mxu0 0
    %1061 = vmatpush1.bf16.msra.mxu0 0
    %1062 = vmatprep.subr.bf16.mxu0 0
    %1063 = vmatpush1.bf16.msra.mxu0 0
    %1064 = vmatprep.mubr.bf16.mxu0 0
    %1065 = vmatmul.mubr.bf16.gmra.mrb[0].mxu0 %v990
    %v1066 = vpop.f32.mrb[0].mxu0
    %v1067 = vadd.f32 0.0, %v1066
    %v1068 = vpop.f32.mrb[0].mxu0
    %v1069 = vadd.f32 0.0, %v1068
    %v1070 = vpop.f32.mrb[0].mxu0
    %v1071 = vpop.f32.mrb[0].mxu0
    %1072 = vdwg.mxu0
    %v1073 = vadd.f32 %v986, %v1026
    %v1074 = vadd.f32 %v987, %v1028
    %v1075 = vadd.f32 %v988, %v1067
    %v1076 = vadd.f32 %v989, %v1069
    %v1077 = vxor.u32 %v1073, 2147483648
    %v1078 = vmul.f32 %v1077, 1.442695
    %v1079 = vpow.pop %v1078
    %v1080 = vadd.f32 %v1079, 1.0
    %v1081 = vrcp.pop %v1080
    %v1082 = vmul.f32 1.0, %v1081
    %v1083 = vxor.u32 %v1074, 2147483648
    %v1084 = vmul.f32 %v1083, 1.442695
    %v1085 = vpow.pop %v1084
    %v1086 = vadd.f32 %v1085, 1.0
    %v1087 = vrcp.pop %v1086
    %v1088 = vmul.f32 1.0, %v1087
    %v1089 = vtanh.pop %v1075
    %v1090 = vxor.u32 %v1076, 2147483648
    %v1091 = vmul.f32 %v1090, 1.442695
    %v1092 = vpow.pop %v1091
    %v1093 = vadd.f32 %v1092, 1.0
    %v1094 = vrcp.pop %v1093
    %v1095 = vmul.f32 1.0, %v1094
    %v1096 = vmul.f32 %v1088, %v739
    %v1097 = vmul.f32 %v1082, %v1089
    %v1098 = vadd.f32 %v1096, %v1097
    %v1099 = vtanh.pop %v1098
    %v1100 = vmul.f32 %v1095, %v1099
    %v1101 = vld [vmem:[%s0 + $0x2] sm:$0x1]
    %v1102 = vld [vmem:[%s0 + $0xa] sm:$0x1]
    %v1103 = vld [vmem:[%s0 + $0x12] sm:$0x1]
    %v1104 = vld [vmem:[%s0 + $0x1a] sm:$0x1]
    %1106 = vset.pattern.permute.xlu0 0
    %1107 = vperm.xlu0 %1106, %v1101
    %v1108 = vpop.permute.xlu0 %1107
    %1111 = vset.pattern.permute.xlu0 0
    %1112 = vperm.xlu0 %1111, %v1102
    %v1113 = vpop.permute.xlu0 %1112
    %1116 = vset.pattern.permute.xlu0 0
    %1117 = vperm.xlu0 %1116, %v1103
    %v1118 = vpop.permute.xlu0 %1117
    %1121 = vset.pattern.permute.xlu0 0
    %1122 = vperm.xlu0 %1121, %v1104
    %v1123 = vpop.permute.xlu0 %1122
    %v1125 = vmul.f32 %v1108, %v107
    %v1126 = vmul.f32 %v1108, %v111
    %v1127 = vmul.f32 %v1108, %v115
    %v1128 = vmul.f32 %v1108, %v119
    %v1129 = vmul.f32 %v1113, %v107
    %v1130 = vmul.f32 %v1113, %v111
    %v1131 = vmul.f32 %v1113, %v115
    %v1132 = vmul.f32 %v1113, %v119
    %v1133 = vmul.f32 %v1118, %v107
    %v1134 = vmul.f32 %v1118, %v111
    %v1135 = vmul.f32 %v1118, %v115
    %v1136 = vmul.f32 %v1118, %v119
    %v1137 = vmul.f32 %v1123, %v107
    %v1138 = vmul.f32 %v1123, %v111
    %v1139 = vmul.f32 %v1123, %v115
    %v1140 = vmul.f32 %v1123, %v119
    %v1157 = vrot.slane %v1129, 7
    %v1158 = vsel %vm174, %v1157, %v1125
    %v1159 = vrot.slane %v1133, 6
    %v1160 = vsel %vm177, %v1159, %v1158
    %v1161 = vrot.slane %v1137, 5
    %v1162 = vsel %vm180, %v1161, %v1160
    %v1163 = vrot.slane %v1130, 7
    %v1164 = vsel %vm174, %v1163, %v1126
    %v1165 = vrot.slane %v1134, 6
    %v1166 = vsel %vm177, %v1165, %v1164
    %v1167 = vrot.slane %v1138, 5
    %v1168 = vsel %vm180, %v1167, %v1166
    %v1169 = vrot.slane %v1131, 7
    %v1170 = vsel %vm174, %v1169, %v1127
    %v1171 = vrot.slane %v1135, 6
    %v1172 = vsel %vm177, %v1171, %v1170
    %v1173 = vrot.slane %v1139, 5
    %v1174 = vsel %vm180, %v1173, %v1172
    %v1175 = vrot.slane %v1132, 7
    %v1176 = vsel %vm174, %v1175, %v1128
    %v1177 = vrot.slane %v1136, 6
    %v1178 = vsel %vm177, %v1177, %v1176
    %v1179 = vrot.slane %v1140, 5
    %v1180 = vsel %vm180, %v1179, %v1178
    %v1185 = vadd.f32 %v140, %v1162
    %v1186 = vadd.f32 %v144, %v1168
    %v1187 = vadd.f32 %v148, %v1174
    %v1188 = vadd.f32 %v152, %v1180
    %1189 = vset.pattern.permute.xlu0 1
    %1190 = vperm.xlu0 %1189, %v1101
    %v1191 = vpop.permute.xlu0 %1190
    %1193 = vset.pattern.permute.xlu0 1
    %1194 = vperm.xlu0 %1193, %v1102
    %v1195 = vpop.permute.xlu0 %1194
    %1197 = vset.pattern.permute.xlu0 1
    %1198 = vperm.xlu0 %1197, %v1103
    %v1199 = vpop.permute.xlu0 %1198
    %1201 = vset.pattern.permute.xlu0 1
    %1202 = vperm.xlu0 %1201, %v1104
    %v1203 = vpop.permute.xlu0 %1202
    %v1205 = vmul.f32 %v1191, %v247
    %v1206 = vmul.f32 %v1191, %v251
    %v1207 = vmul.f32 %v1191, %v255
    %v1208 = vmul.f32 %v1191, %v259
    %v1209 = vmul.f32 %v1195, %v247
    %v1210 = vmul.f32 %v1195, %v251
    %v1211 = vmul.f32 %v1195, %v255
    %v1212 = vmul.f32 %v1195, %v259
    %v1213 = vmul.f32 %v1199, %v247
    %v1214 = vmul.f32 %v1199, %v251
    %v1215 = vmul.f32 %v1199, %v255
    %v1216 = vmul.f32 %v1199, %v259
    %v1217 = vmul.f32 %v1203, %v247
    %v1218 = vmul.f32 %v1203, %v251
    %v1219 = vmul.f32 %v1203, %v255
    %v1220 = vmul.f32 %v1203, %v259
    %v1237 = vrot.slane %v1209, 7
    %v1238 = vsel %vm174, %v1237, %v1205
    %v1239 = vrot.slane %v1213, 6
    %v1240 = vsel %vm177, %v1239, %v1238
    %v1241 = vrot.slane %v1217, 5
    %v1242 = vsel %vm180, %v1241, %v1240
    %v1243 = vrot.slane %v1210, 7
    %v1244 = vsel %vm174, %v1243, %v1206
    %v1245 = vrot.slane %v1214, 6
    %v1246 = vsel %vm177, %v1245, %v1244
    %v1247 = vrot.slane %v1218, 5
    %v1248 = vsel %vm180, %v1247, %v1246
    %v1249 = vrot.slane %v1211, 7
    %v1250 = vsel %vm174, %v1249, %v1207
    %v1251 = vrot.slane %v1215, 6
    %v1252 = vsel %vm177, %v1251, %v1250
    %v1253 = vrot.slane %v1219, 5
    %v1254 = vsel %vm180, %v1253, %v1252
    %v1255 = vrot.slane %v1212, 7
    %v1256 = vsel %vm174, %v1255, %v1208
    %v1257 = vrot.slane %v1216, 6
    %v1258 = vsel %vm177, %v1257, %v1256
    %v1259 = vrot.slane %v1220, 5
    %v1260 = vsel %vm180, %v1259, %v1258
    %v1265 = vadd.f32 %v1185, %v1242
    %v1266 = vadd.f32 %v1186, %v1248
    %v1267 = vadd.f32 %v1187, %v1254
    %v1268 = vadd.f32 %v1188, %v1260
    %1269 = vset.pattern.permute.xlu0 2
    %1270 = vperm.xlu0 %1269, %v1101
    %v1271 = vpop.permute.xlu0 %1270
    %1273 = vset.pattern.permute.xlu0 2
    %1274 = vperm.xlu0 %1273, %v1102
    %v1275 = vpop.permute.xlu0 %1274
    %1277 = vset.pattern.permute.xlu0 2
    %1278 = vperm.xlu0 %1277, %v1103
    %v1279 = vpop.permute.xlu0 %1278
    %1281 = vset.pattern.permute.xlu0 2
    %1282 = vperm.xlu0 %1281, %v1104
    %v1283 = vpop.permute.xlu0 %1282
    %v1285 = vmul.f32 %v1271, %v363
    %v1286 = vmul.f32 %v1271, %v367
    %v1287 = vmul.f32 %v1271, %v371
    %v1288 = vmul.f32 %v1271, %v375
    %v1289 = vmul.f32 %v1275, %v363
    %v1290 = vmul.f32 %v1275, %v367
    %v1291 = vmul.f32 %v1275, %v371
    %v1292 = vmul.f32 %v1275, %v375
    %v1293 = vmul.f32 %v1279, %v363
    %v1294 = vmul.f32 %v1279, %v367
    %v1295 = vmul.f32 %v1279, %v371
    %v1296 = vmul.f32 %v1279, %v375
    %v1297 = vmul.f32 %v1283, %v363
    %v1298 = vmul.f32 %v1283, %v367
    %v1299 = vmul.f32 %v1283, %v371
    %v1300 = vmul.f32 %v1283, %v375
    %v1317 = vrot.slane %v1289, 7
    %v1318 = vsel %vm174, %v1317, %v1285
    %v1319 = vrot.slane %v1293, 6
    %v1320 = vsel %vm177, %v1319, %v1318
    %v1321 = vrot.slane %v1297, 5
    %v1322 = vsel %vm180, %v1321, %v1320
    %v1323 = vrot.slane %v1290, 7
    %v1324 = vsel %vm174, %v1323, %v1286
    %v1325 = vrot.slane %v1294, 6
    %v1326 = vsel %vm177, %v1325, %v1324
    %v1327 = vrot.slane %v1298, 5
    %v1328 = vsel %vm180, %v1327, %v1326
    %v1329 = vrot.slane %v1291, 7
    %v1330 = vsel %vm174, %v1329, %v1287
    %v1331 = vrot.slane %v1295, 6
    %v1332 = vsel %vm177, %v1331, %v1330
    %v1333 = vrot.slane %v1299, 5
    %v1334 = vsel %vm180, %v1333, %v1332
    %v1335 = vrot.slane %v1292, 7
    %v1336 = vsel %vm174, %v1335, %v1288
    %v1337 = vrot.slane %v1296, 6
    %v1338 = vsel %vm177, %v1337, %v1336
    %v1339 = vrot.slane %v1300, 5
    %v1340 = vsel %vm180, %v1339, %v1338
    %v1345 = vadd.f32 %v1265, %v1322
    %v1346 = vadd.f32 %v1266, %v1328
    %v1347 = vadd.f32 %v1267, %v1334
    %v1348 = vadd.f32 %v1268, %v1340
    %v1349 = vpack.c.bf16 %v1100, %v1100
    %1350 = vmatprep.subr.bf16.mxu0 %v569
    %1351 = vmatpush1.bf16.msra.mxu0 %v568
    %1352 = vmatprep.subr.bf16.mxu0 %v573
    %1353 = vmatpush1.bf16.msra.mxu0 %v572
    %1354 = vmatprep.subr.bf16.mxu0 %v577
    %1355 = vmatpush1.bf16.msra.mxu0 %v576
    %1356 = vmatprep.subr.bf16.mxu0 %v581
    %1357 = vmatpush1.bf16.msra.mxu0 %v580
    %1358 = vmatprep.subr.bf16.mxu0 %v585
    %1359 = vmatpush1.bf16.msra.mxu0 %v584
    %1360 = vmatprep.subr.bf16.mxu0 %v589
    %1361 = vmatpush1.bf16.msra.mxu0 %v588
    %1362 = vmatprep.subr.bf16.mxu0 %v593
    %1363 = vmatpush1.bf16.msra.mxu0 %v592
    %1364 = vmatprep.subr.bf16.mxu0 %v597
    %1365 = vmatpush1.bf16.msra.mxu0 %v596
    %1366 = vmatprep.subr.bf16.mxu0 0
    %1367 = vmatpush1.bf16.msra.mxu0 0
    %1368 = vmatprep.subr.bf16.mxu0 0
    %1369 = vmatpush1.bf16.msra.mxu0 0
    %1370 = vmatprep.subr.bf16.mxu0 0
    %1371 = vmatpush1.bf16.msra.mxu0 0
    %1372 = vmatprep.subr.bf16.mxu0 0
    %1373 = vmatpush1.bf16.msra.mxu0 0
    %1374 = vmatprep.subr.bf16.mxu0 0
    %1375 = vmatpush1.bf16.msra.mxu0 0
    %1376 = vmatprep.subr.bf16.mxu0 0
    %1377 = vmatpush1.bf16.msra.mxu0 0
    %1378 = vmatprep.subr.bf16.mxu0 0
    %1379 = vmatpush1.bf16.msra.mxu0 0
    %1380 = vmatprep.subr.bf16.mxu0 0
    %1381 = vmatpush1.bf16.msra.mxu0 0
    %1382 = vmatprep.mubr.bf16.mxu0 0
    %1383 = vmatmul.mubr.bf16.gmra.mrb[0].mxu0 %v1349
    %v1384 = vpop.f32.mrb[0].mxu0
    %v1385 = vadd.f32 0.0, %v1384
    %v1386 = vpop.f32.mrb[0].mxu0
    %v1387 = vadd.f32 0.0, %v1386
    %v1388 = vpop.f32.mrb[0].mxu0
    %v1389 = vpop.f32.mrb[0].mxu0
    %1390 = vdwg.mxu0
    %1391 = vmatprep.subr.bf16.mxu0 %v571
    %1392 = vmatpush1.bf16.msra.mxu0 %v570
    %1393 = vmatprep.subr.bf16.mxu0 %v575
    %1394 = vmatpush1.bf16.msra.mxu0 %v574
    %1395 = vmatprep.subr.bf16.mxu0 %v579
    %1396 = vmatpush1.bf16.msra.mxu0 %v578
    %1397 = vmatprep.subr.bf16.mxu0 %v583
    %1398 = vmatpush1.bf16.msra.mxu0 %v582
    %1399 = vmatprep.subr.bf16.mxu0 %v587
    %1400 = vmatpush1.bf16.msra.mxu0 %v586
    %1401 = vmatprep.subr.bf16.mxu0 %v591
    %1402 = vmatpush1.bf16.msra.mxu0 %v590
    %1403 = vmatprep.subr.bf16.mxu0 %v595
    %1404 = vmatpush1.bf16.msra.mxu0 %v594
    %1405 = vmatprep.subr.bf16.mxu0 %v599
    %1406 = vmatpush1.bf16.msra.mxu0 %v598
    %1407 = vmatprep.subr.bf16.mxu0 0
    %1408 = vmatpush1.bf16.msra.mxu0 0
    %1409 = vmatprep.subr.bf16.mxu0 0
    %1410 = vmatpush1.bf16.msra.mxu0 0
    %1411 = vmatprep.subr.bf16.mxu0 0
    %1412 = vmatpush1.bf16.msra.mxu0 0
    %1413 = vmatprep.subr.bf16.mxu0 0
    %1414 = vmatpush1.bf16.msra.mxu0 0
    %1415 = vmatprep.subr.bf16.mxu0 0
    %1416 = vmatpush1.bf16.msra.mxu0 0
    %1417 = vmatprep.subr.bf16.mxu0 0
    %1418 = vmatpush1.bf16.msra.mxu0 0
    %1419 = vmatprep.subr.bf16.mxu0 0
    %1420 = vmatpush1.bf16.msra.mxu0 0
    %1421 = vmatprep.subr.bf16.mxu0 0
    %1422 = vmatpush1.bf16.msra.mxu0 0
    %1423 = vmatprep.mubr.bf16.mxu0 0
    %1424 = vmatmul.mubr.bf16.gmra.mrb[0].mxu0 %v1349
    %v1425 = vpop.f32.mrb[0].mxu0
    %v1426 = vadd.f32 0.0, %v1425
    %v1427 = vpop.f32.mrb[0].mxu0
    %v1428 = vadd.f32 0.0, %v1427
    %v1429 = vpop.f32.mrb[0].mxu0
    %v1430 = vpop.f32.mrb[0].mxu0
    %1431 = vdwg.mxu0
    %v1432 = vadd.f32 %v1345, %v1385
    %v1433 = vadd.f32 %v1346, %v1387
    %v1434 = vadd.f32 %v1347, %v1426
    %v1435 = vadd.f32 %v1348, %v1428
    %v1436 = vxor.u32 %v1432, 2147483648
    %v1437 = vmul.f32 %v1436, 1.442695
    %v1438 = vpow.pop %v1437
    %v1439 = vadd.f32 %v1438, 1.0
    %v1440 = vrcp.pop %v1439
    %v1441 = vmul.f32 1.0, %v1440
    %v1442 = vxor.u32 %v1433, 2147483648
    %v1443 = vmul.f32 %v1442, 1.442695
    %v1444 = vpow.pop %v1443
    %v1445 = vadd.f32 %v1444, 1.0
    %v1446 = vrcp.pop %v1445
    %v1447 = vmul.f32 1.0, %v1446
    %v1448 = vtanh.pop %v1434
    %v1449 = vxor.u32 %v1435, 2147483648
    %v1450 = vmul.f32 %v1449, 1.442695
    %v1451 = vpow.pop %v1450
    %v1452 = vadd.f32 %v1451, 1.0
    %v1453 = vrcp.pop %v1452
    %v1454 = vmul.f32 1.0, %v1453
    %v1455 = vmul.f32 %v1447, %v1098
    %v1456 = vmul.f32 %v1441, %v1448
    %v1457 = vadd.f32 %v1455, %v1456
    %v1458 = vtanh.pop %v1457
    %v1459 = vmul.f32 %v1454, %v1458
    %v1460 = vld [vmem:[%s0 + $0x3] sm:$0x1]
    %v1461 = vld [vmem:[%s0 + $0xb] sm:$0x1]
    %v1462 = vld [vmem:[%s0 + $0x13] sm:$0x1]
    %v1463 = vld [vmem:[%s0 + $0x1b] sm:$0x1]
    %1465 = vset.pattern.permute.xlu0 0
    %1466 = vperm.xlu0 %1465, %v1460
    %v1467 = vpop.permute.xlu0 %1466
    %1470 = vset.pattern.permute.xlu0 0
    %1471 = vperm.xlu0 %1470, %v1461
    %v1472 = vpop.permute.xlu0 %1471
    %1475 = vset.pattern.permute.xlu0 0
    %1476 = vperm.xlu0 %1475, %v1462
    %v1477 = vpop.permute.xlu0 %1476
    %1480 = vset.pattern.permute.xlu0 0
    %1481 = vperm.xlu0 %1480, %v1463
    %v1482 = vpop.permute.xlu0 %1481
    %v1484 = vmul.f32 %v1467, %v107
    %v1485 = vmul.f32 %v1467, %v111
    %v1486 = vmul.f32 %v1467, %v115
    %v1487 = vmul.f32 %v1467, %v119
    %v1488 = vmul.f32 %v1472, %v107
    %v1489 = vmul.f32 %v1472, %v111
    %v1490 = vmul.f32 %v1472, %v115
    %v1491 = vmul.f32 %v1472, %v119
    %v1492 = vmul.f32 %v1477, %v107
    %v1493 = vmul.f32 %v1477, %v111
    %v1494 = vmul.f32 %v1477, %v115
    %v1495 = vmul.f32 %v1477, %v119
    %v1496 = vmul.f32 %v1482, %v107
    %v1497 = vmul.f32 %v1482, %v111
    %v1498 = vmul.f32 %v1482, %v115
    %v1499 = vmul.f32 %v1482, %v119
    %v1516 = vrot.slane %v1488, 7
    %v1517 = vsel %vm174, %v1516, %v1484
    %v1518 = vrot.slane %v1492, 6
    %v1519 = vsel %vm177, %v1518, %v1517
    %v1520 = vrot.slane %v1496, 5
    %v1521 = vsel %vm180, %v1520, %v1519
    %v1522 = vrot.slane %v1489, 7
    %v1523 = vsel %vm174, %v1522, %v1485
    %v1524 = vrot.slane %v1493, 6
    %v1525 = vsel %vm177, %v1524, %v1523
    %v1526 = vrot.slane %v1497, 5
    %v1527 = vsel %vm180, %v1526, %v1525
    %v1528 = vrot.slane %v1490, 7
    %v1529 = vsel %vm174, %v1528, %v1486
    %v1530 = vrot.slane %v1494, 6
    %v1531 = vsel %vm177, %v1530, %v1529
    %v1532 = vrot.slane %v1498, 5
    %v1533 = vsel %vm180, %v1532, %v1531
    %v1534 = vrot.slane %v1491, 7
    %v1535 = vsel %vm174, %v1534, %v1487
    %v1536 = vrot.slane %v1495, 6
    %v1537 = vsel %vm177, %v1536, %v1535
    %v1538 = vrot.slane %v1499, 5
    %v1539 = vsel %vm180, %v1538, %v1537
    %v1544 = vadd.f32 %v140, %v1521
    %v1545 = vadd.f32 %v144, %v1527
    %v1546 = vadd.f32 %v148, %v1533
    %v1547 = vadd.f32 %v152, %v1539
    %1548 = vset.pattern.permute.xlu0 1
    %1549 = vperm.xlu0 %1548, %v1460
    %v1550 = vpop.permute.xlu0 %1549
    %1552 = vset.pattern.permute.xlu0 1
    %1553 = vperm.xlu0 %1552, %v1461
    %v1554 = vpop.permute.xlu0 %1553
    %1556 = vset.pattern.permute.xlu0 1
    %1557 = vperm.xlu0 %1556, %v1462
    %v1558 = vpop.permute.xlu0 %1557
    %1560 = vset.pattern.permute.xlu0 1
    %1561 = vperm.xlu0 %1560, %v1463
    %v1562 = vpop.permute.xlu0 %1561
    %v1564 = vmul.f32 %v1550, %v247
    %v1565 = vmul.f32 %v1550, %v251
    %v1566 = vmul.f32 %v1550, %v255
    %v1567 = vmul.f32 %v1550, %v259
    %v1568 = vmul.f32 %v1554, %v247
    %v1569 = vmul.f32 %v1554, %v251
    %v1570 = vmul.f32 %v1554, %v255
    %v1571 = vmul.f32 %v1554, %v259
    %v1572 = vmul.f32 %v1558, %v247
    %v1573 = vmul.f32 %v1558, %v251
    %v1574 = vmul.f32 %v1558, %v255
    %v1575 = vmul.f32 %v1558, %v259
    %v1576 = vmul.f32 %v1562, %v247
    %v1577 = vmul.f32 %v1562, %v251
    %v1578 = vmul.f32 %v1562, %v255
    %v1579 = vmul.f32 %v1562, %v259
    %v1596 = vrot.slane %v1568, 7
    %v1597 = vsel %vm174, %v1596, %v1564
    %v1598 = vrot.slane %v1572, 6
    %v1599 = vsel %vm177, %v1598, %v1597
    %v1600 = vrot.slane %v1576, 5
    %v1601 = vsel %vm180, %v1600, %v1599
    %v1602 = vrot.slane %v1569, 7
    %v1603 = vsel %vm174, %v1602, %v1565
    %v1604 = vrot.slane %v1573, 6
    %v1605 = vsel %vm177, %v1604, %v1603
    %v1606 = vrot.slane %v1577, 5
    %v1607 = vsel %vm180, %v1606, %v1605
    %v1608 = vrot.slane %v1570, 7
    %v1609 = vsel %vm174, %v1608, %v1566
    %v1610 = vrot.slane %v1574, 6
    %v1611 = vsel %vm177, %v1610, %v1609
    %v1612 = vrot.slane %v1578, 5
    %v1613 = vsel %vm180, %v1612, %v1611
    %v1614 = vrot.slane %v1571, 7
    %v1615 = vsel %vm174, %v1614, %v1567
    %v1616 = vrot.slane %v1575, 6
    %v1617 = vsel %vm177, %v1616, %v1615
    %v1618 = vrot.slane %v1579, 5
    %v1619 = vsel %vm180, %v1618, %v1617
    %v1624 = vadd.f32 %v1544, %v1601
    %v1625 = vadd.f32 %v1545, %v1607
    %v1626 = vadd.f32 %v1546, %v1613
    %v1627 = vadd.f32 %v1547, %v1619
    %1628 = vset.pattern.permute.xlu0 2
    %1629 = vperm.xlu0 %1628, %v1460
    %v1630 = vpop.permute.xlu0 %1629
    %1632 = vset.pattern.permute.xlu0 2
    %1633 = vperm.xlu0 %1632, %v1461
    %v1634 = vpop.permute.xlu0 %1633
    %1636 = vset.pattern.permute.xlu0 2
    %1637 = vperm.xlu0 %1636, %v1462
    %v1638 = vpop.permute.xlu0 %1637
    %1640 = vset.pattern.permute.xlu0 2
    %1641 = vperm.xlu0 %1640, %v1463
    %v1642 = vpop.permute.xlu0 %1641
    %v1644 = vmul.f32 %v1630, %v363
    %v1645 = vmul.f32 %v1630, %v367
    %v1646 = vmul.f32 %v1630, %v371
    %v1647 = vmul.f32 %v1630, %v375
    %v1648 = vmul.f32 %v1634, %v363
    %v1649 = vmul.f32 %v1634, %v367
    %v1650 = vmul.f32 %v1634, %v371
    %v1651 = vmul.f32 %v1634, %v375
    %v1652 = vmul.f32 %v1638, %v363
    %v1653 = vmul.f32 %v1638, %v367
    %v1654 = vmul.f32 %v1638, %v371
    %v1655 = vmul.f32 %v1638, %v375
    %v1656 = vmul.f32 %v1642, %v363
    %v1657 = vmul.f32 %v1642, %v367
    %v1658 = vmul.f32 %v1642, %v371
    %v1659 = vmul.f32 %v1642, %v375
    %v1676 = vrot.slane %v1648, 7
    %v1677 = vsel %vm174, %v1676, %v1644
    %v1678 = vrot.slane %v1652, 6
    %v1679 = vsel %vm177, %v1678, %v1677
    %v1680 = vrot.slane %v1656, 5
    %v1681 = vsel %vm180, %v1680, %v1679
    %v1682 = vrot.slane %v1649, 7
    %v1683 = vsel %vm174, %v1682, %v1645
    %v1684 = vrot.slane %v1653, 6
    %v1685 = vsel %vm177, %v1684, %v1683
    %v1686 = vrot.slane %v1657, 5
    %v1687 = vsel %vm180, %v1686, %v1685
    %v1688 = vrot.slane %v1650, 7
    %v1689 = vsel %vm174, %v1688, %v1646
    %v1690 = vrot.slane %v1654, 6
    %v1691 = vsel %vm177, %v1690, %v1689
    %v1692 = vrot.slane %v1658, 5
    %v1693 = vsel %vm180, %v1692, %v1691
    %v1694 = vrot.slane %v1651, 7
    %v1695 = vsel %vm174, %v1694, %v1647
    %v1696 = vrot.slane %v1655, 6
    %v1697 = vsel %vm177, %v1696, %v1695
    %v1698 = vrot.slane %v1659, 5
    %v1699 = vsel %vm180, %v1698, %v1697
    %v1704 = vadd.f32 %v1624, %v1681
    %v1705 = vadd.f32 %v1625, %v1687
    %v1706 = vadd.f32 %v1626, %v1693
    %v1707 = vadd.f32 %v1627, %v1699
    %v1708 = vpack.c.bf16 %v1459, %v1459
    %1709 = vmatprep.subr.bf16.mxu0 %v569
    %1710 = vmatpush1.bf16.msra.mxu0 %v568
    %1711 = vmatprep.subr.bf16.mxu0 %v573
    %1712 = vmatpush1.bf16.msra.mxu0 %v572
    %1713 = vmatprep.subr.bf16.mxu0 %v577
    %1714 = vmatpush1.bf16.msra.mxu0 %v576
    %1715 = vmatprep.subr.bf16.mxu0 %v581
    %1716 = vmatpush1.bf16.msra.mxu0 %v580
    %1717 = vmatprep.subr.bf16.mxu0 %v585
    %1718 = vmatpush1.bf16.msra.mxu0 %v584
    %1719 = vmatprep.subr.bf16.mxu0 %v589
    %1720 = vmatpush1.bf16.msra.mxu0 %v588
    %1721 = vmatprep.subr.bf16.mxu0 %v593
    %1722 = vmatpush1.bf16.msra.mxu0 %v592
    %1723 = vmatprep.subr.bf16.mxu0 %v597
    %1724 = vmatpush1.bf16.msra.mxu0 %v596
    %1725 = vmatprep.subr.bf16.mxu0 0
    %1726 = vmatpush1.bf16.msra.mxu0 0
    %1727 = vmatprep.subr.bf16.mxu0 0
    %1728 = vmatpush1.bf16.msra.mxu0 0
    %1729 = vmatprep.subr.bf16.mxu0 0
    %1730 = vmatpush1.bf16.msra.mxu0 0
    %1731 = vmatprep.subr.bf16.mxu0 0
    %1732 = vmatpush1.bf16.msra.mxu0 0
    %1733 = vmatprep.subr.bf16.mxu0 0
    %1734 = vmatpush1.bf16.msra.mxu0 0
    %1735 = vmatprep.subr.bf16.mxu0 0
    %1736 = vmatpush1.bf16.msra.mxu0 0
    %1737 = vmatprep.subr.bf16.mxu0 0
    %1738 = vmatpush1.bf16.msra.mxu0 0
    %1739 = vmatprep.subr.bf16.mxu0 0
    %1740 = vmatpush1.bf16.msra.mxu0 0
    %1741 = vmatprep.mubr.bf16.mxu0 0
    %1742 = vmatmul.mubr.bf16.gmra.mrb[0].mxu0 %v1708
    %v1743 = vpop.f32.mrb[0].mxu0
    %v1744 = vadd.f32 0.0, %v1743
    %v1745 = vpop.f32.mrb[0].mxu0
    %v1746 = vadd.f32 0.0, %v1745
    %v1747 = vpop.f32.mrb[0].mxu0
    %v1748 = vpop.f32.mrb[0].mxu0
    %1749 = vdwg.mxu0
    %1750 = vmatprep.subr.bf16.mxu0 %v571
    %1751 = vmatpush1.bf16.msra.mxu0 %v570
    %1752 = vmatprep.subr.bf16.mxu0 %v575
    %1753 = vmatpush1.bf16.msra.mxu0 %v574
    %1754 = vmatprep.subr.bf16.mxu0 %v579
    %1755 = vmatpush1.bf16.msra.mxu0 %v578
    %1756 = vmatprep.subr.bf16.mxu0 %v583
    %1757 = vmatpush1.bf16.msra.mxu0 %v582
    %1758 = vmatprep.subr.bf16.mxu0 %v587
    %1759 = vmatpush1.bf16.msra.mxu0 %v586
    %1760 = vmatprep.subr.bf16.mxu0 %v591
    %1761 = vmatpush1.bf16.msra.mxu0 %v590
    %1762 = vmatprep.subr.bf16.mxu0 %v595
    %1763 = vmatpush1.bf16.msra.mxu0 %v594
    %1764 = vmatprep.subr.bf16.mxu0 %v599
    %1765 = vmatpush1.bf16.msra.mxu0 %v598
    %1766 = vmatprep.subr.bf16.mxu0 0
    %1767 = vmatpush1.bf16.msra.mxu0 0
    %1768 = vmatprep.subr.bf16.mxu0 0
    %1769 = vmatpush1.bf16.msra.mxu0 0
    %1770 = vmatprep.subr.bf16.mxu0 0
    %1771 = vmatpush1.bf16.msra.mxu0 0
    %1772 = vmatprep.subr.bf16.mxu0 0
    %1773 = vmatpush1.bf16.msra.mxu0 0
    %1774 = vmatprep.subr.bf16.mxu0 0
    %1775 = vmatpush1.bf16.msra.mxu0 0
    %1776 = vmatprep.subr.bf16.mxu0 0
    %1777 = vmatpush1.bf16.msra.mxu0 0
    %1778 = vmatprep.subr.bf16.mxu0 0
    %1779 = vmatpush1.bf16.msra.mxu0 0
    %1780 = vmatprep.subr.bf16.mxu0 0
    %1781 = vmatpush1.bf16.msra.mxu0 0
    %1782 = vmatprep.mubr.bf16.mxu0 0
    %1783 = vmatmul.mubr.bf16.gmra.mrb[0].mxu0 %v1708
    %v1784 = vpop.f32.mrb[0].mxu0
    %v1785 = vadd.f32 0.0, %v1784
    %v1786 = vpop.f32.mrb[0].mxu0
    %v1787 = vadd.f32 0.0, %v1786
    %v1788 = vpop.f32.mrb[0].mxu0
    %v1789 = vpop.f32.mrb[0].mxu0
    %1790 = vdwg.mxu0
    %v1791 = vadd.f32 %v1704, %v1744
    %v1792 = vadd.f32 %v1705, %v1746
    %v1793 = vadd.f32 %v1706, %v1785
    %v1794 = vadd.f32 %v1707, %v1787
    %v1795 = vxor.u32 %v1791, 2147483648
    %v1796 = vmul.f32 %v1795, 1.442695
    %v1797 = vpow.pop %v1796
    %v1798 = vadd.f32 %v1797, 1.0
    %v1799 = vrcp.pop %v1798
    %v1800 = vmul.f32 1.0, %v1799
    %v1801 = vxor.u32 %v1792, 2147483648
    %v1802 = vmul.f32 %v1801, 1.442695
    %v1803 = vpow.pop %v1802
    %v1804 = vadd.f32 %v1803, 1.0
    %v1805 = vrcp.pop %v1804
    %v1806 = vmul.f32 1.0, %v1805
    %v1807 = vtanh.pop %v1793
    %v1808 = vxor.u32 %v1794, 2147483648
    %v1809 = vmul.f32 %v1808, 1.442695
    %v1810 = vpow.pop %v1809
    %v1811 = vadd.f32 %v1810, 1.0
    %v1812 = vrcp.pop %v1811
    %v1813 = vmul.f32 1.0, %v1812
    %v1814 = vmul.f32 %v1806, %v1457
    %v1815 = vmul.f32 %v1800, %v1807
    %v1816 = vadd.f32 %v1814, %v1815
    %v1817 = vtanh.pop %v1816
    %v1818 = vmul.f32 %v1813, %v1817
    %v1819 = vld [vmem:[%s0 + $0x4] sm:$0x1]
    %v1820 = vld [vmem:[%s0 + $0xc] sm:$0x1]
    %v1821 = vld [vmem:[%s0 + $0x14] sm:$0x1]
    %v1822 = vld [vmem:[%s0 + $0x1c] sm:$0x1]
    %1824 = vset.pattern.permute.xlu0 0
    %1825 = vperm.xlu0 %1824, %v1819
    %v1826 = vpop.permute.xlu0 %1825
    %1829 = vset.pattern.permute.xlu0 0
    %1830 = vperm.xlu0 %1829, %v1820
    %v1831 = vpop.permute.xlu0 %1830
    %1834 = vset.pattern.permute.xlu0 0
    %1835 = vperm.xlu0 %1834, %v1821
    %v1836 = vpop.permute.xlu0 %1835
    %1839 = vset.pattern.permute.xlu0 0
    %1840 = vperm.xlu0 %1839, %v1822
    %v1841 = vpop.permute.xlu0 %1840
    %v1843 = vmul.f32 %v1826, %v107
    %v1844 = vmul.f32 %v1826, %v111
    %v1845 = vmul.f32 %v1826, %v115
    %v1846 = vmul.f32 %v1826, %v119
    %v1847 = vmul.f32 %v1831, %v107
    %v1848 = vmul.f32 %v1831, %v111
    %v1849 = vmul.f32 %v1831, %v115
    %v1850 = vmul.f32 %v1831, %v119
    %v1851 = vmul.f32 %v1836, %v107
    %v1852 = vmul.f32 %v1836, %v111
    %v1853 = vmul.f32 %v1836, %v115
    %v1854 = vmul.f32 %v1836, %v119
    %v1855 = vmul.f32 %v1841, %v107
    %v1856 = vmul.f32 %v1841, %v111
    %v1857 = vmul.f32 %v1841, %v115
    %v1858 = vmul.f32 %v1841, %v119
    %v1875 = vrot.slane %v1847, 7
    %v1876 = vsel %vm174, %v1875, %v1843
    %v1877 = vrot.slane %v1851, 6
    %v1878 = vsel %vm177, %v1877, %v1876
    %v1879 = vrot.slane %v1855, 5
    %v1880 = vsel %vm180, %v1879, %v1878
    %v1881 = vrot.slane %v1848, 7
    %v1882 = vsel %vm174, %v1881, %v1844
    %v1883 = vrot.slane %v1852, 6
    %v1884 = vsel %vm177, %v1883, %v1882
    %v1885 = vrot.slane %v1856, 5
    %v1886 = vsel %vm180, %v1885, %v1884
    %v1887 = vrot.slane %v1849, 7
    %v1888 = vsel %vm174, %v1887, %v1845
    %v1889 = vrot.slane %v1853, 6
    %v1890 = vsel %vm177, %v1889, %v1888
    %v1891 = vrot.slane %v1857, 5
    %v1892 = vsel %vm180, %v1891, %v1890
    %v1893 = vrot.slane %v1850, 7
    %v1894 = vsel %vm174, %v1893, %v1846
    %v1895 = vrot.slane %v1854, 6
    %v1896 = vsel %vm177, %v1895, %v1894
    %v1897 = vrot.slane %v1858, 5
    %v1898 = vsel %vm180, %v1897, %v1896
    %v1903 = vadd.f32 %v140, %v1880
    %v1904 = vadd.f32 %v144, %v1886
    %v1905 = vadd.f32 %v148, %v1892
    %v1906 = vadd.f32 %v152, %v1898
    %1907 = vset.pattern.permute.xlu0 1
    %1908 = vperm.xlu0 %1907, %v1819
    %v1909 = vpop.permute.xlu0 %1908
    %1911 = vset.pattern.permute.xlu0 1
    %1912 = vperm.xlu0 %1911, %v1820
    %v1913 = vpop.permute.xlu0 %1912
    %1915 = vset.pattern.permute.xlu0 1
    %1916 = vperm.xlu0 %1915, %v1821
    %v1917 = vpop.permute.xlu0 %1916
    %1919 = vset.pattern.permute.xlu0 1
    %1920 = vperm.xlu0 %1919, %v1822
    %v1921 = vpop.permute.xlu0 %1920
    %v1923 = vmul.f32 %v1909, %v247
    %v1924 = vmul.f32 %v1909, %v251
    %v1925 = vmul.f32 %v1909, %v255
    %v1926 = vmul.f32 %v1909, %v259
    %v1927 = vmul.f32 %v1913, %v247
    %v1928 = vmul.f32 %v1913, %v251
    %v1929 = vmul.f32 %v1913, %v255
    %v1930 = vmul.f32 %v1913, %v259
    %v1931 = vmul.f32 %v1917, %v247
    %v1932 = vmul.f32 %v1917, %v251
    %v1933 = vmul.f32 %v1917, %v255
    %v1934 = vmul.f32 %v1917, %v259
    %v1935 = vmul.f32 %v1921, %v247
    %v1936 = vmul.f32 %v1921, %v251
    %v1937 = vmul.f32 %v1921, %v255
    %v1938 = vmul.f32 %v1921, %v259
    %v1955 = vrot.slane %v1927, 7
    %v1956 = vsel %vm174, %v1955, %v1923
    %v1957 = vrot.slane %v1931, 6
    %v1958 = vsel %vm177, %v1957, %v1956
    %v1959 = vrot.slane %v1935, 5
    %v1960 = vsel %vm180, %v1959, %v1958
    %v1961 = vrot.slane %v1928, 7
    %v1962 = vsel %vm174, %v1961, %v1924
    %v1963 = vrot.slane %v1932, 6
    %v1964 = vsel %vm177, %v1963, %v1962
    %v1965 = vrot.slane %v1936, 5
    %v1966 = vsel %vm180, %v1965, %v1964
    %v1967 = vrot.slane %v1929, 7
    %v1968 = vsel %vm174, %v1967, %v1925
    %v1969 = vrot.slane %v1933, 6
    %v1970 = vsel %vm177, %v1969, %v1968
    %v1971 = vrot.slane %v1937, 5
    %v1972 = vsel %vm180, %v1971, %v1970
    %v1973 = vrot.slane %v1930, 7
    %v1974 = vsel %vm174, %v1973, %v1926
    %v1975 = vrot.slane %v1934, 6
    %v1976 = vsel %vm177, %v1975, %v1974
    %v1977 = vrot.slane %v1938, 5
    %v1978 = vsel %vm180, %v1977, %v1976
    %v1983 = vadd.f32 %v1903, %v1960
    %v1984 = vadd.f32 %v1904, %v1966
    %v1985 = vadd.f32 %v1905, %v1972
    %v1986 = vadd.f32 %v1906, %v1978
    %1987 = vset.pattern.permute.xlu0 2
    %1988 = vperm.xlu0 %1987, %v1819
    %v1989 = vpop.permute.xlu0 %1988
    %1991 = vset.pattern.permute.xlu0 2
    %1992 = vperm.xlu0 %1991, %v1820
    %v1993 = vpop.permute.xlu0 %1992
    %1995 = vset.pattern.permute.xlu0 2
    %1996 = vperm.xlu0 %1995, %v1821
    %v1997 = vpop.permute.xlu0 %1996
    %1999 = vset.pattern.permute.xlu0 2
    %2000 = vperm.xlu0 %1999, %v1822
    %v2001 = vpop.permute.xlu0 %2000
    %v2003 = vmul.f32 %v1989, %v363
    %v2004 = vmul.f32 %v1989, %v367
    %v2005 = vmul.f32 %v1989, %v371
    %v2006 = vmul.f32 %v1989, %v375
    %v2007 = vmul.f32 %v1993, %v363
    %v2008 = vmul.f32 %v1993, %v367
    %v2009 = vmul.f32 %v1993, %v371
    %v2010 = vmul.f32 %v1993, %v375
    %v2011 = vmul.f32 %v1997, %v363
    %v2012 = vmul.f32 %v1997, %v367
    %v2013 = vmul.f32 %v1997, %v371
    %v2014 = vmul.f32 %v1997, %v375
    %v2015 = vmul.f32 %v2001, %v363
    %v2016 = vmul.f32 %v2001, %v367
    %v2017 = vmul.f32 %v2001, %v371
    %v2018 = vmul.f32 %v2001, %v375
    %v2035 = vrot.slane %v2007, 7
    %v2036 = vsel %vm174, %v2035, %v2003
    %v2037 = vrot.slane %v2011, 6
    %v2038 = vsel %vm177, %v2037, %v2036
    %v2039 = vrot.slane %v2015, 5
    %v2040 = vsel %vm180, %v2039, %v2038
    %v2041 = vrot.slane %v2008, 7
    %v2042 = vsel %vm174, %v2041, %v2004
    %v2043 = vrot.slane %v2012, 6
    %v2044 = vsel %vm177, %v2043, %v2042
    %v2045 = vrot.slane %v2016, 5
    %v2046 = vsel %vm180, %v2045, %v2044
    %v2047 = vrot.slane %v2009, 7
    %v2048 = vsel %vm174, %v2047, %v2005
    %v2049 = vrot.slane %v2013, 6
    %v2050 = vsel %vm177, %v2049, %v2048
    %v2051 = vrot.slane %v2017, 5
    %v2052 = vsel %vm180, %v2051, %v2050
    %v2053 = vrot.slane %v2010, 7
    %v2054 = vsel %vm174, %v2053, %v2006
    %v2055 = vrot.slane %v2014, 6
    %v2056 = vsel %vm177, %v2055, %v2054
    %v2057 = vrot.slane %v2018, 5
    %v2058 = vsel %vm180, %v2057, %v2056
    %v2063 = vadd.f32 %v1983, %v2040
    %v2064 = vadd.f32 %v1984, %v2046
    %v2065 = vadd.f32 %v1985, %v2052
    %v2066 = vadd.f32 %v1986, %v2058
    %v2067 = vpack.c.bf16 %v1818, %v1818
    %2068 = vmatprep.subr.bf16.mxu0 %v569
    %2069 = vmatpush1.bf16.msra.mxu0 %v568
    %2070 = vmatprep.subr.bf16.mxu0 %v573
    %2071 = vmatpush1.bf16.msra.mxu0 %v572
    %2072 = vmatprep.subr.bf16.mxu0 %v577
    %2073 = vmatpush1.bf16.msra.mxu0 %v576
    %2074 = vmatprep.subr.bf16.mxu0 %v581
    %2075 = vmatpush1.bf16.msra.mxu0 %v580
    %2076 = vmatprep.subr.bf16.mxu0 %v585
    %2077 = vmatpush1.bf16.msra.mxu0 %v584
    %2078 = vmatprep.subr.bf16.mxu0 %v589
    %2079 = vmatpush1.bf16.msra.mxu0 %v588
    %2080 = vmatprep.subr.bf16.mxu0 %v593
    %2081 = vmatpush1.bf16.msra.mxu0 %v592
    %2082 = vmatprep.subr.bf16.mxu0 %v597
    %2083 = vmatpush1.bf16.msra.mxu0 %v596
    %2084 = vmatprep.subr.bf16.mxu0 0
    %2085 = vmatpush1.bf16.msra.mxu0 0
    %2086 = vmatprep.subr.bf16.mxu0 0
    %2087 = vmatpush1.bf16.msra.mxu0 0
    %2088 = vmatprep.subr.bf16.mxu0 0
    %2089 = vmatpush1.bf16.msra.mxu0 0
    %2090 = vmatprep.subr.bf16.mxu0 0
    %2091 = vmatpush1.bf16.msra.mxu0 0
    %2092 = vmatprep.subr.bf16.mxu0 0
    %2093 = vmatpush1.bf16.msra.mxu0 0
    %2094 = vmatprep.subr.bf16.mxu0 0
    %2095 = vmatpush1.bf16.msra.mxu0 0
    %2096 = vmatprep.subr.bf16.mxu0 0
    %2097 = vmatpush1.bf16.msra.mxu0 0
    %2098 = vmatprep.subr.bf16.mxu0 0
    %2099 = vmatpush1.bf16.msra.mxu0 0
    %2100 = vmatprep.mubr.bf16.mxu0 0
    %2101 = vmatmul.mubr.bf16.gmra.mrb[0].mxu0 %v2067
    %v2102 = vpop.f32.mrb[0].mxu0
    %v2103 = vadd.f32 0.0, %v2102
    %v2104 = vpop.f32.mrb[0].mxu0
    %v2105 = vadd.f32 0.0, %v2104
    %v2106 = vpop.f32.mrb[0].mxu0
    %v2107 = vpop.f32.mrb[0].mxu0
    %2108 = vdwg.mxu0
    %2109 = vmatprep.subr.bf16.mxu0 %v571
    %2110 = vmatpush1.bf16.msra.mxu0 %v570
    %2111 = vmatprep.subr.bf16.mxu0 %v575
    %2112 = vmatpush1.bf16.msra.mxu0 %v574
    %2113 = vmatprep.subr.bf16.mxu0 %v579
    %2114 = vmatpush1.bf16.msra.mxu0 %v578
    %2115 = vmatprep.subr.bf16.mxu0 %v583
    %2116 = vmatpush1.bf16.msra.mxu0 %v582
    %2117 = vmatprep.subr.bf16.mxu0 %v587
    %2118 = vmatpush1.bf16.msra.mxu0 %v586
    %2119 = vmatprep.subr.bf16.mxu0 %v591
    %2120 = vmatpush1.bf16.msra.mxu0 %v590
    %2121 = vmatprep.subr.bf16.mxu0 %v595
    %2122 = vmatpush1.bf16.msra.mxu0 %v594
    %2123 = vmatprep.subr.bf16.mxu0 %v599
    %2124 = vmatpush1.bf16.msra.mxu0 %v598
    %2125 = vmatprep.subr.bf16.mxu0 0
    %2126 = vmatpush1.bf16.msra.mxu0 0
    %2127 = vmatprep.subr.bf16.mxu0 0
    %2128 = vmatpush1.bf16.msra.mxu0 0
    %2129 = vmatprep.subr.bf16.mxu0 0
    %2130 = vmatpush1.bf16.msra.mxu0 0
    %2131 = vmatprep.subr.bf16.mxu0 0
    %2132 = vmatpush1.bf16.msra.mxu0 0
    %2133 = vmatprep.subr.bf16.mxu0 0
    %2134 = vmatpush1.bf16.msra.mxu0 0
    %2135 = vmatprep.subr.bf16.mxu0 0
    %2136 = vmatpush1.bf16.msra.mxu0 0
    %2137 = vmatprep.subr.bf16.mxu0 0
    %2138 = vmatpush1.bf16.msra.mxu0 0
    %2139 = vmatprep.subr.bf16.mxu0 0
    %2140 = vmatpush1.bf16.msra.mxu0 0
    %2141 = vmatprep.mubr.bf16.mxu0 0
    %2142 = vmatmul.mubr.bf16.gmra.mrb[0].mxu0 %v2067
    %v2143 = vpop.f32.mrb[0].mxu0
    %v2144 = vadd.f32 0.0, %v2143
    %v2145 = vpop.f32.mrb[0].mxu0
    %v2146 = vadd.f32 0.0, %v2145
    %v2147 = vpop.f32.mrb[0].mxu0
    %v2148 = vpop.f32.mrb[0].mxu0
    %2149 = vdwg.mxu0
    %v2150 = vadd.f32 %v2063, %v2103
    %v2151 = vadd.f32 %v2064, %v2105
    %v2152 = vadd.f32 %v2065, %v2144
    %v2153 = vadd.f32 %v2066, %v2146
    %v2154 = vxor.u32 %v2150, 2147483648
    %v2155 = vmul.f32 %v2154, 1.442695
    %v2156 = vpow.pop %v2155
    %v2157 = vadd.f32 %v2156, 1.0
    %v2158 = vrcp.pop %v2157
    %v2159 = vmul.f32 1.0, %v2158
    %v2160 = vxor.u32 %v2151, 2147483648
    %v2161 = vmul.f32 %v2160, 1.442695
    %v2162 = vpow.pop %v2161
    %v2163 = vadd.f32 %v2162, 1.0
    %v2164 = vrcp.pop %v2163
    %v2165 = vmul.f32 1.0, %v2164
    %v2166 = vtanh.pop %v2152
    %v2167 = vxor.u32 %v2153, 2147483648
    %v2168 = vmul.f32 %v2167, 1.442695
    %v2169 = vpow.pop %v2168
    %v2170 = vadd.f32 %v2169, 1.0
    %v2171 = vrcp.pop %v2170
    %v2172 = vmul.f32 1.0, %v2171
    %v2173 = vmul.f32 %v2165, %v1816
    %v2174 = vmul.f32 %v2159, %v2166
    %v2175 = vadd.f32 %v2173, %v2174
    %v2176 = vtanh.pop %v2175
    %v2177 = vmul.f32 %v2172, %v2176
    %v2178 = vld [vmem:[%s0 + $0x5] sm:$0x1]
    %v2179 = vld [vmem:[%s0 + $0xd] sm:$0x1]
    %v2180 = vld [vmem:[%s0 + $0x15] sm:$0x1]
    %v2181 = vld [vmem:[%s0 + $0x1d] sm:$0x1]
    %2183 = vset.pattern.permute.xlu0 0
    %2184 = vperm.xlu0 %2183, %v2178
    %v2185 = vpop.permute.xlu0 %2184
    %2188 = vset.pattern.permute.xlu0 0
    %2189 = vperm.xlu0 %2188, %v2179
    %v2190 = vpop.permute.xlu0 %2189
    %2193 = vset.pattern.permute.xlu0 0
    %2194 = vperm.xlu0 %2193, %v2180
    %v2195 = vpop.permute.xlu0 %2194
    %2198 = vset.pattern.permute.xlu0 0
    %2199 = vperm.xlu0 %2198, %v2181
    %v2200 = vpop.permute.xlu0 %2199
    %v2202 = vmul.f32 %v2185, %v107
    %v2203 = vmul.f32 %v2185, %v111
    %v2204 = vmul.f32 %v2185, %v115
    %v2205 = vmul.f32 %v2185, %v119
    %v2206 = vmul.f32 %v2190, %v107
    %v2207 = vmul.f32 %v2190, %v111
    %v2208 = vmul.f32 %v2190, %v115
    %v2209 = vmul.f32 %v2190, %v119
    %v2210 = vmul.f32 %v2195, %v107
    %v2211 = vmul.f32 %v2195, %v111
    %v2212 = vmul.f32 %v2195, %v115
    %v2213 = vmul.f32 %v2195, %v119
    %v2214 = vmul.f32 %v2200, %v107
    %v2215 = vmul.f32 %v2200, %v111
    %v2216 = vmul.f32 %v2200, %v115
    %v2217 = vmul.f32 %v2200, %v119
    %v2234 = vrot.slane %v2206, 7
    %v2235 = vsel %vm174, %v2234, %v2202
    %v2236 = vrot.slane %v2210, 6
    %v2237 = vsel %vm177, %v2236, %v2235
    %v2238 = vrot.slane %v2214, 5
    %v2239 = vsel %vm180, %v2238, %v2237
    %v2240 = vrot.slane %v2207, 7
    %v2241 = vsel %vm174, %v2240, %v2203
    %v2242 = vrot.slane %v2211, 6
    %v2243 = vsel %vm177, %v2242, %v2241
    %v2244 = vrot.slane %v2215, 5
    %v2245 = vsel %vm180, %v2244, %v2243
    %v2246 = vrot.slane %v2208, 7
    %v2247 = vsel %vm174, %v2246, %v2204
    %v2248 = vrot.slane %v2212, 6
    %v2249 = vsel %vm177, %v2248, %v2247
    %v2250 = vrot.slane %v2216, 5
    %v2251 = vsel %vm180, %v2250, %v2249
    %v2252 = vrot.slane %v2209, 7
    %v2253 = vsel %vm174, %v2252, %v2205
    %v2254 = vrot.slane %v2213, 6
    %v2255 = vsel %vm177, %v2254, %v2253
    %v2256 = vrot.slane %v2217, 5
    %v2257 = vsel %vm180, %v2256, %v2255
    %v2262 = vadd.f32 %v140, %v2239
    %v2263 = vadd.f32 %v144, %v2245
    %v2264 = vadd.f32 %v148, %v2251
    %v2265 = vadd.f32 %v152, %v2257
    %2266 = vset.pattern.permute.xlu0 1
    %2267 = vperm.xlu0 %2266, %v2178
    %v2268 = vpop.permute.xlu0 %2267
    %2270 = vset.pattern.permute.xlu0 1
    %2271 = vperm.xlu0 %2270, %v2179
    %v2272 = vpop.permute.xlu0 %2271
    %2274 = vset.pattern.permute.xlu0 1
    %2275 = vperm.xlu0 %2274, %v2180
    %v2276 = vpop.permute.xlu0 %2275
    %2278 = vset.pattern.permute.xlu0 1
    %2279 = vperm.xlu0 %2278, %v2181
    %v2280 = vpop.permute.xlu0 %2279
    %v2282 = vmul.f32 %v2268, %v247
    %v2283 = vmul.f32 %v2268, %v251
    %v2284 = vmul.f32 %v2268, %v255
    %v2285 = vmul.f32 %v2268, %v259
    %v2286 = vmul.f32 %v2272, %v247
    %v2287 = vmul.f32 %v2272, %v251
    %v2288 = vmul.f32 %v2272, %v255
    %v2289 = vmul.f32 %v2272, %v259
    %v2290 = vmul.f32 %v2276, %v247
    %v2291 = vmul.f32 %v2276, %v251
    %v2292 = vmul.f32 %v2276, %v255
    %v2293 = vmul.f32 %v2276, %v259
    %v2294 = vmul.f32 %v2280, %v247
    %v2295 = vmul.f32 %v2280, %v251
    %v2296 = vmul.f32 %v2280, %v255
    %v2297 = vmul.f32 %v2280, %v259
    %v2314 = vrot.slane %v2286, 7
    %v2315 = vsel %vm174, %v2314, %v2282
    %v2316 = vrot.slane %v2290, 6
    %v2317 = vsel %vm177, %v2316, %v2315
    %v2318 = vrot.slane %v2294, 5
    %v2319 = vsel %vm180, %v2318, %v2317
    %v2320 = vrot.slane %v2287, 7
    %v2321 = vsel %vm174, %v2320, %v2283
    %v2322 = vrot.slane %v2291, 6
    %v2323 = vsel %vm177, %v2322, %v2321
    %v2324 = vrot.slane %v2295, 5
    %v2325 = vsel %vm180, %v2324, %v2323
    %v2326 = vrot.slane %v2288, 7
    %v2327 = vsel %vm174, %v2326, %v2284
    %v2328 = vrot.slane %v2292, 6
    %v2329 = vsel %vm177, %v2328, %v2327
    %v2330 = vrot.slane %v2296, 5
    %v2331 = vsel %vm180, %v2330, %v2329
    %v2332 = vrot.slane %v2289, 7
    %v2333 = vsel %vm174, %v2332, %v2285
    %v2334 = vrot.slane %v2293, 6
    %v2335 = vsel %vm177, %v2334, %v2333
    %v2336 = vrot.slane %v2297, 5
    %v2337 = vsel %vm180, %v2336, %v2335
    %v2342 = vadd.f32 %v2262, %v2319
    %v2343 = vadd.f32 %v2263, %v2325
    %v2344 = vadd.f32 %v2264, %v2331
    %v2345 = vadd.f32 %v2265, %v2337
    %2346 = vset.pattern.permute.xlu0 2
    %2347 = vperm.xlu0 %2346, %v2178
    %v2348 = vpop.permute.xlu0 %2347
    %2350 = vset.pattern.permute.xlu0 2
    %2351 = vperm.xlu0 %2350, %v2179
    %v2352 = vpop.permute.xlu0 %2351
    %2354 = vset.pattern.permute.xlu0 2
    %2355 = vperm.xlu0 %2354, %v2180
    %v2356 = vpop.permute.xlu0 %2355
    %2358 = vset.pattern.permute.xlu0 2
    %2359 = vperm.xlu0 %2358, %v2181
    %v2360 = vpop.permute.xlu0 %2359
    %v2362 = vmul.f32 %v2348, %v363
    %v2363 = vmul.f32 %v2348, %v367
    %v2364 = vmul.f32 %v2348, %v371
    %v2365 = vmul.f32 %v2348, %v375
    %v2366 = vmul.f32 %v2352, %v363
    %v2367 = vmul.f32 %v2352, %v367
    %v2368 = vmul.f32 %v2352, %v371
    %v2369 = vmul.f32 %v2352, %v375
    %v2370 = vmul.f32 %v2356, %v363
    %v2371 = vmul.f32 %v2356, %v367
    %v2372 = vmul.f32 %v2356, %v371
    %v2373 = vmul.f32 %v2356, %v375
    %v2374 = vmul.f32 %v2360, %v363
    %v2375 = vmul.f32 %v2360, %v367
    %v2376 = vmul.f32 %v2360, %v371
    %v2377 = vmul.f32 %v2360, %v375
    %v2394 = vrot.slane %v2366, 7
    %v2395 = vsel %vm174, %v2394, %v2362
    %v2396 = vrot.slane %v2370, 6
    %v2397 = vsel %vm177, %v2396, %v2395
    %v2398 = vrot.slane %v2374, 5
    %v2399 = vsel %vm180, %v2398, %v2397
    %v2400 = vrot.slane %v2367, 7
    %v2401 = vsel %vm174, %v2400, %v2363
    %v2402 = vrot.slane %v2371, 6
    %v2403 = vsel %vm177, %v2402, %v2401
    %v2404 = vrot.slane %v2375, 5
    %v2405 = vsel %vm180, %v2404, %v2403
    %v2406 = vrot.slane %v2368, 7
    %v2407 = vsel %vm174, %v2406, %v2364
    %v2408 = vrot.slane %v2372, 6
    %v2409 = vsel %vm177, %v2408, %v2407
    %v2410 = vrot.slane %v2376, 5
    %v2411 = vsel %vm180, %v2410, %v2409
    %v2412 = vrot.slane %v2369, 7
    %v2413 = vsel %vm174, %v2412, %v2365
    %v2414 = vrot.slane %v2373, 6
    %v2415 = vsel %vm177, %v2414, %v2413
    %v2416 = vrot.slane %v2377, 5
    %v2417 = vsel %vm180, %v2416, %v2415
    %v2422 = vadd.f32 %v2342, %v2399
    %v2423 = vadd.f32 %v2343, %v2405
    %v2424 = vadd.f32 %v2344, %v2411
    %v2425 = vadd.f32 %v2345, %v2417
    %v2426 = vpack.c.bf16 %v2177, %v2177
    %2427 = vmatprep.subr.bf16.mxu0 %v569
    %2428 = vmatpush1.bf16.msra.mxu0 %v568
    %2429 = vmatprep.subr.bf16.mxu0 %v573
    %2430 = vmatpush1.bf16.msra.mxu0 %v572
    %2431 = vmatprep.subr.bf16.mxu0 %v577
    %2432 = vmatpush1.bf16.msra.mxu0 %v576
    %2433 = vmatprep.subr.bf16.mxu0 %v581
    %2434 = vmatpush1.bf16.msra.mxu0 %v580
    %2435 = vmatprep.subr.bf16.mxu0 %v585
    %2436 = vmatpush1.bf16.msra.mxu0 %v584
    %2437 = vmatprep.subr.bf16.mxu0 %v589
    %2438 = vmatpush1.bf16.msra.mxu0 %v588
    %2439 = vmatprep.subr.bf16.mxu0 %v593
    %2440 = vmatpush1.bf16.msra.mxu0 %v592
    %2441 = vmatprep.subr.bf16.mxu0 %v597
    %2442 = vmatpush1.bf16.msra.mxu0 %v596
    %2443 = vmatprep.subr.bf16.mxu0 0
    %2444 = vmatpush1.bf16.msra.mxu0 0
    %2445 = vmatprep.subr.bf16.mxu0 0
    %2446 = vmatpush1.bf16.msra.mxu0 0
    %2447 = vmatprep.subr.bf16.mxu0 0
    %2448 = vmatpush1.bf16.msra.mxu0 0
    %2449 = vmatprep.subr.bf16.mxu0 0
    %2450 = vmatpush1.bf16.msra.mxu0 0
    %2451 = vmatprep.subr.bf16.mxu0 0
    %2452 = vmatpush1.bf16.msra.mxu0 0
    %2453 = vmatprep.subr.bf16.mxu0 0
    %2454 = vmatpush1.bf16.msra.mxu0 0
    %2455 = vmatprep.subr.bf16.mxu0 0
    %2456 = vmatpush1.bf16.msra.mxu0 0
    %2457 = vmatprep.subr.bf16.mxu0 0
    %2458 = vmatpush1.bf16.msra.mxu0 0
    %2459 = vmatprep.mubr.bf16.mxu0 0
    %2460 = vmatmul.mubr.bf16.gmra.mrb[0].mxu0 %v2426
    %v2461 = vpop.f32.mrb[0].mxu0
    %v2462 = vadd.f32 0.0, %v2461
    %v2463 = vpop.f32.mrb[0].mxu0
    %v2464 = vadd.f32 0.0, %v2463
    %v2465 = vpop.f32.mrb[0].mxu0
    %v2466 = vpop.f32.mrb[0].mxu0
    %2467 = vdwg.mxu0
    %2468 = vmatprep.subr.bf16.mxu0 %v571
    %2469 = vmatpush1.bf16.msra.mxu0 %v570
    %2470 = vmatprep.subr.bf16.mxu0 %v575
    %2471 = vmatpush1.bf16.msra.mxu0 %v574
    %2472 = vmatprep.subr.bf16.mxu0 %v579
    %2473 = vmatpush1.bf16.msra.mxu0 %v578
    %2474 = vmatprep.subr.bf16.mxu0 %v583
    %2475 = vmatpush1.bf16.msra.mxu0 %v582
    %2476 = vmatprep.subr.bf16.mxu0 %v587
    %2477 = vmatpush1.bf16.msra.mxu0 %v586
    %2478 = vmatprep.subr.bf16.mxu0 %v591
    %2479 = vmatpush1.bf16.msra.mxu0 %v590
    %2480 = vmatprep.subr.bf16.mxu0 %v595
    %2481 = vmatpush1.bf16.msra.mxu0 %v594
    %2482 = vmatprep.subr.bf16.mxu0 %v599
    %2483 = vmatpush1.bf16.msra.mxu0 %v598
    %2484 = vmatprep.subr.bf16.mxu0 0
    %2485 = vmatpush1.bf16.msra.mxu0 0
    %2486 = vmatprep.subr.bf16.mxu0 0
    %2487 = vmatpush1.bf16.msra.mxu0 0
    %2488 = vmatprep.subr.bf16.mxu0 0
    %2489 = vmatpush1.bf16.msra.mxu0 0
    %2490 = vmatprep.subr.bf16.mxu0 0
    %2491 = vmatpush1.bf16.msra.mxu0 0
    %2492 = vmatprep.subr.bf16.mxu0 0
    %2493 = vmatpush1.bf16.msra.mxu0 0
    %2494 = vmatprep.subr.bf16.mxu0 0
    %2495 = vmatpush1.bf16.msra.mxu0 0
    %2496 = vmatprep.subr.bf16.mxu0 0
    %2497 = vmatpush1.bf16.msra.mxu0 0
    %2498 = vmatprep.subr.bf16.mxu0 0
    %2499 = vmatpush1.bf16.msra.mxu0 0
    %2500 = vmatprep.mubr.bf16.mxu0 0
    %2501 = vmatmul.mubr.bf16.gmra.mrb[0].mxu0 %v2426
    %v2502 = vpop.f32.mrb[0].mxu0
    %v2503 = vadd.f32 0.0, %v2502
    %v2504 = vpop.f32.mrb[0].mxu0
    %v2505 = vadd.f32 0.0, %v2504
    %v2506 = vpop.f32.mrb[0].mxu0
    %v2507 = vpop.f32.mrb[0].mxu0
    %2508 = vdwg.mxu0
    %v2509 = vadd.f32 %v2422, %v2462
    %v2510 = vadd.f32 %v2423, %v2464
    %v2511 = vadd.f32 %v2424, %v2503
    %v2512 = vadd.f32 %v2425, %v2505
    %v2513 = vxor.u32 %v2509, 2147483648
    %v2514 = vmul.f32 %v2513, 1.442695
    %v2515 = vpow.pop %v2514
    %v2516 = vadd.f32 %v2515, 1.0
    %v2517 = vrcp.pop %v2516
    %v2518 = vmul.f32 1.0, %v2517
    %v2519 = vxor.u32 %v2510, 2147483648
    %v2520 = vmul.f32 %v2519, 1.442695
    %v2521 = vpow.pop %v2520
    %v2522 = vadd.f32 %v2521, 1.0
    %v2523 = vrcp.pop %v2522
    %v2524 = vmul.f32 1.0, %v2523
    %v2525 = vtanh.pop %v2511
    %v2526 = vxor.u32 %v2512, 2147483648
    %v2527 = vmul.f32 %v2526, 1.442695
    %v2528 = vpow.pop %v2527
    %v2529 = vadd.f32 %v2528, 1.0
    %v2530 = vrcp.pop %v2529
    %v2531 = vmul.f32 1.0, %v2530
    %v2532 = vmul.f32 %v2524, %v2175
    %v2533 = vmul.f32 %v2518, %v2525
    %v2534 = vadd.f32 %v2532, %v2533
    %v2535 = vtanh.pop %v2534
    %v2536 = vmul.f32 %v2531, %v2535
    %v2537 = vld [vmem:[%s0 + $0x6] sm:$0x1]
    %v2538 = vld [vmem:[%s0 + $0xe] sm:$0x1]
    %v2539 = vld [vmem:[%s0 + $0x16] sm:$0x1]
    %v2540 = vld [vmem:[%s0 + $0x1e] sm:$0x1]
    %2542 = vset.pattern.permute.xlu0 0
    %2543 = vperm.xlu0 %2542, %v2537
    %v2544 = vpop.permute.xlu0 %2543
    %2547 = vset.pattern.permute.xlu0 0
    %2548 = vperm.xlu0 %2547, %v2538
    %v2549 = vpop.permute.xlu0 %2548
    %2552 = vset.pattern.permute.xlu0 0
    %2553 = vperm.xlu0 %2552, %v2539
    %v2554 = vpop.permute.xlu0 %2553
    %2557 = vset.pattern.permute.xlu0 0
    %2558 = vperm.xlu0 %2557, %v2540
    %v2559 = vpop.permute.xlu0 %2558
    %v2561 = vmul.f32 %v2544, %v107
    %v2562 = vmul.f32 %v2544, %v111
    %v2563 = vmul.f32 %v2544, %v115
    %v2564 = vmul.f32 %v2544, %v119
    %v2565 = vmul.f32 %v2549, %v107
    %v2566 = vmul.f32 %v2549, %v111
    %v2567 = vmul.f32 %v2549, %v115
    %v2568 = vmul.f32 %v2549, %v119
    %v2569 = vmul.f32 %v2554, %v107
    %v2570 = vmul.f32 %v2554, %v111
    %v2571 = vmul.f32 %v2554, %v115
    %v2572 = vmul.f32 %v2554, %v119
    %v2573 = vmul.f32 %v2559, %v107
    %v2574 = vmul.f32 %v2559, %v111
    %v2575 = vmul.f32 %v2559, %v115
    %v2576 = vmul.f32 %v2559, %v119
    %v2593 = vrot.slane %v2565, 7
    %v2594 = vsel %vm174, %v2593, %v2561
    %v2595 = vrot.slane %v2569, 6
    %v2596 = vsel %vm177, %v2595, %v2594
    %v2597 = vrot.slane %v2573, 5
    %v2598 = vsel %vm180, %v2597, %v2596
    %v2599 = vrot.slane %v2566, 7
    %v2600 = vsel %vm174, %v2599, %v2562
    %v2601 = vrot.slane %v2570, 6
    %v2602 = vsel %vm177, %v2601, %v2600
    %v2603 = vrot.slane %v2574, 5
    %v2604 = vsel %vm180, %v2603, %v2602
    %v2605 = vrot.slane %v2567, 7
    %v2606 = vsel %vm174, %v2605, %v2563
    %v2607 = vrot.slane %v2571, 6
    %v2608 = vsel %vm177, %v2607, %v2606
    %v2609 = vrot.slane %v2575, 5
    %v2610 = vsel %vm180, %v2609, %v2608
    %v2611 = vrot.slane %v2568, 7
    %v2612 = vsel %vm174, %v2611, %v2564
    %v2613 = vrot.slane %v2572, 6
    %v2614 = vsel %vm177, %v2613, %v2612
    %v2615 = vrot.slane %v2576, 5
    %v2616 = vsel %vm180, %v2615, %v2614
    %v2621 = vadd.f32 %v140, %v2598
    %v2622 = vadd.f32 %v144, %v2604
    %v2623 = vadd.f32 %v148, %v2610
    %v2624 = vadd.f32 %v152, %v2616
    %2625 = vset.pattern.permute.xlu0 1
    %2626 = vperm.xlu0 %2625, %v2537
    %v2627 = vpop.permute.xlu0 %2626
    %2629 = vset.pattern.permute.xlu0 1
    %2630 = vperm.xlu0 %2629, %v2538
    %v2631 = vpop.permute.xlu0 %2630
    %2633 = vset.pattern.permute.xlu0 1
    %2634 = vperm.xlu0 %2633, %v2539
    %v2635 = vpop.permute.xlu0 %2634
    %2637 = vset.pattern.permute.xlu0 1
    %2638 = vperm.xlu0 %2637, %v2540
    %v2639 = vpop.permute.xlu0 %2638
    %v2641 = vmul.f32 %v2627, %v247
    %v2642 = vmul.f32 %v2627, %v251
    %v2643 = vmul.f32 %v2627, %v255
    %v2644 = vmul.f32 %v2627, %v259
    %v2645 = vmul.f32 %v2631, %v247
    %v2646 = vmul.f32 %v2631, %v251
    %v2647 = vmul.f32 %v2631, %v255
    %v2648 = vmul.f32 %v2631, %v259
    %v2649 = vmul.f32 %v2635, %v247
    %v2650 = vmul.f32 %v2635, %v251
    %v2651 = vmul.f32 %v2635, %v255
    %v2652 = vmul.f32 %v2635, %v259
    %v2653 = vmul.f32 %v2639, %v247
    %v2654 = vmul.f32 %v2639, %v251
    %v2655 = vmul.f32 %v2639, %v255
    %v2656 = vmul.f32 %v2639, %v259
    %v2673 = vrot.slane %v2645, 7
    %v2674 = vsel %vm174, %v2673, %v2641
    %v2675 = vrot.slane %v2649, 6
    %v2676 = vsel %vm177, %v2675, %v2674
    %v2677 = vrot.slane %v2653, 5
    %v2678 = vsel %vm180, %v2677, %v2676
    %v2679 = vrot.slane %v2646, 7
    %v2680 = vsel %vm174, %v2679, %v2642
    %v2681 = vrot.slane %v2650, 6
    %v2682 = vsel %vm177, %v2681, %v2680
    %v2683 = vrot.slane %v2654, 5
    %v2684 = vsel %vm180, %v2683, %v2682
    %v2685 = vrot.slane %v2647, 7
    %v2686 = vsel %vm174, %v2685, %v2643
    %v2687 = vrot.slane %v2651, 6
    %v2688 = vsel %vm177, %v2687, %v2686
    %v2689 = vrot.slane %v2655, 5
    %v2690 = vsel %vm180, %v2689, %v2688
    %v2691 = vrot.slane %v2648, 7
    %v2692 = vsel %vm174, %v2691, %v2644
    %v2693 = vrot.slane %v2652, 6
    %v2694 = vsel %vm177, %v2693, %v2692
    %v2695 = vrot.slane %v2656, 5
    %v2696 = vsel %vm180, %v2695, %v2694
    %v2701 = vadd.f32 %v2621, %v2678
    %v2702 = vadd.f32 %v2622, %v2684
    %v2703 = vadd.f32 %v2623, %v2690
    %v2704 = vadd.f32 %v2624, %v2696
    %2705 = vset.pattern.permute.xlu0 2
    %2706 = vperm.xlu0 %2705, %v2537
    %v2707 = vpop.permute.xlu0 %2706
    %2709 = vset.pattern.permute.xlu0 2
    %2710 = vperm.xlu0 %2709, %v2538
    %v2711 = vpop.permute.xlu0 %2710
    %2713 = vset.pattern.permute.xlu0 2
    %2714 = vperm.xlu0 %2713, %v2539
    %v2715 = vpop.permute.xlu0 %2714
    %2717 = vset.pattern.permute.xlu0 2
    %2718 = vperm.xlu0 %2717, %v2540
    %v2719 = vpop.permute.xlu0 %2718
    %v2721 = vmul.f32 %v2707, %v363
    %v2722 = vmul.f32 %v2707, %v367
    %v2723 = vmul.f32 %v2707, %v371
    %v2724 = vmul.f32 %v2707, %v375
    %v2725 = vmul.f32 %v2711, %v363
    %v2726 = vmul.f32 %v2711, %v367
    %v2727 = vmul.f32 %v2711, %v371
    %v2728 = vmul.f32 %v2711, %v375
    %v2729 = vmul.f32 %v2715, %v363
    %v2730 = vmul.f32 %v2715, %v367
    %v2731 = vmul.f32 %v2715, %v371
    %v2732 = vmul.f32 %v2715, %v375
    %v2733 = vmul.f32 %v2719, %v363
    %v2734 = vmul.f32 %v2719, %v367
    %v2735 = vmul.f32 %v2719, %v371
    %v2736 = vmul.f32 %v2719, %v375
    %v2753 = vrot.slane %v2725, 7
    %v2754 = vsel %vm174, %v2753, %v2721
    %v2755 = vrot.slane %v2729, 6
    %v2756 = vsel %vm177, %v2755, %v2754
    %v2757 = vrot.slane %v2733, 5
    %v2758 = vsel %vm180, %v2757, %v2756
    %v2759 = vrot.slane %v2726, 7
    %v2760 = vsel %vm174, %v2759, %v2722
    %v2761 = vrot.slane %v2730, 6
    %v2762 = vsel %vm177, %v2761, %v2760
    %v2763 = vrot.slane %v2734, 5
    %v2764 = vsel %vm180, %v2763, %v2762
    %v2765 = vrot.slane %v2727, 7
    %v2766 = vsel %vm174, %v2765, %v2723
    %v2767 = vrot.slane %v2731, 6
    %v2768 = vsel %vm177, %v2767, %v2766
    %v2769 = vrot.slane %v2735, 5
    %v2770 = vsel %vm180, %v2769, %v2768
    %v2771 = vrot.slane %v2728, 7
    %v2772 = vsel %vm174, %v2771, %v2724
    %v2773 = vrot.slane %v2732, 6
    %v2774 = vsel %vm177, %v2773, %v2772
    %v2775 = vrot.slane %v2736, 5
    %v2776 = vsel %vm180, %v2775, %v2774
    %v2781 = vadd.f32 %v2701, %v2758
    %v2782 = vadd.f32 %v2702, %v2764
    %v2783 = vadd.f32 %v2703, %v2770
    %v2784 = vadd.f32 %v2704, %v2776
    %v2785 = vpack.c.bf16 %v2536, %v2536
    %2786 = vmatprep.subr.bf16.mxu0 %v569
    %2787 = vmatpush1.bf16.msra.mxu0 %v568
    %2788 = vmatprep.subr.bf16.mxu0 %v573
    %2789 = vmatpush1.bf16.msra.mxu0 %v572
    %2790 = vmatprep.subr.bf16.mxu0 %v577
    %2791 = vmatpush1.bf16.msra.mxu0 %v576
    %2792 = vmatprep.subr.bf16.mxu0 %v581
    %2793 = vmatpush1.bf16.msra.mxu0 %v580
    %2794 = vmatprep.subr.bf16.mxu0 %v585
    %2795 = vmatpush1.bf16.msra.mxu0 %v584
    %2796 = vmatprep.subr.bf16.mxu0 %v589
    %2797 = vmatpush1.bf16.msra.mxu0 %v588
    %2798 = vmatprep.subr.bf16.mxu0 %v593
    %2799 = vmatpush1.bf16.msra.mxu0 %v592
    %2800 = vmatprep.subr.bf16.mxu0 %v597
    %2801 = vmatpush1.bf16.msra.mxu0 %v596
    %2802 = vmatprep.subr.bf16.mxu0 0
    %2803 = vmatpush1.bf16.msra.mxu0 0
    %2804 = vmatprep.subr.bf16.mxu0 0
    %2805 = vmatpush1.bf16.msra.mxu0 0
    %2806 = vmatprep.subr.bf16.mxu0 0
    %2807 = vmatpush1.bf16.msra.mxu0 0
    %2808 = vmatprep.subr.bf16.mxu0 0
    %2809 = vmatpush1.bf16.msra.mxu0 0
    %2810 = vmatprep.subr.bf16.mxu0 0
    %2811 = vmatpush1.bf16.msra.mxu0 0
    %2812 = vmatprep.subr.bf16.mxu0 0
    %2813 = vmatpush1.bf16.msra.mxu0 0
    %2814 = vmatprep.subr.bf16.mxu0 0
    %2815 = vmatpush1.bf16.msra.mxu0 0
    %2816 = vmatprep.subr.bf16.mxu0 0
    %2817 = vmatpush1.bf16.msra.mxu0 0
    %2818 = vmatprep.mubr.bf16.mxu0 0
    %2819 = vmatmul.mubr.bf16.gmra.mrb[0].mxu0 %v2785
    %v2820 = vpop.f32.mrb[0].mxu0
    %v2821 = vadd.f32 0.0, %v2820
    %v2822 = vpop.f32.mrb[0].mxu0
    %v2823 = vadd.f32 0.0, %v2822
    %v2824 = vpop.f32.mrb[0].mxu0
    %v2825 = vpop.f32.mrb[0].mxu0
    %2826 = vdwg.mxu0
    %2827 = vmatprep.subr.bf16.mxu0 %v571
    %2828 = vmatpush1.bf16.msra.mxu0 %v570
    %2829 = vmatprep.subr.bf16.mxu0 %v575
    %2830 = vmatpush1.bf16.msra.mxu0 %v574
    %2831 = vmatprep.subr.bf16.mxu0 %v579
    %2832 = vmatpush1.bf16.msra.mxu0 %v578
    %2833 = vmatprep.subr.bf16.mxu0 %v583
    %2834 = vmatpush1.bf16.msra.mxu0 %v582
    %2835 = vmatprep.subr.bf16.mxu0 %v587
    %2836 = vmatpush1.bf16.msra.mxu0 %v586
    %2837 = vmatprep.subr.bf16.mxu0 %v591
    %2838 = vmatpush1.bf16.msra.mxu0 %v590
    %2839 = vmatprep.subr.bf16.mxu0 %v595
    %2840 = vmatpush1.bf16.msra.mxu0 %v594
    %2841 = vmatprep.subr.bf16.mxu0 %v599
    %2842 = vmatpush1.bf16.msra.mxu0 %v598
    %2843 = vmatprep.subr.bf16.mxu0 0
    %2844 = vmatpush1.bf16.msra.mxu0 0
    %2845 = vmatprep.subr.bf16.mxu0 0
    %2846 = vmatpush1.bf16.msra.mxu0 0
    %2847 = vmatprep.subr.bf16.mxu0 0
    %2848 = vmatpush1.bf16.msra.mxu0 0
    %2849 = vmatprep.subr.bf16.mxu0 0
    %2850 = vmatpush1.bf16.msra.mxu0 0
    %2851 = vmatprep.subr.bf16.mxu0 0
    %2852 = vmatpush1.bf16.msra.mxu0 0
    %2853 = vmatprep.subr.bf16.mxu0 0
    %2854 = vmatpush1.bf16.msra.mxu0 0
    %2855 = vmatprep.subr.bf16.mxu0 0
    %2856 = vmatpush1.bf16.msra.mxu0 0
    %2857 = vmatprep.subr.bf16.mxu0 0
    %2858 = vmatpush1.bf16.msra.mxu0 0
    %2859 = vmatprep.mubr.bf16.mxu0 0
    %2860 = vmatmul.mubr.bf16.gmra.mrb[0].mxu0 %v2785
    %v2861 = vpop.f32.mrb[0].mxu0
    %v2862 = vadd.f32 0.0, %v2861
    %v2863 = vpop.f32.mrb[0].mxu0
    %v2864 = vadd.f32 0.0, %v2863
    %v2865 = vpop.f32.mrb[0].mxu0
    %v2866 = vpop.f32.mrb[0].mxu0
    %2867 = vdwg.mxu0
    %v2868 = vadd.f32 %v2781, %v2821
    %v2869 = vadd.f32 %v2782, %v2823
    %v2870 = vadd.f32 %v2783, %v2862
    %v2871 = vadd.f32 %v2784, %v2864
    %v2872 = vxor.u32 %v2868, 2147483648
    %v2873 = vmul.f32 %v2872, 1.442695
    %v2874 = vpow.pop %v2873
    %v2875 = vadd.f32 %v2874, 1.0
    %v2876 = vrcp.pop %v2875
    %v2877 = vmul.f32 1.0, %v2876
    %v2878 = vxor.u32 %v2869, 2147483648
    %v2879 = vmul.f32 %v2878, 1.442695
    %v2880 = vpow.pop %v2879
    %v2881 = vadd.f32 %v2880, 1.0
    %v2882 = vrcp.pop %v2881
    %v2883 = vmul.f32 1.0, %v2882
    %v2884 = vtanh.pop %v2870
    %v2885 = vxor.u32 %v2871, 2147483648
    %v2886 = vmul.f32 %v2885, 1.442695
    %v2887 = vpow.pop %v2886
    %v2888 = vadd.f32 %v2887, 1.0
    %v2889 = vrcp.pop %v2888
    %v2890 = vmul.f32 1.0, %v2889
    %v2891 = vmul.f32 %v2883, %v2534
    %v2892 = vmul.f32 %v2877, %v2884
    %v2893 = vadd.f32 %v2891, %v2892
    %v2894 = vtanh.pop %v2893
    %v2895 = vmul.f32 %v2890, %v2894
    %v2896 = vld [vmem:[%s0 + $0x7] sm:$0x1]
    %v2897 = vld [vmem:[%s0 + $0xf] sm:$0x1]
    %v2898 = vld [vmem:[%s0 + $0x17] sm:$0x1]
    %v2899 = vld [vmem:[%s0 + $0x1f] sm:$0x1]
    %2901 = vset.pattern.permute.xlu0 0
    %2902 = vperm.xlu0 %2901, %v2896
    %v2903 = vpop.permute.xlu0 %2902
    %2906 = vset.pattern.permute.xlu0 0
    %2907 = vperm.xlu0 %2906, %v2897
    %v2908 = vpop.permute.xlu0 %2907
    %2911 = vset.pattern.permute.xlu0 0
    %2912 = vperm.xlu0 %2911, %v2898
    %v2913 = vpop.permute.xlu0 %2912
    %2916 = vset.pattern.permute.xlu0 0
    %2917 = vperm.xlu0 %2916, %v2899
    %v2918 = vpop.permute.xlu0 %2917
    %v2920 = vmul.f32 %v2903, %v107
    %v2921 = vmul.f32 %v2903, %v111
    %v2922 = vmul.f32 %v2903, %v115
    %v2923 = vmul.f32 %v2903, %v119
    %v2924 = vmul.f32 %v2908, %v107
    %v2925 = vmul.f32 %v2908, %v111
    %v2926 = vmul.f32 %v2908, %v115
    %v2927 = vmul.f32 %v2908, %v119
    %v2928 = vmul.f32 %v2913, %v107
    %v2929 = vmul.f32 %v2913, %v111
    %v2930 = vmul.f32 %v2913, %v115
    %v2931 = vmul.f32 %v2913, %v119
    %v2932 = vmul.f32 %v2918, %v107
    %v2933 = vmul.f32 %v2918, %v111
    %v2934 = vmul.f32 %v2918, %v115
    %v2935 = vmul.f32 %v2918, %v119
    %v2952 = vrot.slane %v2924, 7
    %v2953 = vsel %vm174, %v2952, %v2920
    %v2954 = vrot.slane %v2928, 6
    %v2955 = vsel %vm177, %v2954, %v2953
    %v2956 = vrot.slane %v2932, 5
    %v2957 = vsel %vm180, %v2956, %v2955
    %v2958 = vrot.slane %v2925, 7
    %v2959 = vsel %vm174, %v2958, %v2921
    %v2960 = vrot.slane %v2929, 6
    %v2961 = vsel %vm177, %v2960, %v2959
    %v2962 = vrot.slane %v2933, 5
    %v2963 = vsel %vm180, %v2962, %v2961
    %v2964 = vrot.slane %v2926, 7
    %v2965 = vsel %vm174, %v2964, %v2922
    %v2966 = vrot.slane %v2930, 6
    %v2967 = vsel %vm177, %v2966, %v2965
    %v2968 = vrot.slane %v2934, 5
    %v2969 = vsel %vm180, %v2968, %v2967
    %v2970 = vrot.slane %v2927, 7
    %v2971 = vsel %vm174, %v2970, %v2923
    %v2972 = vrot.slane %v2931, 6
    %v2973 = vsel %vm177, %v2972, %v2971
    %v2974 = vrot.slane %v2935, 5
    %v2975 = vsel %vm180, %v2974, %v2973
    %v2980 = vadd.f32 %v140, %v2957
    %v2981 = vadd.f32 %v144, %v2963
    %v2982 = vadd.f32 %v148, %v2969
    %v2983 = vadd.f32 %v152, %v2975
    %2984 = vset.pattern.permute.xlu0 1
    %2985 = vperm.xlu0 %2984, %v2896
    %v2986 = vpop.permute.xlu0 %2985
    %2988 = vset.pattern.permute.xlu0 1
    %2989 = vperm.xlu0 %2988, %v2897
    %v2990 = vpop.permute.xlu0 %2989
    %2992 = vset.pattern.permute.xlu0 1
    %2993 = vperm.xlu0 %2992, %v2898
    %v2994 = vpop.permute.xlu0 %2993
    %2996 = vset.pattern.permute.xlu0 1
    %2997 = vperm.xlu0 %2996, %v2899
    %v2998 = vpop.permute.xlu0 %2997
    %v3000 = vmul.f32 %v2986, %v247
    %v3001 = vmul.f32 %v2986, %v251
    %v3002 = vmul.f32 %v2986, %v255
    %v3003 = vmul.f32 %v2986, %v259
    %v3004 = vmul.f32 %v2990, %v247
    %v3005 = vmul.f32 %v2990, %v251
    %v3006 = vmul.f32 %v2990, %v255
    %v3007 = vmul.f32 %v2990, %v259
    %v3008 = vmul.f32 %v2994, %v247
    %v3009 = vmul.f32 %v2994, %v251
    %v3010 = vmul.f32 %v2994, %v255
    %v3011 = vmul.f32 %v2994, %v259
    %v3012 = vmul.f32 %v2998, %v247
    %v3013 = vmul.f32 %v2998, %v251
    %v3014 = vmul.f32 %v2998, %v255
    %v3015 = vmul.f32 %v2998, %v259
    %v3032 = vrot.slane %v3004, 7
    %v3033 = vsel %vm174, %v3032, %v3000
    %v3034 = vrot.slane %v3008, 6
    %v3035 = vsel %vm177, %v3034, %v3033
    %v3036 = vrot.slane %v3012, 5
    %v3037 = vsel %vm180, %v3036, %v3035
    %v3038 = vrot.slane %v3005, 7
    %v3039 = vsel %vm174, %v3038, %v3001
    %v3040 = vrot.slane %v3009, 6
    %v3041 = vsel %vm177, %v3040, %v3039
    %v3042 = vrot.slane %v3013, 5
    %v3043 = vsel %vm180, %v3042, %v3041
    %v3044 = vrot.slane %v3006, 7
    %v3045 = vsel %vm174, %v3044, %v3002
    %v3046 = vrot.slane %v3010, 6
    %v3047 = vsel %vm177, %v3046, %v3045
    %v3048 = vrot.slane %v3014, 5
    %v3049 = vsel %vm180, %v3048, %v3047
    %v3050 = vrot.slane %v3007, 7
    %v3051 = vsel %vm174, %v3050, %v3003
    %v3052 = vrot.slane %v3011, 6
    %v3053 = vsel %vm177, %v3052, %v3051
    %v3054 = vrot.slane %v3015, 5
    %v3055 = vsel %vm180, %v3054, %v3053
    %v3060 = vadd.f32 %v2980, %v3037
    %v3061 = vadd.f32 %v2981, %v3043
    %v3062 = vadd.f32 %v2982, %v3049
    %v3063 = vadd.f32 %v2983, %v3055
    %3064 = vset.pattern.permute.xlu0 2
    %3065 = vperm.xlu0 %3064, %v2896
    %v3066 = vpop.permute.xlu0 %3065
    %3068 = vset.pattern.permute.xlu0 2
    %3069 = vperm.xlu0 %3068, %v2897
    %v3070 = vpop.permute.xlu0 %3069
    %3072 = vset.pattern.permute.xlu0 2
    %3073 = vperm.xlu0 %3072, %v2898
    %v3074 = vpop.permute.xlu0 %3073
    %3076 = vset.pattern.permute.xlu0 2
    %3077 = vperm.xlu0 %3076, %v2899
    %v3078 = vpop.permute.xlu0 %3077
    %v3080 = vmul.f32 %v3066, %v363
    %v3081 = vmul.f32 %v3066, %v367
    %v3082 = vmul.f32 %v3066, %v371
    %v3083 = vmul.f32 %v3066, %v375
    %v3084 = vmul.f32 %v3070, %v363
    %v3085 = vmul.f32 %v3070, %v367
    %v3086 = vmul.f32 %v3070, %v371
    %v3087 = vmul.f32 %v3070, %v375
    %v3088 = vmul.f32 %v3074, %v363
    %v3089 = vmul.f32 %v3074, %v367
    %v3090 = vmul.f32 %v3074, %v371
    %v3091 = vmul.f32 %v3074, %v375
    %v3092 = vmul.f32 %v3078, %v363
    %v3093 = vmul.f32 %v3078, %v367
    %v3094 = vmul.f32 %v3078, %v371
    %v3095 = vmul.f32 %v3078, %v375
    %v3112 = vrot.slane %v3084, 7
    %v3113 = vsel %vm174, %v3112, %v3080
    %v3114 = vrot.slane %v3088, 6
    %v3115 = vsel %vm177, %v3114, %v3113
    %v3116 = vrot.slane %v3092, 5
    %v3117 = vsel %vm180, %v3116, %v3115
    %v3118 = vrot.slane %v3085, 7
    %v3119 = vsel %vm174, %v3118, %v3081
    %v3120 = vrot.slane %v3089, 6
    %v3121 = vsel %vm177, %v3120, %v3119
    %v3122 = vrot.slane %v3093, 5
    %v3123 = vsel %vm180, %v3122, %v3121
    %v3124 = vrot.slane %v3086, 7
    %v3125 = vsel %vm174, %v3124, %v3082
    %v3126 = vrot.slane %v3090, 6
    %v3127 = vsel %vm177, %v3126, %v3125
    %v3128 = vrot.slane %v3094, 5
    %v3129 = vsel %vm180, %v3128, %v3127
    %v3130 = vrot.slane %v3087, 7
    %v3131 = vsel %vm174, %v3130, %v3083
    %v3132 = vrot.slane %v3091, 6
    %v3133 = vsel %vm177, %v3132, %v3131
    %v3134 = vrot.slane %v3095, 5
    %v3135 = vsel %vm180, %v3134, %v3133
    %v3140 = vadd.f32 %v3060, %v3117
    %v3141 = vadd.f32 %v3061, %v3123
    %v3142 = vadd.f32 %v3062, %v3129
    %v3143 = vadd.f32 %v3063, %v3135
    %v3144 = vpack.c.bf16 %v2895, %v2895
    %3145 = vmatprep.subr.bf16.mxu0 %v569
    %3146 = vmatpush1.bf16.msra.mxu0 %v568
    %3147 = vmatprep.subr.bf16.mxu0 %v573
    %3148 = vmatpush1.bf16.msra.mxu0 %v572
    %3149 = vmatprep.subr.bf16.mxu0 %v577
    %3150 = vmatpush1.bf16.msra.mxu0 %v576
    %3151 = vmatprep.subr.bf16.mxu0 %v581
    %3152 = vmatpush1.bf16.msra.mxu0 %v580
    %3153 = vmatprep.subr.bf16.mxu0 %v585
    %3154 = vmatpush1.bf16.msra.mxu0 %v584
    %3155 = vmatprep.subr.bf16.mxu0 %v589
    %3156 = vmatpush1.bf16.msra.mxu0 %v588
    %3157 = vmatprep.subr.bf16.mxu0 %v593
    %3158 = vmatpush1.bf16.msra.mxu0 %v592
    %3159 = vmatprep.subr.bf16.mxu0 %v597
    %3160 = vmatpush1.bf16.msra.mxu0 %v596
    %3161 = vmatprep.subr.bf16.mxu0 0
    %3162 = vmatpush1.bf16.msra.mxu0 0
    %3163 = vmatprep.subr.bf16.mxu0 0
    %3164 = vmatpush1.bf16.msra.mxu0 0
    %3165 = vmatprep.subr.bf16.mxu0 0
    %3166 = vmatpush1.bf16.msra.mxu0 0
    %3167 = vmatprep.subr.bf16.mxu0 0
    %3168 = vmatpush1.bf16.msra.mxu0 0
    %3169 = vmatprep.subr.bf16.mxu0 0
    %3170 = vmatpush1.bf16.msra.mxu0 0
    %3171 = vmatprep.subr.bf16.mxu0 0
    %3172 = vmatpush1.bf16.msra.mxu0 0
    %3173 = vmatprep.subr.bf16.mxu0 0
    %3174 = vmatpush1.bf16.msra.mxu0 0
    %3175 = vmatprep.subr.bf16.mxu0 0
    %3176 = vmatpush1.bf16.msra.mxu0 0
    %3177 = vmatprep.mubr.bf16.mxu0 0
    %3178 = vmatmul.mubr.bf16.gmra.mrb[0].mxu0 %v3144
    %v3179 = vpop.f32.mrb[0].mxu0
    %v3180 = vadd.f32 0.0, %v3179
    %v3181 = vpop.f32.mrb[0].mxu0
    %v3182 = vadd.f32 0.0, %v3181
    %v3183 = vpop.f32.mrb[0].mxu0
    %v3184 = vpop.f32.mrb[0].mxu0
    %3185 = vdwg.mxu0
    %3186 = vmatprep.subr.bf16.mxu0 %v571
    %3187 = vmatpush1.bf16.msra.mxu0 %v570
    %3188 = vmatprep.subr.bf16.mxu0 %v575
    %3189 = vmatpush1.bf16.msra.mxu0 %v574
    %3190 = vmatprep.subr.bf16.mxu0 %v579
    %3191 = vmatpush1.bf16.msra.mxu0 %v578
    %3192 = vmatprep.subr.bf16.mxu0 %v583
    %3193 = vmatpush1.bf16.msra.mxu0 %v582
    %3194 = vmatprep.subr.bf16.mxu0 %v587
    %3195 = vmatpush1.bf16.msra.mxu0 %v586
    %3196 = vmatprep.subr.bf16.mxu0 %v591
    %3197 = vmatpush1.bf16.msra.mxu0 %v590
    %3198 = vmatprep.subr.bf16.mxu0 %v595
    %3199 = vmatpush1.bf16.msra.mxu0 %v594
    %3200 = vmatprep.subr.bf16.mxu0 %v599
    %3201 = vmatpush1.bf16.msra.mxu0 %v598
    %3202 = vmatprep.subr.bf16.mxu0 0
    %3203 = vmatpush1.bf16.msra.mxu0 0
    %3204 = vmatprep.subr.bf16.mxu0 0
    %3205 = vmatpush1.bf16.msra.mxu0 0
    %3206 = vmatprep.subr.bf16.mxu0 0
    %3207 = vmatpush1.bf16.msra.mxu0 0
    %3208 = vmatprep.subr.bf16.mxu0 0
    %3209 = vmatpush1.bf16.msra.mxu0 0
    %3210 = vmatprep.subr.bf16.mxu0 0
    %3211 = vmatpush1.bf16.msra.mxu0 0
    %3212 = vmatprep.subr.bf16.mxu0 0
    %3213 = vmatpush1.bf16.msra.mxu0 0
    %3214 = vmatprep.subr.bf16.mxu0 0
    %3215 = vmatpush1.bf16.msra.mxu0 0
    %3216 = vmatprep.subr.bf16.mxu0 0
    %3217 = vmatpush1.bf16.msra.mxu0 0
    %3218 = vmatprep.mubr.bf16.mxu0 0
    %3219 = vmatmul.mubr.bf16.gmra.mrb[0].mxu0 %v3144
    %v3220 = vpop.f32.mrb[0].mxu0
    %v3221 = vadd.f32 0.0, %v3220
    %v3222 = vpop.f32.mrb[0].mxu0
    %v3223 = vadd.f32 0.0, %v3222
    %v3224 = vpop.f32.mrb[0].mxu0
    %v3225 = vpop.f32.mrb[0].mxu0
    %3226 = vdwg.mxu0
    %v3227 = vadd.f32 %v3140, %v3180
    %v3228 = vadd.f32 %v3141, %v3182
    %v3229 = vadd.f32 %v3142, %v3221
    %v3230 = vadd.f32 %v3143, %v3223
    %v3231 = vxor.u32 %v3227, 2147483648
    %v3232 = vmul.f32 %v3231, 1.442695
    %v3233 = vpow.pop %v3232
    %v3234 = vadd.f32 %v3233, 1.0
    %v3235 = vrcp.pop %v3234
    %v3236 = vmul.f32 1.0, %v3235
    %v3237 = vxor.u32 %v3228, 2147483648
    %v3238 = vmul.f32 %v3237, 1.442695
    %v3239 = vpow.pop %v3238
    %v3240 = vadd.f32 %v3239, 1.0
    %v3241 = vrcp.pop %v3240
    %v3242 = vmul.f32 1.0, %v3241
    %v3243 = vtanh.pop %v3229
    %v3244 = vxor.u32 %v3230, 2147483648
    %v3245 = vmul.f32 %v3244, 1.442695
    %v3246 = vpow.pop %v3245
    %v3247 = vadd.f32 %v3246, 1.0
    %v3248 = vrcp.pop %v3247
    %v3249 = vmul.f32 1.0, %v3248
    %v3250 = vmul.f32 %v3242, %v2893
    %v3251 = vmul.f32 %v3236, %v3243
    %v3252 = vadd.f32 %v3250, %v3251
    %v3253 = vtanh.pop %v3252
    %v3254 = vmul.f32 %v3249, %v3253
    %v3255 = vld [vmem:[#allocation4] sm:$0xff]
    %v3256 = vld [vmem:[#allocation4 + $0x8] sm:$0xff]
    %v3257 = vld [vmem:[#allocation4 + $0x10] sm:$0xff]
    %v3258 = vld [vmem:[#allocation4 + $0x18] sm:$0xff]
    %v3259 = vld [vmem:[#allocation4 + $0x20] sm:$0xff]
    %v3260 = vld [vmem:[#allocation4 + $0x28] sm:$0xff]
    %v3261 = vld [vmem:[#allocation4 + $0x30] sm:$0xff]
    %v3262 = vld [vmem:[#allocation4 + $0x38] sm:$0xff]
    %v3263 = vld [vmem:[#allocation4 + $0x40] sm:$0xff]
    %v3264 = vld [vmem:[#allocation4 + $0x48] sm:$0xff]
    %v3265 = vld [vmem:[#allocation4 + $0x50] sm:$0xff]
    %v3266 = vld [vmem:[#allocation4 + $0x58] sm:$0xff]
    %v3267 = vld [vmem:[#allocation4 + $0x60] sm:$0xff]
    %v3268 = vld [vmem:[#allocation4 + $0x68] sm:$0xff]
    %v3269 = vld [vmem:[#allocation4 + $0x70] sm:$0xff]
    %v3270 = vld [vmem:[#allocation4 + $0x78] sm:$0xff]
    %v3271 = vld [vmem:[#allocation4 + $0x80] sm:$0xff]
    %v3272 = vld [vmem:[#allocation4 + $0x88] sm:$0xff]
    %v3273 = vld [vmem:[#allocation4 + $0x90] sm:$0xff]
    %v3274 = vld [vmem:[#allocation4 + $0x98] sm:$0xff]
    %v3275 = vld [vmem:[#allocation4 + $0xa0] sm:$0xff]
    %v3276 = vld [vmem:[#allocation4 + $0xa8] sm:$0xff]
    %v3277 = vld [vmem:[#allocation4 + $0xb0] sm:$0xff]
    %v3278 = vld [vmem:[#allocation4 + $0xb8] sm:$0xff]
    %v3279 = vld [vmem:[#allocation4 + $0xc0] sm:$0xff]
    %v3280 = vld [vmem:[#allocation4 + $0xc8] sm:$0xff]
    %v3281 = vld [vmem:[#allocation4 + $0xd0] sm:$0xff]
    %v3282 = vld [vmem:[#allocation4 + $0xd8] sm:$0xff]
    %v3283 = vld [vmem:[#allocation4 + $0xe0] sm:$0xff]
    %v3284 = vld [vmem:[#allocation4 + $0xe8] sm:$0xff]
    %v3285 = vld [vmem:[#allocation4 + $0xf0] sm:$0xff]
    %v3286 = vld [vmem:[#allocation4 + $0xf8] sm:$0xff]
    %v3287 = vld [vmem:[#allocation4 + $0x100] sm:$0xff]
    %v3288 = vld [vmem:[#allocation4 + $0x108] sm:$0xff]
    %v3289 = vld [vmem:[#allocation4 + $0x110] sm:$0xff]
    %v3290 = vld [vmem:[#allocation4 + $0x118] sm:$0xff]
    %v3291 = vld [vmem:[#allocation4 + $0x120] sm:$0xff]
    %v3292 = vld [vmem:[#allocation4 + $0x128] sm:$0xff]
    %v3293 = vld [vmem:[#allocation4 + $0x130] sm:$0xff]
    %v3294 = vld [vmem:[#allocation4 + $0x138] sm:$0xff]
    %v3295 = vld [vmem:[#allocation4 + $0x140] sm:$0xff]
    %v3296 = vld [vmem:[#allocation4 + $0x148] sm:$0xff]
    %v3297 = vld [vmem:[#allocation4 + $0x150] sm:$0xff]
    %v3298 = vld [vmem:[#allocation4 + $0x158] sm:$0xff]
    %v3299 = vld [vmem:[#allocation4 + $0x160] sm:$0xff]
    %v3300 = vld [vmem:[#allocation4 + $0x168] sm:$0xff]
    %v3301 = vld [vmem:[#allocation4 + $0x170] sm:$0xff]
    %v3302 = vld [vmem:[#allocation4 + $0x178] sm:$0xff]
    %v3303 = vld [vmem:[#allocation4 + $0x180] sm:$0xff]
    %v3304 = vld [vmem:[#allocation4 + $0x188] sm:$0xff]
    %v3305 = vld [vmem:[#allocation4 + $0x190] sm:$0xff]
    %v3306 = vld [vmem:[#allocation4 + $0x198] sm:$0xff]
    %v3307 = vld [vmem:[#allocation4 + $0x1a0] sm:$0xff]
    %v3308 = vld [vmem:[#allocation4 + $0x1a8] sm:$0xff]
    %v3309 = vld [vmem:[#allocation4 + $0x1b0] sm:$0xff]
    %v3310 = vld [vmem:[#allocation4 + $0x1b8] sm:$0xff]
    %v3311 = vld [vmem:[#allocation4 + $0x1c0] sm:$0xff]
    %v3312 = vld [vmem:[#allocation4 + $0x1c8] sm:$0xff]
    %v3313 = vld [vmem:[#allocation4 + $0x1d0] sm:$0xff]
    %v3314 = vld [vmem:[#allocation4 + $0x1d8] sm:$0xff]
    %v3315 = vld [vmem:[#allocation4 + $0x1e0] sm:$0xff]
    %v3316 = vld [vmem:[#allocation4 + $0x1e8] sm:$0xff]
    %v3317 = vld [vmem:[#allocation4 + $0x1f0] sm:$0xff]
    %v3318 = vld [vmem:[#allocation4 + $0x1f8] sm:$0xff]
    %v3319 = vld [vmem:[%s5] sm:$0xf]
    %v3321 = vlaneseq
    %v3322 = vshrl.u32 %v3321, 7
    %v3323 = vsub.s32 0, %v3322
    %v3324 = vrot.slane %v3319, %v3323
    %v3325 = vlaneseq
    %v3326 = vshrl.u32 %v3325, 7
    %v3327 = vsub.s32 1, %v3326
    %v3328 = vrot.slane %v3319, %v3327
    %v3329 = vlaneseq
    %v3330 = vshrl.u32 %v3329, 7
    %v3331 = vsub.s32 2, %v3330
    %v3332 = vrot.slane %v3319, %v3331
    %v3333 = vlaneseq
    %v3334 = vshrl.u32 %v3333, 7
    %v3335 = vsub.s32 3, %v3334
    %v3336 = vrot.slane %v3319, %v3335
    %3341 = vmatprep.subr.mxu0 %v3256
    %3342 = vmatpush1.msra.mxu0 %v3255
    %3343 = vmatprep.subr.mxu0 %v3260
    %3344 = vmatpush1.msra.mxu0 %v3259
    %3345 = vmatprep.subr.mxu0 %v3264
    %3346 = vmatpush1.msra.mxu0 %v3263
    %3347 = vmatprep.subr.mxu0 %v3268
    %3348 = vmatpush1.msra.mxu0 %v3267
    %3349 = vmatprep.subr.mxu0 %v3272
    %3350 = vmatpush1.msra.mxu0 %v3271
    %3351 = vmatprep.subr.mxu0 %v3276
    %3352 = vmatpush1.msra.mxu0 %v3275
    %3353 = vmatprep.subr.mxu0 %v3280
    %3354 = vmatpush1.msra.mxu0 %v3279
    %3355 = vmatprep.subr.mxu0 %v3284
    %3356 = vmatpush1.msra.mxu0 %v3283
    %3357 = vmatprep.subr.mxu0 %v3288
    %3358 = vmatpush1.msra.mxu0 %v3287
    %3359 = vmatprep.subr.mxu0 %v3292
    %3360 = vmatpush1.msra.mxu0 %v3291
    %3361 = vmatprep.subr.mxu0 %v3296
    %3362 = vmatpush1.msra.mxu0 %v3295
    %3363 = vmatprep.subr.mxu0 %v3300
    %3364 = vmatpush1.msra.mxu0 %v3299
    %3365 = vmatprep.subr.mxu0 %v3304
    %3366 = vmatpush1.msra.mxu0 %v3303
    %3367 = vmatprep.subr.mxu0 %v3308
    %3368 = vmatpush1.msra.mxu0 %v3307
    %3369 = vmatprep.subr.mxu0 %v3312
    %3370 = vmatpush1.msra.mxu0 %v3311
    %3371 = vmatprep.subr.mxu0 %v3316
    %3372 = vmatpush1.msra.mxu0 %v3315
    %3373 = vmatprep.subr.mxu0 0.0
    %3374 = vmatpush1.msra.mxu0 0.0
    %3375 = vmatprep.subr.mxu0 0.0
    %3376 = vmatpush1.msra.mxu0 0.0
    %3377 = vmatprep.subr.mxu0 0.0
    %3378 = vmatpush1.msra.mxu0 0.0
    %3379 = vmatprep.subr.mxu0 0.0
    %3380 = vmatpush1.msra.mxu0 0.0
    %3381 = vmatprep.subr.mxu0 0.0
    %3382 = vmatpush1.msra.mxu0 0.0
    %3383 = vmatprep.subr.mxu0 0.0
    %3384 = vmatpush1.msra.mxu0 0.0
    %3385 = vmatprep.subr.mxu0 0.0
    %3386 = vmatpush1.msra.mxu0 0.0
    %3387 = vmatprep.subr.mxu0 0.0
    %3388 = vmatpush1.msra.mxu0 0.0
    %3389 = vmatprep.subr.mxu0 0.0
    %3390 = vmatpush1.msra.mxu0 0.0
    %3391 = vmatprep.subr.mxu0 0.0
    %3392 = vmatpush1.msra.mxu0 0.0
    %3393 = vmatprep.subr.mxu0 0.0
    %3394 = vmatpush1.msra.mxu0 0.0
    %3395 = vmatprep.subr.mxu0 0.0
    %3396 = vmatpush1.msra.mxu0 0.0
    %3397 = vmatprep.subr.mxu0 0.0
    %3398 = vmatpush1.msra.mxu0 0.0
    %3399 = vmatprep.subr.mxu0 0.0
    %3400 = vmatpush1.msra.mxu0 0.0
    %3401 = vmatprep.subr.mxu0 0.0
    %3402 = vmatpush1.msra.mxu0 0.0
    %3403 = vmatprep.subr.mxu0 0.0
    %3404 = vmatpush1.msra.mxu0 0.0
    %3405 = vmatprep.mubr.f32.mxu0 0.0
    %3406 = vmatmul.mubr.f32.gmra.mrb[0].mxu0 %v3254
    %v3407 = vpop.f32.mrb[0].mxu0
    %v3408 = vadd.f32 %v3324, %v3407
    %v3409 = vpop.f32.mrb[0].mxu0
    %v3410 = vadd.f32 %v3328, %v3409
    %3411 = vdwg.mxu0
    %3412 = vmatprep.subr.mxu0 %v3258
    %3413 = vmatpush1.msra.mxu0 %v3257
    %3414 = vmatprep.subr.mxu0 %v3262
    %3415 = vmatpush1.msra.mxu0 %v3261
    %3416 = vmatprep.subr.mxu0 %v3266
    %3417 = vmatpush1.msra.mxu0 %v3265
    %3418 = vmatprep.subr.mxu0 %v3270
    %3419 = vmatpush1.msra.mxu0 %v3269
    %3420 = vmatprep.subr.mxu0 %v3274
    %3421 = vmatpush1.msra.mxu0 %v3273
    %3422 = vmatprep.subr.mxu0 %v3278
    %3423 = vmatpush1.msra.mxu0 %v3277
    %3424 = vmatprep.subr.mxu0 %v3282
    %3425 = vmatpush1.msra.mxu0 %v3281
    %3426 = vmatprep.subr.mxu0 %v3286
    %3427 = vmatpush1.msra.mxu0 %v3285
    %3428 = vmatprep.subr.mxu0 %v3290
    %3429 = vmatpush1.msra.mxu0 %v3289
    %3430 = vmatprep.subr.mxu0 %v3294
    %3431 = vmatpush1.msra.mxu0 %v3293
    %3432 = vmatprep.subr.mxu0 %v3298
    %3433 = vmatpush1.msra.mxu0 %v3297
    %3434 = vmatprep.subr.mxu0 %v3302
    %3435 = vmatpush1.msra.mxu0 %v3301
    %3436 = vmatprep.subr.mxu0 %v3306
    %3437 = vmatpush1.msra.mxu0 %v3305
    %3438 = vmatprep.subr.mxu0 %v3310
    %3439 = vmatpush1.msra.mxu0 %v3309
    %3440 = vmatprep.subr.mxu0 %v3314
    %3441 = vmatpush1.msra.mxu0 %v3313
    %3442 = vmatprep.subr.mxu0 %v3318
    %3443 = vmatpush1.msra.mxu0 %v3317
    %3444 = vmatprep.subr.mxu0 0.0
    %3445 = vmatpush1.msra.mxu0 0.0
    %3446 = vmatprep.subr.mxu0 0.0
    %3447 = vmatpush1.msra.mxu0 0.0
    %3448 = vmatprep.subr.mxu0 0.0
    %3449 = vmatpush1.msra.mxu0 0.0
    %3450 = vmatprep.subr.mxu0 0.0
    %3451 = vmatpush1.msra.mxu0 0.0
    %3452 = vmatprep.subr.mxu0 0.0
    %3453 = vmatpush1.msra.mxu0 0.0
    %3454 = vmatprep.subr.mxu0 0.0
    %3455 = vmatpush1.msra.mxu0 0.0
    %3456 = vmatprep.subr.mxu0 0.0
    %3457 = vmatpush1.msra.mxu0 0.0
    %3458 = vmatprep.subr.mxu0 0.0
    %3459 = vmatpush1.msra.mxu0 0.0
    %3460 = vmatprep.subr.mxu0 0.0
    %3461 = vmatpush1.msra.mxu0 0.0
    %3462 = vmatprep.subr.mxu0 0.0
    %3463 = vmatpush1.msra.mxu0 0.0
    %3464 = vmatprep.subr.mxu0 0.0
    %3465 = vmatpush1.msra.mxu0 0.0
    %3466 = vmatprep.subr.mxu0 0.0
    %3467 = vmatpush1.msra.mxu0 0.0
    %3468 = vmatprep.subr.mxu0 0.0
    %3469 = vmatpush1.msra.mxu0 0.0
    %3470 = vmatprep.subr.mxu0 0.0
    %3471 = vmatpush1.msra.mxu0 0.0
    %3472 = vmatprep.subr.mxu0 0.0
    %3473 = vmatpush1.msra.mxu0 0.0
    %3474 = vmatprep.subr.mxu0 0.0
    %3475 = vmatpush1.msra.mxu0 0.0
    %3476 = vmatprep.mubr.f32.mxu0 0.0
    %3477 = vmatmul.mubr.f32.gmra.mrb[0].mxu0 %v3254
    %v3478 = vpop.f32.mrb[0].mxu0
    %v3479 = vadd.f32 %v3332, %v3478
    %v3480 = vpop.f32.mrb[0].mxu0
    %v3481 = vadd.f32 %v3336, %v3480
    %3482 = vdwg.mxu0
    %v3483 = vld [vmem:[%s6] sm:$0x77]
    %v3484 = vld [vmem:[%s6 + $0x8] sm:$0x77]
    %v3487 = vlaneseq
    %v3488 = vshrl.u32 %v3487, 7
    %v3489 = vsub.s32 0, %v3488
    %v3490 = vrot.slane %v3483, %v3489
    %v3491 = vlaneseq
    %v3492 = vshrl.u32 %v3491, 7
    %v3493 = vsub.s32 4, %v3492
    %v3494 = vrot.slane %v3483, %v3493
    %v3495 = vlaneseq
    %v3496 = vshrl.u32 %v3495, 7
    %v3497 = vsub.s32 0, %v3496
    %v3498 = vrot.slane %v3484, %v3497
    %v3499 = vlaneseq
    %v3500 = vshrl.u32 %v3499, 7
    %v3501 = vsub.s32 4, %v3500
    %v3502 = vrot.slane %v3484, %v3501
    %v3507 = vlaneseq
    %v3508 = vshrl.u32 %v3507, 7
    %v3509 = vsub.s32 0, %v3508
    %v3510 = vrot.slane %v3490, %v3509
    %v3511 = vlaneseq
    %v3512 = vshrl.u32 %v3511, 7
    %v3513 = vsub.s32 0, %v3512
    %v3514 = vrot.slane %v3494, %v3513
    %v3515 = vlaneseq
    %v3516 = vshrl.u32 %v3515, 7
    %v3517 = vsub.s32 0, %v3516
    %v3518 = vrot.slane %v3498, %v3517
    %v3519 = vlaneseq
    %v3520 = vshrl.u32 %v3519, 7
    %v3521 = vsub.s32 0, %v3520
    %v3522 = vrot.slane %v3502, %v3521
    %v3523 = vmul.f32 %v3510, 0.0
    %v3524 = vmul.f32 %v3514, 0.0
    %v3525 = vmul.f32 %v3518, 0.0
    %v3526 = vmul.f32 %v3522, 0.0
    %v3527 = vadd.f32 %v3408, %v3523
    %v3528 = vadd.f32 %v3410, %v3524
    %v3529 = vadd.f32 %v3479, %v3525
    %v3530 = vadd.f32 %v3481, %v3526
    %v3531 = vlaneseq
    %v3532 = vshrl.u32 %v3531, 7
    %v3533 = vsub.s32 1, %v3532
    %v3534 = vrot.slane %v3483, %v3533
    %v3535 = vlaneseq
    %v3536 = vshrl.u32 %v3535, 7
    %v3537 = vsub.s32 5, %v3536
    %v3538 = vrot.slane %v3483, %v3537
    %v3539 = vlaneseq
    %v3540 = vshrl.u32 %v3539, 7
    %v3541 = vsub.s32 1, %v3540
    %v3542 = vrot.slane %v3484, %v3541
    %v3543 = vlaneseq
    %v3544 = vshrl.u32 %v3543, 7
    %v3545 = vsub.s32 5, %v3544
    %v3546 = vrot.slane %v3484, %v3545
    %v3551 = vlaneseq
    %v3552 = vshrl.u32 %v3551, 7
    %v3553 = vsub.s32 1, %v3552
    %v3554 = vrot.slane %v3534, %v3553
    %v3555 = vlaneseq
    %v3556 = vshrl.u32 %v3555, 7
    %v3557 = vsub.s32 1, %v3556
    %v3558 = vrot.slane %v3538, %v3557
    %v3559 = vlaneseq
    %v3560 = vshrl.u32 %v3559, 7
    %v3561 = vsub.s32 1, %v3560
    %v3562 = vrot.slane %v3542, %v3561
    %v3563 = vlaneseq
    %v3564 = vshrl.u32 %v3563, 7
    %v3565 = vsub.s32 1, %v3564
    %v3566 = vrot.slane %v3546, %v3565
    %v3567 = vmul.f32 %v3554, 0.0
    %v3568 = vmul.f32 %v3558, 0.0
    %v3569 = vmul.f32 %v3562, 0.0
    %v3570 = vmul.f32 %v3566, 0.0
    %v3571 = vadd.f32 %v3527, %v3567
    %v3572 = vadd.f32 %v3528, %v3568
    %v3573 = vadd.f32 %v3529, %v3569
    %v3574 = vadd.f32 %v3530, %v3570
    %v3575 = vlaneseq
    %v3576 = vshrl.u32 %v3575, 7
    %v3577 = vsub.s32 2, %v3576
    %v3578 = vrot.slane %v3483, %v3577
    %v3579 = vlaneseq
    %v3580 = vshrl.u32 %v3579, 7
    %v3581 = vsub.s32 6, %v3580
    %v3582 = vrot.slane %v3483, %v3581
    %v3583 = vlaneseq
    %v3584 = vshrl.u32 %v3583, 7
    %v3585 = vsub.s32 2, %v3584
    %v3586 = vrot.slane %v3484, %v3585
    %v3587 = vlaneseq
    %v3588 = vshrl.u32 %v3587, 7
    %v3589 = vsub.s32 6, %v3588
    %v3590 = vrot.slane %v3484, %v3589
    %v3595 = vlaneseq
    %v3596 = vshrl.u32 %v3595, 7
    %v3597 = vsub.s32 2, %v3596
    %v3598 = vrot.slane %v3578, %v3597
    %v3599 = vlaneseq
    %v3600 = vshrl.u32 %v3599, 7
    %v3601 = vsub.s32 2, %v3600
    %v3602 = vrot.slane %v3582, %v3601
    %v3603 = vlaneseq
    %v3604 = vshrl.u32 %v3603, 7
    %v3605 = vsub.s32 2, %v3604
    %v3606 = vrot.slane %v3586, %v3605
    %v3607 = vlaneseq
    %v3608 = vshrl.u32 %v3607, 7
    %v3609 = vsub.s32 2, %v3608
    %v3610 = vrot.slane %v3590, %v3609
    %v3611 = vmul.f32 %v3598, 0.0
    %v3612 = vmul.f32 %v3602, 0.0
    %v3613 = vmul.f32 %v3606, 0.0
    %v3614 = vmul.f32 %v3610, 0.0
    %v3615 = vadd.f32 %v3571, %v3611
    %v3616 = vadd.f32 %v3572, %v3612
    %v3617 = vadd.f32 %v3573, %v3613
    %v3618 = vadd.f32 %v3574, %v3614
    %v3619 = vxor.u32 %v3615, 2147483648
    %v3620 = vmul.f32 %v3619, 1.442695
    %v3621 = vpow.pop %v3620
    %v3622 = vadd.f32 %v3621, 1.0
    %v3623 = vrcp.pop %v3622
    %v3624 = vmul.f32 1.0, %v3623
    %v3625 = vxor.u32 %v3616, 2147483648
    %v3626 = vmul.f32 %v3625, 1.442695
    %v3627 = vpow.pop %v3626
    %v3628 = vadd.f32 %v3627, 1.0
    %v3629 = vrcp.pop %v3628
    %v3630 = vmul.f32 1.0, %v3629
    %v3631 = vtanh.pop %v3617
    %v3632 = vxor.u32 %v3618, 2147483648
    %v3633 = vmul.f32 %v3632, 1.442695
    %v3634 = vpow.pop %v3633
    %v3635 = vadd.f32 %v3634, 1.0
    %v3636 = vrcp.pop %v3635
    %v3637 = vmul.f32 1.0, %v3636
    %v3638 = vmul.f32 %v3630, 0.0
    %v3639 = vmul.f32 %v3624, %v3631
    %v3640 = vadd.f32 %v3638, %v3639
    %v3641 = vtanh.pop %v3640
    %v3642 = vmul.f32 %v3637, %v3641
    %v3645 = vunpack.c.l.s4 1966171168
    %v3646 = vunpack.c.0.s8 %v3645
    %v3647 = vlaneseq
    %v3648 = vshrl.u32 %v3647, 7
    %v3649 = vsub.s32 %v3646, %v3648
    %v3650 = vrot.slane %v3642, %v3649
    %v3651 = vcombine.high %v3650, %v3650
    %v3653 = vunpack.c.l.s4 1966171168
    %v3654 = vunpack.c.0.s8 %v3653
    %v3655 = vlaneseq
    %v3656 = vshrl.u32 %v3655, 7
    %v3657 = vsub.s32 %v3654, %v3656
    %v3658 = vrot.slane %v3650, %v3657
    %v3660 = vunpack.c.l.s4 1966171168
    %v3661 = vunpack.c.0.s8 %v3660
    %v3662 = vlaneseq
    %v3663 = vshrl.u32 %v3662, 7
    %v3664 = vsub.s32 %v3661, %v3663
    %v3665 = vrot.slane %v3651, %v3664
    %v3666 = vcombine.high %v3658, %v3658
    %v3667 = vcombine.high %v3665, %v3665
    %3672 = vst [vmem:[%s7] sm:$0x1] %v3658
    %3673 = vst [vmem:[%s7 + $0x8] sm:$0x1] %v3665
    %3674 = vst [vmem:[%s7 + $0x10] sm:$0x1] %v3666
    %3675 = vst [vmem:[%s7 + $0x18] sm:$0x1] %v3667
    %3676 = vset.pattern.permute.xlu0 0
    %3677 = vperm.xlu0 %3676, %v3642
    %v3678 = vpop.permute.xlu0 %3677
    %v3680 = vmul.f32 %v3678, %v3510
    %v3681 = vmul.f32 %v3678, %v3514
    %v3682 = vmul.f32 %v3678, %v3518
    %v3683 = vmul.f32 %v3678, %v3522
    %v3684 = vadd.f32 %v3408, %v3680
    %v3685 = vadd.f32 %v3410, %v3681
    %v3686 = vadd.f32 %v3479, %v3682
    %v3687 = vadd.f32 %v3481, %v3683
    %3688 = vset.pattern.permute.xlu0 1
    %3689 = vperm.xlu0 %3688, %v3642
    %v3690 = vpop.permute.xlu0 %3689
    %v3692 = vmul.f32 %v3690, %v3554
    %v3693 = vmul.f32 %v3690, %v3558
    %v3694 = vmul.f32 %v3690, %v3562
    %v3695 = vmul.f32 %v3690, %v3566
    %v3696 = vadd.f32 %v3684, %v3692
    %v3697 = vadd.f32 %v3685, %v3693
    %v3698 = vadd.f32 %v3686, %v3694
    %v3699 = vadd.f32 %v3687, %v3695
    %3700 = vset.pattern.permute.xlu0 2
    %3701 = vperm.xlu0 %3700, %v3642
    %v3702 = vpop.permute.xlu0 %3701
    %v3704 = vmul.f32 %v3702, %v3598
    %v3705 = vmul.f32 %v3702, %v3602
    %v3706 = vmul.f32 %v3702, %v3606
    %v3707 = vmul.f32 %v3702, %v3610
    %v3708 = vadd.f32 %v3696, %v3704
    %v3709 = vadd.f32 %v3697, %v3705
    %v3710 = vadd.f32 %v3698, %v3706
    %v3711 = vadd.f32 %v3699, %v3707
    %v3712 = vxor.u32 %v3708, 2147483648
    %v3713 = vmul.f32 %v3712, 1.442695
    %v3714 = vpow.pop %v3713
    %v3715 = vadd.f32 %v3714, 1.0
    %v3716 = vrcp.pop %v3715
    %v3717 = vmul.f32 1.0, %v3716
    %v3718 = vxor.u32 %v3709, 2147483648
    %v3719 = vmul.f32 %v3718, 1.442695
    %v3720 = vpow.pop %v3719
    %v3721 = vadd.f32 %v3720, 1.0
    %v3722 = vrcp.pop %v3721
    %v3723 = vmul.f32 1.0, %v3722
    %v3724 = vtanh.pop %v3710
    %v3725 = vxor.u32 %v3711, 2147483648
    %v3726 = vmul.f32 %v3725, 1.442695
    %v3727 = vpow.pop %v3726
    %v3728 = vadd.f32 %v3727, 1.0
    %v3729 = vrcp.pop %v3728
    %v3730 = vmul.f32 1.0, %v3729
    %v3731 = vmul.f32 %v3723, %v3640
    %v3732 = vmul.f32 %v3717, %v3724
    %v3733 = vadd.f32 %v3731, %v3732
    %v3734 = vtanh.pop %v3733
    %v3735 = vmul.f32 %v3730, %v3734
    %v3738 = vunpack.c.l.s4 1966171168
    %v3739 = vunpack.c.0.s8 %v3738
    %v3740 = vlaneseq
    %v3741 = vshrl.u32 %v3740, 7
    %v3742 = vsub.s32 %v3739, %v3741
    %v3743 = vrot.slane %v3735, %v3742
    %v3744 = vcombine.high %v3743, %v3743
    %v3746 = vunpack.c.l.s4 1966171168
    %v3747 = vunpack.c.0.s8 %v3746
    %v3748 = vlaneseq
    %v3749 = vshrl.u32 %v3748, 7
    %v3750 = vsub.s32 %v3747, %v3749
    %v3751 = vrot.slane %v3743, %v3750
    %v3753 = vunpack.c.l.s4 1966171168
    %v3754 = vunpack.c.0.s8 %v3753
    %v3755 = vlaneseq
    %v3756 = vshrl.u32 %v3755, 7
    %v3757 = vsub.s32 %v3754, %v3756
    %v3758 = vrot.slane %v3744, %v3757
    %v3759 = vcombine.high %v3751, %v3751
    %v3760 = vcombine.high %v3758, %v3758
    %3765 = vst [vmem:[%s7 + $0x1] sm:$0x1] %v3751
    %3766 = vst [vmem:[%s7 + $0x9] sm:$0x1] %v3758
    %3767 = vst [vmem:[%s7 + $0x11] sm:$0x1] %v3759
    %3768 = vst [vmem:[%s7 + $0x19] sm:$0x1] %v3760
    %3769 = vset.pattern.permute.xlu0 0
    %3770 = vperm.xlu0 %3769, %v3735
    %v3771 = vpop.permute.xlu0 %3770
    %v3773 = vmul.f32 %v3771, %v3510
    %v3774 = vmul.f32 %v3771, %v3514
    %v3775 = vmul.f32 %v3771, %v3518
    %v3776 = vmul.f32 %v3771, %v3522
    %v3777 = vadd.f32 %v3408, %v3773
    %v3778 = vadd.f32 %v3410, %v3774
    %v3779 = vadd.f32 %v3479, %v3775
    %v3780 = vadd.f32 %v3481, %v3776
    %3781 = vset.pattern.permute.xlu0 1
    %3782 = vperm.xlu0 %3781, %v3735
    %v3783 = vpop.permute.xlu0 %3782
    %v3785 = vmul.f32 %v3783, %v3554
    %v3786 = vmul.f32 %v3783, %v3558
    %v3787 = vmul.f32 %v3783, %v3562
    %v3788 = vmul.f32 %v3783, %v3566
    %v3789 = vadd.f32 %v3777, %v3785
    %v3790 = vadd.f32 %v3778, %v3786
    %v3791 = vadd.f32 %v3779, %v3787
    %v3792 = vadd.f32 %v3780, %v3788
    %3793 = vset.pattern.permute.xlu0 2
    %3794 = vperm.xlu0 %3793, %v3735
    %v3795 = vpop.permute.xlu0 %3794
    %v3797 = vmul.f32 %v3795, %v3598
    %v3798 = vmul.f32 %v3795, %v3602
    %v3799 = vmul.f32 %v3795, %v3606
    %v3800 = vmul.f32 %v3795, %v3610
    %v3801 = vadd.f32 %v3789, %v3797
    %v3802 = vadd.f32 %v3790, %v3798
    %v3803 = vadd.f32 %v3791, %v3799
    %v3804 = vadd.f32 %v3792, %v3800
    %v3805 = vxor.u32 %v3801, 2147483648
    %v3806 = vmul.f32 %v3805, 1.442695
    %v3807 = vpow.pop %v3806
    %v3808 = vadd.f32 %v3807, 1.0
    %v3809 = vrcp.pop %v3808
    %v3810 = vmul.f32 1.0, %v3809
    %v3811 = vxor.u32 %v3802, 2147483648
    %v3812 = vmul.f32 %v3811, 1.442695
    %v3813 = vpow.pop %v3812
    %v3814 = vadd.f32 %v3813, 1.0
    %v3815 = vrcp.pop %v3814
    %v3816 = vmul.f32 1.0, %v3815
    %v3817 = vtanh.pop %v3803
    %v3818 = vxor.u32 %v3804, 2147483648
    %v3819 = vmul.f32 %v3818, 1.442695
    %v3820 = vpow.pop %v3819
    %v3821 = vadd.f32 %v3820, 1.0
    %v3822 = vrcp.pop %v3821
    %v3823 = vmul.f32 1.0, %v3822
    %v3824 = vmul.f32 %v3816, %v3733
    %v3825 = vmul.f32 %v3810, %v3817
    %v3826 = vadd.f32 %v3824, %v3825
    %v3827 = vtanh.pop %v3826
    %v3828 = vmul.f32 %v3823, %v3827
    %v3831 = vunpack.c.l.s4 1966171168
    %v3832 = vunpack.c.0.s8 %v3831
    %v3833 = vlaneseq
    %v3834 = vshrl.u32 %v3833, 7
    %v3835 = vsub.s32 %v3832, %v3834
    %v3836 = vrot.slane %v3828, %v3835
    %v3837 = vcombine.high %v3836, %v3836
    %v3839 = vunpack.c.l.s4 1966171168
    %v3840 = vunpack.c.0.s8 %v3839
    %v3841 = vlaneseq
    %v3842 = vshrl.u32 %v3841, 7
    %v3843 = vsub.s32 %v3840, %v3842
    %v3844 = vrot.slane %v3836, %v3843
    %v3846 = vunpack.c.l.s4 1966171168
    %v3847 = vunpack.c.0.s8 %v3846
    %v3848 = vlaneseq
    %v3849 = vshrl.u32 %v3848, 7
    %v3850 = vsub.s32 %v3847, %v3849
    %v3851 = vrot.slane %v3837, %v3850
    %v3852 = vcombine.high %v3844, %v3844
    %v3853 = vcombine.high %v3851, %v3851
    %3858 = vst [vmem:[%s7 + $0x2] sm:$0x1] %v3844
    %3859 = vst [vmem:[%s7 + $0xa] sm:$0x1] %v3851
    %3860 = vst [vmem:[%s7 + $0x12] sm:$0x1] %v3852
    %3861 = vst [vmem:[%s7 + $0x1a] sm:$0x1] %v3853
    %3862 = vset.pattern.permute.xlu0 0
    %3863 = vperm.xlu0 %3862, %v3828
    %v3864 = vpop.permute.xlu0 %3863
    %v3866 = vmul.f32 %v3864, %v3510
    %v3867 = vmul.f32 %v3864, %v3514
    %v3868 = vmul.f32 %v3864, %v3518
    %v3869 = vmul.f32 %v3864, %v3522
    %v3870 = vadd.f32 %v3408, %v3866
    %v3871 = vadd.f32 %v3410, %v3867
    %v3872 = vadd.f32 %v3479, %v3868
    %v3873 = vadd.f32 %v3481, %v3869
    %3874 = vset.pattern.permute.xlu0 1
    %3875 = vperm.xlu0 %3874, %v3828
    %v3876 = vpop.permute.xlu0 %3875
    %v3878 = vmul.f32 %v3876, %v3554
    %v3879 = vmul.f32 %v3876, %v3558
    %v3880 = vmul.f32 %v3876, %v3562
    %v3881 = vmul.f32 %v3876, %v3566
    %v3882 = vadd.f32 %v3870, %v3878
    %v3883 = vadd.f32 %v3871, %v3879
    %v3884 = vadd.f32 %v3872, %v3880
    %v3885 = vadd.f32 %v3873, %v3881
    %3886 = vset.pattern.permute.xlu0 2
    %3887 = vperm.xlu0 %3886, %v3828
    %v3888 = vpop.permute.xlu0 %3887
    %v3890 = vmul.f32 %v3888, %v3598
    %v3891 = vmul.f32 %v3888, %v3602
    %v3892 = vmul.f32 %v3888, %v3606
    %v3893 = vmul.f32 %v3888, %v3610
    %v3894 = vadd.f32 %v3882, %v3890
    %v3895 = vadd.f32 %v3883, %v3891
    %v3896 = vadd.f32 %v3884, %v3892
    %v3897 = vadd.f32 %v3885, %v3893
    %v3898 = vxor.u32 %v3894, 2147483648
    %v3899 = vmul.f32 %v3898, 1.442695
    %v3900 = vpow.pop %v3899
    %v3901 = vadd.f32 %v3900, 1.0
    %v3902 = vrcp.pop %v3901
    %v3903 = vmul.f32 1.0, %v3902
    %v3904 = vxor.u32 %v3895, 2147483648
    %v3905 = vmul.f32 %v3904, 1.442695
    %v3906 = vpow.pop %v3905
    %v3907 = vadd.f32 %v3906, 1.0
    %v3908 = vrcp.pop %v3907
    %v3909 = vmul.f32 1.0, %v3908
    %v3910 = vtanh.pop %v3896
    %v3911 = vxor.u32 %v3897, 2147483648
    %v3912 = vmul.f32 %v3911, 1.442695
    %v3913 = vpow.pop %v3912
    %v3914 = vadd.f32 %v3913, 1.0
    %v3915 = vrcp.pop %v3914
    %v3916 = vmul.f32 1.0, %v3915
    %v3917 = vmul.f32 %v3909, %v3826
    %v3918 = vmul.f32 %v3903, %v3910
    %v3919 = vadd.f32 %v3917, %v3918
    %v3920 = vtanh.pop %v3919
    %v3921 = vmul.f32 %v3916, %v3920
    %v3924 = vunpack.c.l.s4 1966171168
    %v3925 = vunpack.c.0.s8 %v3924
    %v3926 = vlaneseq
    %v3927 = vshrl.u32 %v3926, 7
    %v3928 = vsub.s32 %v3925, %v3927
    %v3929 = vrot.slane %v3921, %v3928
    %v3930 = vcombine.high %v3929, %v3929
    %v3932 = vunpack.c.l.s4 1966171168
    %v3933 = vunpack.c.0.s8 %v3932
    %v3934 = vlaneseq
    %v3935 = vshrl.u32 %v3934, 7
    %v3936 = vsub.s32 %v3933, %v3935
    %v3937 = vrot.slane %v3929, %v3936
    %v3939 = vunpack.c.l.s4 1966171168
    %v3940 = vunpack.c.0.s8 %v3939
    %v3941 = vlaneseq
    %v3942 = vshrl.u32 %v3941, 7
    %v3943 = vsub.s32 %v3940, %v3942
    %v3944 = vrot.slane %v3930, %v3943
    %v3945 = vcombine.high %v3937, %v3937
    %v3946 = vcombine.high %v3944, %v3944
    %3951 = vst [vmem:[%s7 + $0x3] sm:$0x1] %v3937
    %3952 = vst [vmem:[%s7 + $0xb] sm:$0x1] %v3944
    %3953 = vst [vmem:[%s7 + $0x13] sm:$0x1] %v3945
    %3954 = vst [vmem:[%s7 + $0x1b] sm:$0x1] %v3946
    %3955 = vset.pattern.permute.xlu0 0
    %3956 = vperm.xlu0 %3955, %v3921
    %v3957 = vpop.permute.xlu0 %3956
    %v3959 = vmul.f32 %v3957, %v3510
    %v3960 = vmul.f32 %v3957, %v3514
    %v3961 = vmul.f32 %v3957, %v3518
    %v3962 = vmul.f32 %v3957, %v3522
    %v3963 = vadd.f32 %v3408, %v3959
    %v3964 = vadd.f32 %v3410, %v3960
    %v3965 = vadd.f32 %v3479, %v3961
    %v3966 = vadd.f32 %v3481, %v3962
    %3967 = vset.pattern.permute.xlu0 1
    %3968 = vperm.xlu0 %3967, %v3921
    %v3969 = vpop.permute.xlu0 %3968
    %v3971 = vmul.f32 %v3969, %v3554
    %v3972 = vmul.f32 %v3969, %v3558
    %v3973 = vmul.f32 %v3969, %v3562
    %v3974 = vmul.f32 %v3969, %v3566
    %v3975 = vadd.f32 %v3963, %v3971
    %v3976 = vadd.f32 %v3964, %v3972
    %v3977 = vadd.f32 %v3965, %v3973
    %v3978 = vadd.f32 %v3966, %v3974
    %3979 = vset.pattern.permute.xlu0 2
    %3980 = vperm.xlu0 %3979, %v3921
    %v3981 = vpop.permute.xlu0 %3980
    %v3983 = vmul.f32 %v3981, %v3598
    %v3984 = vmul.f32 %v3981, %v3602
    %v3985 = vmul.f32 %v3981, %v3606
    %v3986 = vmul.f32 %v3981, %v3610
    %v3987 = vadd.f32 %v3975, %v3983
    %v3988 = vadd.f32 %v3976, %v3984
    %v3989 = vadd.f32 %v3977, %v3985
    %v3990 = vadd.f32 %v3978, %v3986
    %v3991 = vxor.u32 %v3987, 2147483648
    %v3992 = vmul.f32 %v3991, 1.442695
    %v3993 = vpow.pop %v3992
    %v3994 = vadd.f32 %v3993, 1.0
    %v3995 = vrcp.pop %v3994
    %v3996 = vmul.f32 1.0, %v3995
    %v3997 = vxor.u32 %v3988, 2147483648
    %v3998 = vmul.f32 %v3997, 1.442695
    %v3999 = vpow.pop %v3998
    %v4000 = vadd.f32 %v3999, 1.0
    %v4001 = vrcp.pop %v4000
    %v4002 = vmul.f32 1.0, %v4001
    %v4003 = vtanh.pop %v3989
    %v4004 = vxor.u32 %v3990, 2147483648
    %v4005 = vmul.f32 %v4004, 1.442695
    %v4006 = vpow.pop %v4005
    %v4007 = vadd.f32 %v4006, 1.0
    %v4008 = vrcp.pop %v4007
    %v4009 = vmul.f32 1.0, %v4008
    %v4010 = vmul.f32 %v4002, %v3919
    %v4011 = vmul.f32 %v3996, %v4003
    %v4012 = vadd.f32 %v4010, %v4011
    %v4013 = vtanh.pop %v4012
    %v4014 = vmul.f32 %v4009, %v4013
    %v4017 = vunpack.c.l.s4 1966171168
    %v4018 = vunpack.c.0.s8 %v4017
    %v4019 = vlaneseq
    %v4020 = vshrl.u32 %v4019, 7
    %v4021 = vsub.s32 %v4018, %v4020
    %v4022 = vrot.slane %v4014, %v4021
    %v4023 = vcombine.high %v4022, %v4022
    %v4025 = vunpack.c.l.s4 1966171168
    %v4026 = vunpack.c.0.s8 %v4025
    %v4027 = vlaneseq
    %v4028 = vshrl.u32 %v4027, 7
    %v4029 = vsub.s32 %v4026, %v4028
    %v4030 = vrot.slane %v4022, %v4029
    %v4032 = vunpack.c.l.s4 1966171168
    %v4033 = vunpack.c.0.s8 %v4032
    %v4034 = vlaneseq
    %v4035 = vshrl.u32 %v4034, 7
    %v4036 = vsub.s32 %v4033, %v4035
    %v4037 = vrot.slane %v4023, %v4036
    %v4038 = vcombine.high %v4030, %v4030
    %v4039 = vcombine.high %v4037, %v4037
    %4044 = vst [vmem:[%s7 + $0x4] sm:$0x1] %v4030
    %4045 = vst [vmem:[%s7 + $0xc] sm:$0x1] %v4037
    %4046 = vst [vmem:[%s7 + $0x14] sm:$0x1] %v4038
    %4047 = vst [vmem:[%s7 + $0x1c] sm:$0x1] %v4039
    %4048 = vset.pattern.permute.xlu0 0
    %4049 = vperm.xlu0 %4048, %v4014
    %v4050 = vpop.permute.xlu0 %4049
    %v4052 = vmul.f32 %v4050, %v3510
    %v4053 = vmul.f32 %v4050, %v3514
    %v4054 = vmul.f32 %v4050, %v3518
    %v4055 = vmul.f32 %v4050, %v3522
    %v4056 = vadd.f32 %v3408, %v4052
    %v4057 = vadd.f32 %v3410, %v4053
    %v4058 = vadd.f32 %v3479, %v4054
    %v4059 = vadd.f32 %v3481, %v4055
    %4060 = vset.pattern.permute.xlu0 1
    %4061 = vperm.xlu0 %4060, %v4014
    %v4062 = vpop.permute.xlu0 %4061
    %v4064 = vmul.f32 %v4062, %v3554
    %v4065 = vmul.f32 %v4062, %v3558
    %v4066 = vmul.f32 %v4062, %v3562
    %v4067 = vmul.f32 %v4062, %v3566
    %v4068 = vadd.f32 %v4056, %v4064
    %v4069 = vadd.f32 %v4057, %v4065
    %v4070 = vadd.f32 %v4058, %v4066
    %v4071 = vadd.f32 %v4059, %v4067
    %4072 = vset.pattern.permute.xlu0 2
    %4073 = vperm.xlu0 %4072, %v4014
    %v4074 = vpop.permute.xlu0 %4073
    %v4076 = vmul.f32 %v4074, %v3598
    %v4077 = vmul.f32 %v4074, %v3602
    %v4078 = vmul.f32 %v4074, %v3606
    %v4079 = vmul.f32 %v4074, %v3610
    %v4080 = vadd.f32 %v4068, %v4076
    %v4081 = vadd.f32 %v4069, %v4077
    %v4082 = vadd.f32 %v4070, %v4078
    %v4083 = vadd.f32 %v4071, %v4079
    %v4084 = vxor.u32 %v4080, 2147483648
    %v4085 = vmul.f32 %v4084, 1.442695
    %v4086 = vpow.pop %v4085
    %v4087 = vadd.f32 %v4086, 1.0
    %v4088 = vrcp.pop %v4087
    %v4089 = vmul.f32 1.0, %v4088
    %v4090 = vxor.u32 %v4081, 2147483648
    %v4091 = vmul.f32 %v4090, 1.442695
    %v4092 = vpow.pop %v4091
    %v4093 = vadd.f32 %v4092, 1.0
    %v4094 = vrcp.pop %v4093
    %v4095 = vmul.f32 1.0, %v4094
    %v4096 = vtanh.pop %v4082
    %v4097 = vxor.u32 %v4083, 2147483648
    %v4098 = vmul.f32 %v4097, 1.442695
    %v4099 = vpow.pop %v4098
    %v4100 = vadd.f32 %v4099, 1.0
    %v4101 = vrcp.pop %v4100
    %v4102 = vmul.f32 1.0, %v4101
    %v4103 = vmul.f32 %v4095, %v4012
    %v4104 = vmul.f32 %v4089, %v4096
    %v4105 = vadd.f32 %v4103, %v4104
    %v4106 = vtanh.pop %v4105
    %v4107 = vmul.f32 %v4102, %v4106
    %v4110 = vunpack.c.l.s4 1966171168
    %v4111 = vunpack.c.0.s8 %v4110
    %v4112 = vlaneseq
    %v4113 = vshrl.u32 %v4112, 7
    %v4114 = vsub.s32 %v4111, %v4113
    %v4115 = vrot.slane %v4107, %v4114
    %v4116 = vcombine.high %v4115, %v4115
    %v4118 = vunpack.c.l.s4 1966171168
    %v4119 = vunpack.c.0.s8 %v4118
    %v4120 = vlaneseq
    %v4121 = vshrl.u32 %v4120, 7
    %v4122 = vsub.s32 %v4119, %v4121
    %v4123 = vrot.slane %v4115, %v4122
    %v4125 = vunpack.c.l.s4 1966171168
    %v4126 = vunpack.c.0.s8 %v4125
    %v4127 = vlaneseq
    %v4128 = vshrl.u32 %v4127, 7
    %v4129 = vsub.s32 %v4126, %v4128
    %v4130 = vrot.slane %v4116, %v4129
    %v4131 = vcombine.high %v4123, %v4123
    %v4132 = vcombine.high %v4130, %v4130
    %4137 = vst [vmem:[%s7 + $0x5] sm:$0x1] %v4123
    %4138 = vst [vmem:[%s7 + $0xd] sm:$0x1] %v4130
    %4139 = vst [vmem:[%s7 + $0x15] sm:$0x1] %v4131
    %4140 = vst [vmem:[%s7 + $0x1d] sm:$0x1] %v4132
    %4141 = vset.pattern.permute.xlu0 0
    %4142 = vperm.xlu0 %4141, %v4107
    %v4143 = vpop.permute.xlu0 %4142
    %v4145 = vmul.f32 %v4143, %v3510
    %v4146 = vmul.f32 %v4143, %v3514
    %v4147 = vmul.f32 %v4143, %v3518
    %v4148 = vmul.f32 %v4143, %v3522
    %v4149 = vadd.f32 %v3408, %v4145
    %v4150 = vadd.f32 %v3410, %v4146
    %v4151 = vadd.f32 %v3479, %v4147
    %v4152 = vadd.f32 %v3481, %v4148
    %4153 = vset.pattern.permute.xlu0 1
    %4154 = vperm.xlu0 %4153, %v4107
    %v4155 = vpop.permute.xlu0 %4154
    %v4157 = vmul.f32 %v4155, %v3554
    %v4158 = vmul.f32 %v4155, %v3558
    %v4159 = vmul.f32 %v4155, %v3562
    %v4160 = vmul.f32 %v4155, %v3566
    %v4161 = vadd.f32 %v4149, %v4157
    %v4162 = vadd.f32 %v4150, %v4158
    %v4163 = vadd.f32 %v4151, %v4159
    %v4164 = vadd.f32 %v4152, %v4160
    %4165 = vset.pattern.permute.xlu0 2
    %4166 = vperm.xlu0 %4165, %v4107
    %v4167 = vpop.permute.xlu0 %4166
    %v4169 = vmul.f32 %v4167, %v3598
    %v4170 = vmul.f32 %v4167, %v3602
    %v4171 = vmul.f32 %v4167, %v3606
    %v4172 = vmul.f32 %v4167, %v3610
    %v4173 = vadd.f32 %v4161, %v4169
    %v4174 = vadd.f32 %v4162, %v4170
    %v4175 = vadd.f32 %v4163, %v4171
    %v4176 = vadd.f32 %v4164, %v4172
    %v4177 = vxor.u32 %v4173, 2147483648
    %v4178 = vmul.f32 %v4177, 1.442695
    %v4179 = vpow.pop %v4178
    %v4180 = vadd.f32 %v4179, 1.0
    %v4181 = vrcp.pop %v4180
    %v4182 = vmul.f32 1.0, %v4181
    %v4183 = vxor.u32 %v4174, 2147483648
    %v4184 = vmul.f32 %v4183, 1.442695
    %v4185 = vpow.pop %v4184
    %v4186 = vadd.f32 %v4185, 1.0
    %v4187 = vrcp.pop %v4186
    %v4188 = vmul.f32 1.0, %v4187
    %v4189 = vtanh.pop %v4175
    %v4190 = vxor.u32 %v4176, 2147483648
    %v4191 = vmul.f32 %v4190, 1.442695
    %v4192 = vpow.pop %v4191
    %v4193 = vadd.f32 %v4192, 1.0
    %v4194 = vrcp.pop %v4193
    %v4195 = vmul.f32 1.0, %v4194
    %v4196 = vmul.f32 %v4188, %v4105
    %v4197 = vmul.f32 %v4182, %v4189
    %v4198 = vadd.f32 %v4196, %v4197
    %v4199 = vtanh.pop %v4198
    %v4200 = vmul.f32 %v4195, %v4199
    %v4203 = vunpack.c.l.s4 1966171168
    %v4204 = vunpack.c.0.s8 %v4203
    %v4205 = vlaneseq
    %v4206 = vshrl.u32 %v4205, 7
    %v4207 = vsub.s32 %v4204, %v4206
    %v4208 = vrot.slane %v4200, %v4207
    %v4209 = vcombine.high %v4208, %v4208
    %v4211 = vunpack.c.l.s4 1966171168
    %v4212 = vunpack.c.0.s8 %v4211
    %v4213 = vlaneseq
    %v4214 = vshrl.u32 %v4213, 7
    %v4215 = vsub.s32 %v4212, %v4214
    %v4216 = vrot.slane %v4208, %v4215
    %v4218 = vunpack.c.l.s4 1966171168
    %v4219 = vunpack.c.0.s8 %v4218
    %v4220 = vlaneseq
    %v4221 = vshrl.u32 %v4220, 7
    %v4222 = vsub.s32 %v4219, %v4221
    %v4223 = vrot.slane %v4209, %v4222
    %v4224 = vcombine.high %v4216, %v4216
    %v4225 = vcombine.high %v4223, %v4223
    %4230 = vst [vmem:[%s7 + $0x6] sm:$0x1] %v4216
    %4231 = vst [vmem:[%s7 + $0xe] sm:$0x1] %v4223
    %4232 = vst [vmem:[%s7 + $0x16] sm:$0x1] %v4224
    %4233 = vst [vmem:[%s7 + $0x1e] sm:$0x1] %v4225
    %4234 = vset.pattern.permute.xlu0 0
    %4235 = vperm.xlu0 %4234, %v4200
    %v4236 = vpop.permute.xlu0 %4235
    %v4238 = vmul.f32 %v4236, %v3510
    %v4239 = vmul.f32 %v4236, %v3514
    %v4240 = vmul.f32 %v4236, %v3518
    %v4241 = vmul.f32 %v4236, %v3522
    %v4242 = vadd.f32 %v3408, %v4238
    %v4243 = vadd.f32 %v3410, %v4239
    %v4244 = vadd.f32 %v3479, %v4240
    %v4245 = vadd.f32 %v3481, %v4241
    %4246 = vset.pattern.permute.xlu0 1
    %4247 = vperm.xlu0 %4246, %v4200
    %v4248 = vpop.permute.xlu0 %4247
    %v4250 = vmul.f32 %v4248, %v3554
    %v4251 = vmul.f32 %v4248, %v3558
    %v4252 = vmul.f32 %v4248, %v3562
    %v4253 = vmul.f32 %v4248, %v3566
    %v4254 = vadd.f32 %v4242, %v4250
    %v4255 = vadd.f32 %v4243, %v4251
    %v4256 = vadd.f32 %v4244, %v4252
    %v4257 = vadd.f32 %v4245, %v4253
    %4258 = vset.pattern.permute.xlu0 2
    %4259 = vperm.xlu0 %4258, %v4200
    %v4260 = vpop.permute.xlu0 %4259
    %v4262 = vmul.f32 %v4260, %v3598
    %v4263 = vmul.f32 %v4260, %v3602
    %v4264 = vmul.f32 %v4260, %v3606
    %v4265 = vmul.f32 %v4260, %v3610
    %v4266 = vadd.f32 %v4254, %v4262
    %v4267 = vadd.f32 %v4255, %v4263
    %v4268 = vadd.f32 %v4256, %v4264
    %v4269 = vadd.f32 %v4257, %v4265
    %v4270 = vxor.u32 %v4266, 2147483648
    %v4271 = vmul.f32 %v4270, 1.442695
    %v4272 = vpow.pop %v4271
    %v4273 = vadd.f32 %v4272, 1.0
    %v4274 = vrcp.pop %v4273
    %v4275 = vmul.f32 1.0, %v4274
    %v4276 = vxor.u32 %v4267, 2147483648
    %v4277 = vmul.f32 %v4276, 1.442695
    %v4278 = vpow.pop %v4277
    %v4279 = vadd.f32 %v4278, 1.0
    %v4280 = vrcp.pop %v4279
    %v4281 = vmul.f32 1.0, %v4280
    %v4282 = vtanh.pop %v4268
    %v4283 = vxor.u32 %v4269, 2147483648
    %v4284 = vmul.f32 %v4283, 1.442695
    %v4285 = vpow.pop %v4284
    %v4286 = vadd.f32 %v4285, 1.0
    %v4287 = vrcp.pop %v4286
    %v4288 = vmul.f32 1.0, %v4287
    %v4289 = vmul.f32 %v4281, %v4198
    %v4290 = vmul.f32 %v4275, %v4282
    %v4291 = vadd.f32 %v4289, %v4290
    %v4292 = vtanh.pop %v4291
    %v4293 = vmul.f32 %v4288, %v4292
    %v4296 = vunpack.c.l.s4 1966171168
    %v4297 = vunpack.c.0.s8 %v4296
    %v4298 = vlaneseq
    %v4299 = vshrl.u32 %v4298, 7
    %v4300 = vsub.s32 %v4297, %v4299
    %v4301 = vrot.slane %v4293, %v4300
    %v4302 = vcombine.high %v4301, %v4301
    %v4304 = vunpack.c.l.s4 1966171168
    %v4305 = vunpack.c.0.s8 %v4304
    %v4306 = vlaneseq
    %v4307 = vshrl.u32 %v4306, 7
    %v4308 = vsub.s32 %v4305, %v4307
    %v4309 = vrot.slane %v4301, %v4308
    %v4311 = vunpack.c.l.s4 1966171168
    %v4312 = vunpack.c.0.s8 %v4311
    %v4313 = vlaneseq
    %v4314 = vshrl.u32 %v4313, 7
    %v4315 = vsub.s32 %v4312, %v4314
    %v4316 = vrot.slane %v4302, %v4315
    %v4317 = vcombine.high %v4309, %v4309
    %v4318 = vcombine.high %v4316, %v4316
    %4323 = vst [vmem:[%s7 + $0x7] sm:$0x1] %v4309
    %4324 = vst [vmem:[%s7 + $0xf] sm:$0x1] %v4316
    %4325 = vst [vmem:[%s7 + $0x17] sm:$0x1] %v4317
    %4326 = vst [vmem:[%s7 + $0x1f] sm:$0x1] %v4318
    // Predicated region
    $region38: #{lstm_autoencoder_forward.1} parent=1 // pred_check
      _
    $region39: #{lstm_autoencoder_forward.1} parent=1 // pred_check_branch
      %4328 = sbr.rel (0) target = $region41
    $region40: #{lstm_autoencoder_forward.1} parent=1 // pred_region
      _
    $region41: #{lstm_autoencoder_forward.1} parent=1 // pred_fallthru
      _
    // Predicated region
    $region42: #{lstm_autoencoder_forward.1} parent=1 // pred_check
      _
    $region43: #{lstm_autoencoder_forward.1} parent=1 // pred_check_branch
      %4330 = sbr.rel (0) target = $region45
    $region44: #{lstm_autoencoder_forward.1} parent=1 // pred_region
      _
    $region45: #{lstm_autoencoder_forward.1} parent=1 // pred_fallthru
      _
    %4331 = vsyncpa [#allocation3], 1
    %4332 = vsyncpa [#allocation5], 1

</llo_original>
